<compile_context>
chip_gen: v6e
topology: v6e:2x2x1
jax: 0.10.0
libtpu: 0.0.40
codegen_flags: <defaults>
</compile_context>

<pallas_src>
import math
from functools import partial

import jax
import jax.numpy as jnp
from jax import lax
from jax.experimental import pallas as pl
from jax.experimental.pallas import tpu as pltpu


# ------------------------- tiled linear projection --------------------------

def _linear_kernel(x_ref, w_ref, o_ref):
    # x: (Tr, d_in) bf16, w: (d_in, d_out) bf16 (pre-transposed) -> o: (Tr, d_out)
    o_ref[...] = jnp.dot(x_ref[...], w_ref[...],
                         preferred_element_type=jnp.float32).astype(o_ref.dtype)


def linear(x, w_t, out_dtype=jnp.bfloat16, row_tile=256):
    N, d_in = x.shape
    d_out = w_t.shape[1]
    tr = min(row_tile, N)
    bytes_acc = (N * d_in * 2 + d_in * d_out * 2
                 + N * d_out * jnp.dtype(out_dtype).itemsize)
    return pl.pallas_call(
        _linear_kernel,
        out_shape=jax.ShapeDtypeStruct((N, d_out), out_dtype),
        grid=(pl.cdiv(N, tr),),
        in_specs=[pl.BlockSpec((tr, d_in), lambda i: (i, 0)),
                  pl.BlockSpec((d_in, d_out), lambda i: (0, 0))],
        out_specs=pl.BlockSpec((tr, d_out), lambda i: (i, 0)),
        compiler_params=pltpu.CompilerParams(
            dimension_semantics=("parallel",)),
        cost_estimate=pl.CostEstimate(
            flops=2 * N * d_in * d_out, transcendentals=0,
            bytes_accessed=bytes_acc),
    )(x, w_t)


# -------------- sparsity measure M from the sampled Q.K products ------------

def _sparse_m_kernel(q_ref, kg_ref, m_ref, *, n_heads, d_k):
    # q:  (1, Tl, H*E)        bf16  (query rows)
    # kg: (1, Tl, u_k, H*E)   bf16  (per-row sampled key rows)
    # m:  (1, Tl, H)          f32   M = max_j(q.k_j) - mean_j(q.k_j)
    q_all = q_ref[0].astype(jnp.float32)      # (Tl, H*E)
    kg_all = kg_ref[0].astype(jnp.float32)    # (Tl, u_k, H*E)
    cols = []
    for h in range(n_heads):                  # static per-head slices (no reshape)
        sl = slice(h * d_k, (h + 1) * d_k)
        q = q_all[:, sl]                      # (Tl, E)
        kg = kg_all[:, :, sl]                 # (Tl, u_k, E)
        s = jnp.sum(q[:, None, :] * kg, axis=-1)            # (Tl, u_k)  VPU
        cols.append(jnp.max(s, axis=-1, keepdims=True)
                    - jnp.mean(s, axis=-1, keepdims=True))   # (Tl, 1)
    m_ref[0] = jnp.concatenate(cols, axis=-1)


def sparse_m(q, kg, *, n_heads, d_k, l_tile=256):
    B, L_Q, HE = q.shape
    u_k = kg.shape[2]
    tl = min(l_tile, L_Q)
    kern = partial(_sparse_m_kernel, n_heads=n_heads, d_k=d_k)
    bytes_acc = (B * L_Q * HE * 2 + B * L_Q * u_k * HE * 2
                 + B * L_Q * n_heads * 4)
    return pl.pallas_call(
        kern,
        out_shape=jax.ShapeDtypeStruct((B, L_Q, n_heads), jnp.float32),
        grid=(B, pl.cdiv(L_Q, tl)),
        in_specs=[pl.BlockSpec((1, tl, HE), lambda b, l: (b, l, 0)),
                  pl.BlockSpec((1, tl, u_k, HE), lambda b, l: (b, l, 0, 0))],
        out_specs=pl.BlockSpec((1, tl, n_heads), lambda b, l: (b, l, 0)),
        compiler_params=pltpu.CompilerParams(
            dimension_semantics=("parallel", "parallel")),
        cost_estimate=pl.CostEstimate(
            flops=2 * B * L_Q * u_k * HE, transcendentals=0,
            bytes_accessed=bytes_acc),
    )(q, kg)


# ------- fused: scaled scores + softmax + attn@V + initial context ----------

def _attn_context_kernel(qs_ref, k_ref, v_ref, top_ref, ctx_ref,
                         *, n_heads, d_k, d_v, scale):
    # qs:  (1, u_q, H*E) bf16   (top-u_q query rows, per head)
    # k:   (1, L_K, H*E) bf16
    # v:   (1, L_K, H*dv) bf16
    # top: (1, H, u_q)   int32  (top-k row indices)
    # ctx: (1, L_Q, H*dv)       context already in transpose(1,2) layout
    L_Q = ctx_ref.shape[1]
    qs_all = qs_ref[0]
    k_all = k_ref[0]
    v_all = v_ref[0]
    top_all = top_ref[0]
    parts = []
    for h in range(n_heads):
        qs = qs_all[:, h * d_k:(h + 1) * d_k]          # (u_q, E)
        k = k_all[:, h * d_k:(h + 1) * d_k]            # (L_K, E)
        v = v_all[:, h * d_v:(h + 1) * d_v]            # (L_K, dv)
        # scores = Q_sample @ K^T / sqrt(d_k)  (NT matmul, no transpose op)
        s = lax.dot_general(qs, k, (((1,), (1,)), ((), ())),
                            preferred_element_type=jnp.float32) * scale
        m = jnp.max(s, axis=-1, keepdims=True)
        p = jnp.exp(s - m)
        attn = p * pl.reciprocal(jnp.sum(p, axis=-1, keepdims=True), approx=True)
        vals = jnp.dot(attn.astype(jnp.bfloat16), v,
                       preferred_element_type=jnp.float32)         # (u_q, dv)
        vmean = jnp.mean(v.astype(jnp.float32), axis=0, keepdims=True)  # (1, dv)
        # initial context = V-mean everywhere, then scatter the u_q rows.
        # top-k indices are distinct per (b,h) -> scatter == one-hot matmul.
        idx = top_all[h:h + 1, :]                                   # (1, u_q)
        onehot = (lax.broadcasted_iota(jnp.int32, (L_Q, idx.shape[1]), 0)
                  == idx).astype(jnp.float32)                       # (L_Q, u_q)
        ctx_h = vmean + jnp.dot(onehot, vals - vmean,
                                preferred_element_type=jnp.float32)  # (L_Q, dv)
        parts.append(ctx_h)
    # single lane-dense store of the whole (L_Q, H*dv) slab
    ctx_ref[0] = jnp.concatenate(parts, axis=-1).astype(ctx_ref.dtype)


def attn_context(q_sample, k, v, top_index, L_Q, *, n_heads, d_k, d_v):
    B, u_q, HE = q_sample.shape
    L_K = k.shape[1]
    Hdv = v.shape[2]
    kern = partial(_attn_context_kernel, n_heads=n_heads, d_k=d_k, d_v=d_v,
                   scale=1.0 / math.sqrt(d_k))
    flops = 2 * B * n_heads * (u_q * L_K * d_k + u_q * L_K * d_v
                               + L_Q * u_q * d_v)
    bytes_acc = (B * u_q * HE * 2 + B * L_K * HE * 2 + B * L_K * Hdv * 2
                 + B * n_heads * u_q * 4 + B * L_Q * Hdv * 2)
    return pl.pallas_call(
        kern,
        out_shape=jax.ShapeDtypeStruct((B, L_Q, Hdv), jnp.bfloat16),
        grid=(B,),
        in_specs=[pl.BlockSpec((1, u_q, HE), lambda b: (b, 0, 0)),
                  pl.BlockSpec((1, L_K, HE), lambda b: (b, 0, 0)),
                  pl.BlockSpec((1, L_K, Hdv), lambda b: (b, 0, 0)),
                  pl.BlockSpec((1, n_heads, u_q), lambda b: (b, 0, 0))],
        out_specs=pl.BlockSpec((1, L_Q, Hdv), lambda b: (b, 0, 0)),
        compiler_params=pltpu.CompilerParams(
            dimension_semantics=("parallel",)),
        cost_estimate=pl.CostEstimate(
            flops=flops, transcendentals=B * n_heads * u_q * L_K,
            bytes_accessed=bytes_acc),
    )(q_sample, k, v, top_index)


# ------------- fused: fc projection + residual add + LayerNorm --------------

def _fc_add_ln_kernel(x_ref, w_ref, r_ref, g_ref, b_ref, o_ref):
    # LayerNorm(x @ W_fc + residual); PyTorch eps=1e-5, biased variance.
    y = jnp.dot(x_ref[...], w_ref[...], preferred_element_type=jnp.float32)
    y = y + r_ref[...]
    mean = jnp.mean(y, axis=-1, keepdims=True)
    var = jnp.mean((y - mean) ** 2, axis=-1, keepdims=True)
    o_ref[...] = ((y - mean) * lax.rsqrt(var + 1e-5)) * g_ref[...] + b_ref[...]


def fc_add_layernorm(ctx, w_fc_t, residual, gamma, beta, row_tile=256):
    N, Hdv = ctx.shape
    d_model = w_fc_t.shape[1]
    tr = min(row_tile, N)
    bytes_acc = (N * Hdv * 2 + Hdv * d_model * 2 + 2 * N * d_model * 4
                 + 2 * d_model * 4)
    return pl.pallas_call(
        _fc_add_ln_kernel,
        out_shape=jax.ShapeDtypeStruct((N, d_model), jnp.float32),
        grid=(pl.cdiv(N, tr),),
        in_specs=[pl.BlockSpec((tr, Hdv), lambda i: (i, 0)),
                  pl.BlockSpec((Hdv, d_model), lambda i: (0, 0)),
                  pl.BlockSpec((tr, d_model), lambda i: (i, 0)),
                  pl.BlockSpec((1, d_model), lambda i: (0, 0)),
                  pl.BlockSpec((1, d_model), lambda i: (0, 0))],
        out_specs=pl.BlockSpec((tr, d_model), lambda i: (i, 0)),
        compiler_params=pltpu.CompilerParams(
            dimension_semantics=("parallel",)),
        cost_estimate=pl.CostEstimate(
            flops=2 * N * Hdv * d_model + 8 * N * d_model,
            transcendentals=N, bytes_accessed=bytes_acc),
    )(ctx, w_fc_t, residual, gamma, beta)


# ------------------------------ forward glue --------------------------------

def prepare_params(torch_layout_params):
    # One-time: transpose nn.Linear weights (d_out, d_in) -> (d_in, d_out) and
    # cast matmul weights to bf16; LayerNorm affine stays f32.
    return {
        "W_Q": torch_layout_params["W_Q"].T.astype(jnp.bfloat16),
        "W_K": torch_layout_params["W_K"].T.astype(jnp.bfloat16),
        "W_V": torch_layout_params["W_V"].T.astype(jnp.bfloat16),
        "fc":  torch_layout_params["fc"].T.astype(jnp.bfloat16),
        "ln_g": torch_layout_params["ln_g"].astype(jnp.float32),
        "ln_b": torch_layout_params["ln_b"].astype(jnp.float32),
    }


def prob_attention_forward(params, input_Q, input_K, input_V, sample_key,
                           *, n_heads, d_k, d_v, c):
    B, L_Q, d_model = input_Q.shape
    L_K = input_K.shape[1]
    u_k = min(int(c * math.log(L_K)), L_Q)   # sample_k (reference formula)
    u_q = min(int(c * math.log(L_Q)), L_Q)   # n_top

    x_q = input_Q.reshape(B * L_Q, d_model).astype(jnp.bfloat16)
    x_k = input_K.reshape(B * L_K, d_model).astype(jnp.bfloat16)
    x_v = input_V.reshape(B * L_K, d_model).astype(jnp.bfloat16)

    # projections stay in head-major feature layout (B, L, H*d) — no transposes
    Q = linear(x_q, params["W_Q"]).reshape(B, L_Q, n_heads * d_k)
    K = linear(x_k, params["W_K"]).reshape(B, L_K, n_heads * d_k)
    V = linear(x_v, params["W_V"]).reshape(B, L_K, n_heads * d_v)

    # _prob_QK: one (L_Q, u_k) random index set shared across B, H (torch.randint)
    idx_sample = jax.random.randint(sample_key, (L_Q, u_k), 0, L_K)
    K_sample = K[:, idx_sample]               # (B, L_Q, u_k, H*d_k) — O(L logL)
    M = sparse_m(Q, K_sample, n_heads=n_heads, d_k=d_k)   # (B, L_Q, H)
    M = jnp.transpose(M, (0, 2, 1))                         # (B, H, L_Q) (tiny)
    _, top_index = lax.top_k(M, u_q)                        # (B, H, u_q)

    # gather the u_q selected query rows per head -> (B, u_q, H*d_k)  (tiny)
    Qh = Q.reshape(B, L_Q, n_heads, d_k)
    ti = jnp.broadcast_to(jnp.transpose(top_index, (0, 2, 1))[..., None],
                          (B, u_q, n_heads, d_k))
    Q_sample = jnp.take_along_axis(Qh, ti, axis=1).reshape(B, u_q, n_heads * d_k)

    # fused scale + softmax + attn@V + V-mean init + scatter(top rows);
    # output is already in the (B, L_Q, H*d_v) "transpose(1,2)" layout (mix=False)
    context = attn_context(Q_sample, K, V, top_index.astype(jnp.int32), L_Q,
                           n_heads=n_heads, d_k=d_k, d_v=d_v)

    # fused fc + residual add + LayerNorm (dropout p=0.0 -> identity)
    residual = input_Q.reshape(B * L_Q, d_model).astype(jnp.float32)
    out = fc_add_layernorm(context.reshape(B * L_Q, n_heads * d_v),
                           params["fc"], residual,
                           params["ln_g"], params["ln_b"])
    # TODO(synk): attn_mask cumsum branch and the `alpha` (Linear(3072,1)+Sigmoid)
    # ind==1 branch are not exercised on the reference's default path.
    return out.reshape(B, L_Q, d_model), top_index, 0


# --------------------------------- driver -----------------------------------

if __name__ == "__main__":
    B, L, d_model = 2, 16, 32
    n_heads, d_k, d_v, c = 4, 8, 8, 3

    root = jax.random.PRNGKey(0)
    kq, kk, kv, kfc, kx1, kx2, kx3, ksamp = jax.random.split(root, 8)

    scale = 1.0 / math.sqrt(d_model)
    # parameters in PyTorch nn.Linear layout (d_out, d_in), then prepared once
    torch_params = {
        "W_Q": jax.random.normal(kq, (n_heads * d_k, d_model), jnp.float32) * scale,
        "W_K": jax.random.normal(kk, (n_heads * d_k, d_model), jnp.float32) * scale,
        "W_V": jax.random.normal(kv, (n_heads * d_v, d_model), jnp.float32) * scale,
        "fc":  jax.random.normal(kfc, (d_model, n_heads * d_v), jnp.float32) * scale,
        "ln_g": jnp.ones((1, d_model), jnp.float32),
        "ln_b": jnp.zeros((1, d_model), jnp.float32),
    }
    params = prepare_params(torch_params)

    input_Q = jax.random.normal(kx1, (B, L, d_model), jnp.float32)
    input_K = jax.random.normal(kx2, (B, L, d_model), jnp.float32)
    input_V = jax.random.normal(kx3, (B, L, d_model), jnp.float32)

    # single jit around the whole forward: one dispatch, glue ops fused by XLA
    fwd = jax.jit(partial(prob_attention_forward,
                          n_heads=n_heads, d_k=d_k, d_v=d_v, c=c))
    out, top_index, _ = fwd(params, input_Q, input_K, input_V, ksamp)
    jax.block_until_ready(out)
    jax.block_until_ready(top_index)

    assert out.shape == (B, L, d_model)
    assert top_index.shape == (B, n_heads, min(int(c * math.log(L)), L))
    print("KERNEL_OK")
</pallas_src>

<mosaic_0001>
module attributes {stable_mosaic.version = 11 : i64} {
  func.func @_linear_kernel(%arg0: i32, %arg1: memref<32x32xbf16, #tpu.memory_space<vmem>>, %arg2: memref<32x32xbf16, #tpu.memory_space<vmem>>, %arg3: memref<32x32xbf16, #tpu.memory_space<vmem>>) attributes {dimension_semantics = [#tpu.dimension_semantics<parallel>], iteration_bounds = array<i64: 1>, scalar_prefetch = 0 : i64, scratch_operands = 0 : i64, tpu.core_type = #tpu.core_type<tc>, window_params = [{transform_indices = @transform_0, window_bounds = array<i64: 32, 32>}, {pipeline_mode = #tpu.pipeline_mode<synchronous>, transform_indices = @transform_1, window_bounds = array<i64: 32, 32>}, {transform_indices = @transform_2, window_bounds = array<i64: 32, 32>}]} {
    %c0 = arith.constant 0 : index
    %c0_0 = arith.constant 0 : index
    %0 = vector.load %arg1[%c0, %c0_0] : memref<32x32xbf16, #tpu.memory_space<vmem>>, vector<32x32xbf16>
    %c0_1 = arith.constant 0 : index
    %c0_2 = arith.constant 0 : index
    %1 = vector.load %arg2[%c0_1, %c0_2] : memref<32x32xbf16, #tpu.memory_space<vmem>>, vector<32x32xbf16>
    %cst = arith.constant dense<0.000000e+00> : vector<32x32xf32>
    %2 = tpu.matmul %0, %1, %cst {dimension_numbers = #tpu.dot_dimension_numbers<[1], [0], [0], [1], [0, 0, 1, 1], [], []>} : vector<32x32xbf16>, vector<32x32xbf16>, vector<32x32xf32> -> vector<32x32xf32>
    %3 = arith.truncf %2 : vector<32x32xf32> to vector<32x32xbf16>
    %c0_3 = arith.constant 0 : index
    %c0_4 = arith.constant 0 : index
    %4 = vector.load %arg3[%c0_3, %c0_4] : memref<32x32xbf16, #tpu.memory_space<vmem>>, vector<32x32xbf16>
    tpu.vector_store %arg3[%c0_3, %c0_4], %3 {strides = array<i32>} : memref<32x32xbf16, #tpu.memory_space<vmem>>, vector<32x32xbf16>,
    return
  }
  func.func @transform_0(%arg0: i32) -> (i32, i32) {
    %c0_i32 = arith.constant 0 : i32
    %c0_i32_0 = arith.constant 0 : i32
    return %arg0, %c0_i32 : i32, i32
  }
  func.func @transform_1(%arg0: i32) -> (i32, i32) {
    %c0_i32 = arith.constant 0 : i32
    %c0_i32_0 = arith.constant 0 : i32
    %c0_i32_1 = arith.constant 0 : i32
    return %c0_i32, %c0_i32_0 : i32, i32
  }
  func.func @transform_2(%arg0: i32) -> (i32, i32) {
    %c0_i32 = arith.constant 0 : i32
    %c0_i32_0 = arith.constant 0 : i32
    return %arg0, %c0_i32 : i32, i32
  }
}

module attributes {stable_mosaic.version = 11 : i64} {
  func.func @_sparse_m_kernel(%arg0: i32, %arg1: i32, %arg2: memref<1x16x32xbf16, #tpu.memory_space<vmem>>, %arg3: memref<1x16x8x32xbf16, #tpu.memory_space<vmem>>, %arg4: memref<1x16x4xf32, #tpu.memory_space<vmem>>) attributes {dimension_semantics = [#tpu.dimension_semantics<parallel>, #tpu.dimension_semantics<parallel>], iteration_bounds = array<i64: 2, 1>, scalar_prefetch = 0 : i64, scratch_operands = 0 : i64, tpu.core_type = #tpu.core_type<tc>, window_params = [{transform_indices = @transform_0, window_bounds = array<i64: 1, 16, 32>}, {transform_indices = @transform_1, window_bounds = array<i64: 1, 16, 8, 32>}, {transform_indices = @transform_2, window_bounds = array<i64: 1, 16, 4>}]} {
    %c0 = arith.constant 0 : index
    %c0_0 = arith.constant 0 : index
    %c0_1 = arith.constant 0 : index
    %0 = vector.load %arg2[%c0, %c0_0, %c0_1] : memref<1x16x32xbf16, #tpu.memory_space<vmem>>, vector<1x16x32xbf16>
    %1 = vector.shape_cast %0 : vector<1x16x32xbf16> to vector<16x32xbf16>
    %2 = arith.extf %1 : vector<16x32xbf16> to vector<16x32xf32>
    %c0_2 = arith.constant 0 : index
    %c0_3 = arith.constant 0 : index
    %c0_4 = arith.constant 0 : index
    %c0_5 = arith.constant 0 : index
    %3 = vector.load %arg3[%c0_2, %c0_3, %c0_4, %c0_5] : memref<1x16x8x32xbf16, #tpu.memory_space<vmem>>, vector<1x16x8x32xbf16>
    %4 = vector.shape_cast %3 : vector<1x16x8x32xbf16> to vector<16x8x32xbf16>
    %5 = arith.extf %4 : vector<16x8x32xbf16> to vector<16x8x32xf32>
    %6 = vector.extract_strided_slice %2 {offsets = [0, 0], sizes = [16, 8], strides = [1, 1]} : vector<16x32xf32> to vector<16x8xf32>
    %7 = vector.extract_strided_slice %5 {offsets = [0, 0, 0], sizes = [16, 8, 8], strides = [1, 1, 1]} : vector<16x8x32xf32> to vector<16x8x8xf32>
    %8 = vector.shape_cast %6 : vector<16x8xf32> to vector<16x1x8xf32>
    %9 = vector.broadcast %8 : vector<16x1x8xf32> to vector<16x8x8xf32>
    %10 = arith.mulf %9, %7 : vector<16x8x8xf32>
    %cst = arith.constant dense<0.000000e+00> : vector<16x8xf32>
    %11 = vector.multi_reduction <add>, %10, %cst [2] : vector<16x8x8xf32> to vector<16x8xf32>
    %cst_6 = arith.constant dense<0xFF800000> : vector<16xf32>
    %12 = vector.multi_reduction <maximumf>, %11, %cst_6 [1] : vector<16x8xf32> to vector<16xf32>
    %13 = vector.shape_cast %12 : vector<16xf32> to vector<16x1xf32>
    %cst_7 = arith.constant dense<0.000000e+00> : vector<16xf32>
    %14 = vector.multi_reduction <add>, %11, %cst_7 [1] : vector<16x8xf32> to vector<16xf32>
    %15 = vector.shape_cast %14 : vector<16xf32> to vector<16x1xf32>
    %cst_8 = arith.constant 8.000000e+00 : f32
    %16 = vector.broadcast %cst_8 : f32 to vector<16x1xf32>
    %17 = arith.divf %15, %16 : vector<16x1xf32>
    %18 = arith.subf %13, %17 : vector<16x1xf32>
    %19 = vector.extract_strided_slice %2 {offsets = [0, 8], sizes = [16, 8], strides = [1, 1]} : vector<16x32xf32> to vector<16x8xf32>
    %20 = vector.extract_strided_slice %5 {offsets = [0, 0, 8], sizes = [16, 8, 8], strides = [1, 1, 1]} : vector<16x8x32xf32> to vector<16x8x8xf32>
    %21 = vector.shape_cast %19 : vector<16x8xf32> to vector<16x1x8xf32>
    %22 = vector.broadcast %21 : vector<16x1x8xf32> to vector<16x8x8xf32>
    %23 = arith.mulf %22, %20 : vector<16x8x8xf32>
    %cst_9 = arith.constant dense<0.000000e+00> : vector<16x8xf32>
    %24 = vector.multi_reduction <add>, %23, %cst_9 [2] : vector<16x8x8xf32> to vector<16x8xf32>
    %cst_10 = arith.constant dense<0xFF800000> : vector<16xf32>
    %25 = vector.multi_reduction <maximumf>, %24, %cst_10 [1] : vector<16x8xf32> to vector<16xf32>
    %26 = vector.shape_cast %25 : vector<16xf32> to vector<16x1xf32>
    %cst_11 = arith.constant dense<0.000000e+00> : vector<16xf32>
    %27 = vector.multi_reduction <add>, %24, %cst_11 [1] : vector<16x8xf32> to vector<16xf32>
    %28 = vector.shape_cast %27 : vector<16xf32> to vector<16x1xf32>
    %cst_12 = arith.constant 8.000000e+00 : f32
    %29 = vector.broadcast %cst_12 : f32 to vector<16x1xf32>
    %30 = arith.divf %28, %29 : vector<16x1xf32>
    %31 = arith.subf %26, %30 : vector<16x1xf32>
    %32 = vector.extract_strided_slice %2 {offsets = [0, 16], sizes = [16, 8], strides = [1, 1]} : vector<16x32xf32> to vector<16x8xf32>
    %33 = vector.extract_strided_slice %5 {offsets = [0, 0, 16], sizes = [16, 8, 8], strides = [1, 1, 1]} : vector<16x8x32xf32> to vector<16x8x8xf32>
    %34 = vector.shape_cast %32 : vector<16x8xf32> to vector<16x1x8xf32>
    %35 = vector.broadcast %34 : vector<16x1x8xf32> to vector<16x8x8xf32>
    %36 = arith.mulf %35, %33 : vector<16x8x8xf32>
    %cst_13 = arith.constant dense<0.000000e+00> : vector<16x8xf32>
    %37 = vector.multi_reduction <add>, %36, %cst_13 [2] : vector<16x8x8xf32> to vector<16x8xf32>
    %cst_14 = arith.constant dense<0xFF800000> : vector<16xf32>
    %38 = vector.multi_reduction <maximumf>, %37, %cst_14 [1] : vector<16x8xf32> to vector<16xf32>
    %39 = vector.shape_cast %38 : vector<16xf32> to vector<16x1xf32>
    %cst_15 = arith.constant dense<0.000000e+00> : vector<16xf32>
    %40 = vector.multi_reduction <add>, %37, %cst_15 [1] : vector<16x8xf32> to vector<16xf32>
    %41 = vector.shape_cast %40 : vector<16xf32> to vector<16x1xf32>
    %cst_16 = arith.constant 8.000000e+00 : f32
    %42 = vector.broadcast %cst_16 : f32 to vector<16x1xf32>
    %43 = arith.divf %41, %42 : vector<16x1xf32>
    %44 = arith.subf %39, %43 : vector<16x1xf32>
    %45 = vector.extract_strided_slice %2 {offsets = [0, 24], sizes = [16, 8], strides = [1, 1]} : vector<16x32xf32> to vector<16x8xf32>
    %46 = vector.extract_strided_slice %5 {offsets = [0, 0, 24], sizes = [16, 8, 8], strides = [1, 1, 1]} : vector<16x8x32xf32> to vector<16x8x8xf32>
    %47 = vector.shape_cast %45 : vector<16x8xf32> to vector<16x1x8xf32>
    %48 = vector.broadcast %47 : vector<16x1x8xf32> to vector<16x8x8xf32>
    %49 = arith.mulf %48, %46 : vector<16x8x8xf32>
    %cst_17 = arith.constant dense<0.000000e+00> : vector<16x8xf32>
    %50 = vector.multi_reduction <add>, %49, %cst_17 [2] : vector<16x8x8xf32> to vector<16x8xf32>
    %cst_18 = arith.constant dense<0xFF800000> : vector<16xf32>
    %51 = vector.multi_reduction <maximumf>, %50, %cst_18 [1] : vector<16x8xf32> to vector<16xf32>
    %52 = vector.shape_cast %51 : vector<16xf32> to vector<16x1xf32>
    %cst_19 = arith.constant dense<0.000000e+00> : vector<16xf32>
    %53 = vector.multi_reduction <add>, %50, %cst_19 [1] : vector<16x8xf32> to vector<16xf32>
    %54 = vector.shape_cast %53 : vector<16xf32> to vector<16x1xf32>
    %cst_20 = arith.constant 8.000000e+00 : f32
    %55 = vector.broadcast %cst_20 : f32 to vector<16x1xf32>
    %56 = arith.divf %54, %55 : vector<16x1xf32>
    %57 = arith.subf %52, %56 : vector<16x1xf32>
    %58 = tpu.concatenate %18, %31, %44, %57 in 1 : vector<16x1xf32>, vector<16x1xf32>, vector<16x1xf32>, vector<16x1xf32> -> vector<16x4xf32>
    %c0_21 = arith.constant 0 : index
    %c0_22 = arith.constant 0 : index
    %c0_23 = arith.constant 0 : index
    %59 = vector.load %arg4[%c0_21, %c0_22, %c0_23] : memref<1x16x4xf32, #tpu.memory_space<vmem>>, vector<1x16x4xf32>
    %60 = vector.shape_cast %59 : vector<1x16x4xf32> to vector<16x4xf32>
    %61 = vector.shape_cast %58 : vector<16x4xf32> to vector<1x16x4xf32>
    tpu.vector_store %arg4[%c0_21, %c0_22, %c0_23], %61 {strides = array<i32>} : memref<1x16x4xf32, #tpu.memory_space<vmem>>, vector<1x16x4xf32>,
    return
  }
  func.func @transform_0(%arg0: i32, %arg1: i32) -> (i32, i32, i32) {
    %c0_i32 = arith.constant 0 : i32
    %c0_i32_0 = arith.constant 0 : i32
    return %arg0, %arg1, %c0_i32 : i32, i32, i32
  }
  func.func @transform_1(%arg0: i32, %arg1: i32) -> (i32, i32, i32, i32) {
    %c0_i32 = arith.constant 0 : i32
    %c0_i32_0 = arith.constant 0 : i32
    %c0_i32_1 = arith.constant 0 : i32
    return %arg0, %arg1, %c0_i32, %c0_i32_0 : i32, i32, i32, i32
  }
  func.func @transform_2(%arg0: i32, %arg1: i32) -> (i32, i32, i32) {
    %c0_i32 = arith.constant 0 : i32
    %c0_i32_0 = arith.constant 0 : i32
    return %arg0, %arg1, %c0_i32 : i32, i32, i32
  }
}

module attributes {stable_mosaic.version = 11 : i64} {
  func.func @_fc_add_ln_kernel(%arg0: i32, %arg1: memref<32x32xbf16, #tpu.memory_space<vmem>>, %arg2: memref<32x32xbf16, #tpu.memory_space<vmem>>, %arg3: memref<32x32xf32, #tpu.memory_space<vmem>>, %arg4: memref<1x32xf32, #tpu.memory_space<vmem>>, %arg5: memref<1x32xf32, #tpu.memory_space<vmem>>, %arg6: memref<32x32xf32, #tpu.memory_space<vmem>>) attributes {dimension_semantics = [#tpu.dimension_semantics<parallel>], iteration_bounds = array<i64: 1>, scalar_prefetch = 0 : i64, scratch_operands = 0 : i64, tpu.core_type = #tpu.core_type<tc>, window_params = [{transform_indices = @transform_0, window_bounds = array<i64: 32, 32>}, {pipeline_mode = #tpu.pipeline_mode<synchronous>, transform_indices = @transform_1, window_bounds = array<i64: 32, 32>}, {transform_indices = @transform_2, window_bounds = array<i64: 32, 32>}, {pipeline_mode = #tpu.pipeline_mode<synchronous>, transform_indices = @transform_3, window_bounds = array<i64: 1, 32>}, {pipeline_mode = #tpu.pipeline_mode<synchronous>, transform_indices = @transform_4, window_bounds = array<i64: 1, 32>}, {transform_indices = @transform_5, window_bounds = array<i64: 32, 32>}]} {
    %c0 = arith.constant 0 : index
    %c0_0 = arith.constant 0 : index
    %0 = vector.load %arg1[%c0, %c0_0] : memref<32x32xbf16, #tpu.memory_space<vmem>>, vector<32x32xbf16>
    %c0_1 = arith.constant 0 : index
    %c0_2 = arith.constant 0 : index
    %1 = vector.load %arg2[%c0_1, %c0_2] : memref<32x32xbf16, #tpu.memory_space<vmem>>, vector<32x32xbf16>
    %cst = arith.constant dense<0.000000e+00> : vector<32x32xf32>
    %2 = tpu.matmul %0, %1, %cst {dimension_numbers = #tpu.dot_dimension_numbers<[1], [0], [0], [1], [0, 0, 1, 1], [], []>} : vector<32x32xbf16>, vector<32x32xbf16>, vector<32x32xf32> -> vector<32x32xf32>
    %c0_3 = arith.constant 0 : index
    %c0_4 = arith.constant 0 : index
    %3 = vector.load %arg3[%c0_3, %c0_4] : memref<32x32xf32, #tpu.memory_space<vmem>>, vector<32x32xf32>
    %4 = arith.addf %2, %3 : vector<32x32xf32>
    %cst_5 = arith.constant dense<0.000000e+00> : vector<32xf32>
    %5 = vector.multi_reduction <add>, %4, %cst_5 [1] : vector<32x32xf32> to vector<32xf32>
    %6 = vector.shape_cast %5 : vector<32xf32> to vector<32x1xf32>
    %cst_6 = arith.constant 3.200000e+01 : f32
    %7 = vector.broadcast %cst_6 : f32 to vector<32x1xf32>
    %8 = arith.divf %6, %7 : vector<32x1xf32>
    %9 = vector.broadcast %8 : vector<32x1xf32> to vector<32x32xf32>
    %10 = arith.subf %4, %9 : vector<32x32xf32>
    %11 = arith.mulf %10, %10 : vector<32x32xf32>
    %cst_7 = arith.constant dense<0.000000e+00> : vector<32xf32>
    %12 = vector.multi_reduction <add>, %11, %cst_7 [1] : vector<32x32xf32> to vector<32xf32>
    %13 = vector.shape_cast %12 : vector<32xf32> to vector<32x1xf32>
    %cst_8 = arith.constant 3.200000e+01 : f32
    %14 = vector.broadcast %cst_8 : f32 to vector<32x1xf32>
    %15 = arith.divf %13, %14 : vector<32x1xf32>
    %16 = vector.broadcast %8 : vector<32x1xf32> to vector<32x32xf32>
    %17 = arith.subf %4, %16 : vector<32x32xf32>
    %cst_9 = arith.constant 9.99999974E-6 : f32
    %18 = vector.broadcast %cst_9 : f32 to vector<32x1xf32>
    %19 = arith.addf %15, %18 : vector<32x1xf32>
    %20 = math.rsqrt %19 : vector<32x1xf32>
    %21 = vector.broadcast %20 : vector<32x1xf32> to vector<32x32xf32>
    %22 = arith.mulf %17, %21 : vector<32x32xf32>
    %c0_10 = arith.constant 0 : index
    %c0_11 = arith.constant 0 : index
    %23 = vector.load %arg4[%c0_10, %c0_11] : memref<1x32xf32, #tpu.memory_space<vmem>>, vector<1x32xf32>
    %24 = vector.broadcast %23 : vector<1x32xf32> to vector<32x32xf32>
    %25 = arith.mulf %22, %24 : vector<32x32xf32>
    %c0_12 = arith.constant 0 : index
    %c0_13 = arith.constant 0 : index
    %26 = vector.load %arg5[%c0_12, %c0_13] : memref<1x32xf32, #tpu.memory_space<vmem>>, vector<1x32xf32>
    %27 = vector.broadcast %26 : vector<1x32xf32> to vector<32x32xf32>
    %28 = arith.addf %25, %27 : vector<32x32xf32>
    %c0_14 = arith.constant 0 : index
    %c0_15 = arith.constant 0 : index
    %29 = vector.load %arg6[%c0_14, %c0_15] : memref<32x32xf32, #tpu.memory_space<vmem>>, vector<32x32xf32>
    tpu.vector_store %arg6[%c0_14, %c0_15], %28 {strides = array<i32>} : memref<32x32xf32, #tpu.memory_space<vmem>>, vector<32x32xf32>,
    return
  }
  func.func @transform_0(%arg0: i32) -> (i32, i32) {
    %c0_i32 = arith.constant 0 : i32
    %c0_i32_0 = arith.constant 0 : i32
    return %arg0, %c0_i32 : i32, i32
  }
  func.func @transform_1(%arg0: i32) -> (i32, i32) {
    %c0_i32 = arith.constant 0 : i32
    %c0_i32_0 = arith.constant 0 : i32
    %c0_i32_1 = arith.constant 0 : i32
    return %c0_i32, %c0_i32_0 : i32, i32
  }
  func.func @transform_2(%arg0: i32) -> (i32, i32) {
    %c0_i32 = arith.constant 0 : i32
    %c0_i32_0 = arith.constant 0 : i32
    return %arg0, %c0_i32 : i32, i32
  }
  func.func @transform_3(%arg0: i32) -> (i32, i32) {
    %c0_i32 = arith.constant 0 : i32
    %c0_i32_0 = arith.constant 0 : i32
    %c0_i32_1 = arith.constant 0 : i32
    return %c0_i32, %c0_i32_0 : i32, i32
  }
  func.func @transform_4(%arg0: i32) -> (i32, i32) {
    %c0_i32 = arith.constant 0 : i32
    %c0_i32_0 = arith.constant 0 : i32
    %c0_i32_1 = arith.constant 0 : i32
    return %c0_i32, %c0_i32_0 : i32, i32
  }
  func.func @transform_5(%arg0: i32) -> (i32, i32) {
    %c0_i32 = arith.constant 0 : i32
    %c0_i32_0 = arith.constant 0 : i32
    return %arg0, %c0_i32 : i32, i32
  }
}

module attributes {stable_mosaic.version = 11 : i64} {
  func.func @_attn_context_kernel(%arg0: i32, %arg1: memref<1x8x32xbf16, #tpu.memory_space<vmem>>, %arg2: memref<1x16x32xbf16, #tpu.memory_space<vmem>>, %arg3: memref<1x16x32xbf16, #tpu.memory_space<vmem>>, %arg4: memref<1x4x8xi32, #tpu.memory_space<vmem>>, %arg5: memref<1x16x32xbf16, #tpu.memory_space<vmem>>) attributes {dimension_semantics = [#tpu.dimension_semantics<parallel>], iteration_bounds = array<i64: 2>, scalar_prefetch = 0 : i64, scratch_operands = 0 : i64, tpu.core_type = #tpu.core_type<tc>, window_params = [{transform_indices = @transform_0, window_bounds = array<i64: 1, 8, 32>}, {transform_indices = @transform_1, window_bounds = array<i64: 1, 16, 32>}, {transform_indices = @transform_2, window_bounds = array<i64: 1, 16, 32>}, {transform_indices = @transform_3, window_bounds = array<i64: 1, 4, 8>}, {transform_indices = @transform_4, window_bounds = array<i64: 1, 16, 32>}]} {
    %c0 = arith.constant 0 : index
    %c0_0 = arith.constant 0 : index
    %c0_1 = arith.constant 0 : index
    %0 = vector.load %arg1[%c0, %c0_0, %c0_1] : memref<1x8x32xbf16, #tpu.memory_space<vmem>>, vector<1x8x32xbf16>
    %1 = vector.shape_cast %0 : vector<1x8x32xbf16> to vector<8x32xbf16>
    %c0_2 = arith.constant 0 : index
    %c0_3 = arith.constant 0 : index
    %c0_4 = arith.constant 0 : index
    %2 = vector.load %arg2[%c0_2, %c0_3, %c0_4] : memref<1x16x32xbf16, #tpu.memory_space<vmem>>, vector<1x16x32xbf16>
    %3 = vector.shape_cast %2 : vector<1x16x32xbf16> to vector<16x32xbf16>
    %c0_5 = arith.constant 0 : index
    %c0_6 = arith.constant 0 : index
    %c0_7 = arith.constant 0 : index
    %4 = vector.load %arg3[%c0_5, %c0_6, %c0_7] : memref<1x16x32xbf16, #tpu.memory_space<vmem>>, vector<1x16x32xbf16>
    %5 = vector.shape_cast %4 : vector<1x16x32xbf16> to vector<16x32xbf16>
    %c0_8 = arith.constant 0 : index
    %c0_9 = arith.constant 0 : index
    %c0_10 = arith.constant 0 : index
    %6 = vector.load %arg4[%c0_8, %c0_9, %c0_10] : memref<1x4x8xi32, #tpu.memory_space<vmem>>, vector<1x4x8xi32>
    %7 = vector.shape_cast %6 : vector<1x4x8xi32> to vector<4x8xi32>
    %8 = vector.extract_strided_slice %1 {offsets = [0, 0], sizes = [8, 8], strides = [1, 1]} : vector<8x32xbf16> to vector<8x8xbf16>
    %9 = vector.extract_strided_slice %3 {offsets = [0, 0], sizes = [16, 8], strides = [1, 1]} : vector<16x32xbf16> to vector<16x8xbf16>
    %10 = vector.extract_strided_slice %5 {offsets = [0, 0], sizes = [16, 8], strides = [1, 1]} : vector<16x32xbf16> to vector<16x8xbf16>
    %cst = arith.constant dense<0.000000e+00> : vector<8x16xf32>
    %11 = tpu.matmul %8, %9, %cst {dimension_numbers = #tpu.dot_dimension_numbers<[1], [1], [0], [0], [0, 0, 1, 0], [], []>} : vector<8x8xbf16>, vector<16x8xbf16>, vector<8x16xf32> -> vector<8x16xf32>
    %cst_11 = arith.constant 0.353553385 : f32
    %12 = vector.broadcast %cst_11 : f32 to vector<8x16xf32>
    %13 = arith.mulf %11, %12 : vector<8x16xf32>
    %cst_12 = arith.constant dense<0xFF800000> : vector<8xf32>
    %14 = vector.multi_reduction <maximumf>, %13, %cst_12 [1] : vector<8x16xf32> to vector<8xf32>
    %15 = vector.shape_cast %14 : vector<8xf32> to vector<8x1xf32>
    %16 = vector.broadcast %15 : vector<8x1xf32> to vector<8x16xf32>
    %17 = arith.subf %13, %16 : vector<8x16xf32>
    %18 = math.exp %17 : vector<8x16xf32>
    %cst_13 = arith.constant dense<0.000000e+00> : vector<8xf32>
    %19 = vector.multi_reduction <add>, %18, %cst_13 [1] : vector<8x16xf32> to vector<8xf32>
    %20 = vector.shape_cast %19 : vector<8xf32> to vector<8x1xf32>
    %21 = tpu.reciprocal %20 {approx = true} : vector<8x1xf32> -> vector<8x1xf32>
    %22 = vector.broadcast %21 : vector<8x1xf32> to vector<8x16xf32>
    %23 = arith.mulf %18, %22 : vector<8x16xf32>
    %24 = arith.truncf %23 : vector<8x16xf32> to vector<8x16xbf16>
    %cst_14 = arith.constant dense<0.000000e+00> : vector<8x8xf32>
    %25 = tpu.matmul %24, %10, %cst_14 {dimension_numbers = #tpu.dot_dimension_numbers<[1], [0], [0], [1], [0, 0, 1, 1], [], []>} : vector<8x16xbf16>, vector<16x8xbf16>, vector<8x8xf32> -> vector<8x8xf32>
    %26 = arith.extf %10 : vector<16x8xbf16> to vector<16x8xf32>
    %cst_15 = arith.constant dense<0.000000e+00> : vector<8xf32>
    %27 = vector.multi_reduction <add>, %26, %cst_15 [0] : vector<16x8xf32> to vector<8xf32>
    %28 = vector.shape_cast %27 : vector<8xf32> to vector<1x8xf32>
    %cst_16 = arith.constant 1.600000e+01 : f32
    %29 = vector.broadcast %cst_16 : f32 to vector<1x8xf32>
    %30 = arith.divf %28, %29 : vector<1x8xf32>
    %31 = vector.extract_strided_slice %7 {offsets = [0, 0], sizes = [1, 8], strides = [1, 1]} : vector<4x8xi32> to vector<1x8xi32>
    %32 = tpu.iota {dimensions = array<i32: 0>} : vector<16x8xi32>
    %33 = vector.broadcast %31 : vector<1x8xi32> to vector<16x8xi32>
    %34 = arith.cmpi eq, %32, %33 : vector<16x8xi32>
    %35 = arith.extui %34 : vector<16x8xi1> to vector<16x8xi32>
    %36 = arith.sitofp %35 : vector<16x8xi32> to vector<16x8xf32>
    %37 = vector.broadcast %30 : vector<1x8xf32> to vector<8x8xf32>
    %38 = arith.subf %25, %37 : vector<8x8xf32>
    %cst_17 = arith.constant dense<0.000000e+00> : vector<16x8xf32>
    %39 = tpu.matmul %36, %38, %cst_17 {dimension_numbers = #tpu.dot_dimension_numbers<[1], [0], [0], [1], [0, 0, 1, 1], [], []>} : vector<16x8xf32>, vector<8x8xf32>, vector<16x8xf32> -> vector<16x8xf32>
    %40 = vector.broadcast %30 : vector<1x8xf32> to vector<16x8xf32>
    %41 = arith.addf %40, %39 : vector<16x8xf32>
    %42 = vector.extract_strided_slice %1 {offsets = [0, 8], sizes = [8, 8], strides = [1, 1]} : vector<8x32xbf16> to vector<8x8xbf16>
    %43 = vector.extract_strided_slice %3 {offsets = [0, 8], sizes = [16, 8], strides = [1, 1]} : vector<16x32xbf16> to vector<16x8xbf16>
    %44 = vector.extract_strided_slice %5 {offsets = [0, 8], sizes = [16, 8], strides = [1, 1]} : vector<16x32xbf16> to vector<16x8xbf16>
    %cst_18 = arith.constant dense<0.000000e+00> : vector<8x16xf32>
    %45 = tpu.matmul %42, %43, %cst_18 {dimension_numbers = #tpu.dot_dimension_numbers<[1], [1], [0], [0], [0, 0, 1, 0], [], []>} : vector<8x8xbf16>, vector<16x8xbf16>, vector<8x16xf32> -> vector<8x16xf32>
    %cst_19 = arith.constant 0.353553385 : f32
    %46 = vector.broadcast %cst_19 : f32 to vector<8x16xf32>
    %47 = arith.mulf %45, %46 : vector<8x16xf32>
    %cst_20 = arith.constant dense<0xFF800000> : vector<8xf32>
    %48 = vector.multi_reduction <maximumf>, %47, %cst_20 [1] : vector<8x16xf32> to vector<8xf32>
    %49 = vector.shape_cast %48 : vector<8xf32> to vector<8x1xf32>
    %50 = vector.broadcast %49 : vector<8x1xf32> to vector<8x16xf32>
    %51 = arith.subf %47, %50 : vector<8x16xf32>
    %52 = math.exp %51 : vector<8x16xf32>
    %cst_21 = arith.constant dense<0.000000e+00> : vector<8xf32>
    %53 = vector.multi_reduction <add>, %52, %cst_21 [1] : vector<8x16xf32> to vector<8xf32>
    %54 = vector.shape_cast %53 : vector<8xf32> to vector<8x1xf32>
    %55 = tpu.reciprocal %54 {approx = true} : vector<8x1xf32> -> vector<8x1xf32>
    %56 = vector.broadcast %55 : vector<8x1xf32> to vector<8x16xf32>
    %57 = arith.mulf %52, %56 : vector<8x16xf32>
    %58 = arith.truncf %57 : vector<8x16xf32> to vector<8x16xbf16>
    %cst_22 = arith.constant dense<0.000000e+00> : vector<8x8xf32>
    %59 = tpu.matmul %58, %44, %cst_22 {dimension_numbers = #tpu.dot_dimension_numbers<[1], [0], [0], [1], [0, 0, 1, 1], [], []>} : vector<8x16xbf16>, vector<16x8xbf16>, vector<8x8xf32> -> vector<8x8xf32>
    %60 = arith.extf %44 : vector<16x8xbf16> to vector<16x8xf32>
    %cst_23 = arith.constant dense<0.000000e+00> : vector<8xf32>
    %61 = vector.multi_reduction <add>, %60, %cst_23 [0] : vector<16x8xf32> to vector<8xf32>
    %62 = vector.shape_cast %61 : vector<8xf32> to vector<1x8xf32>
    %cst_24 = arith.constant 1.600000e+01 : f32
    %63 = vector.broadcast %cst_24 : f32 to vector<1x8xf32>
    %64 = arith.divf %62, %63 : vector<1x8xf32>
    %65 = vector.extract_strided_slice %7 {offsets = [1, 0], sizes = [1, 8], strides = [1, 1]} : vector<4x8xi32> to vector<1x8xi32>
    %66 = tpu.iota {dimensions = array<i32: 0>} : vector<16x8xi32>
    %67 = vector.broadcast %65 : vector<1x8xi32> to vector<16x8xi32>
    %68 = arith.cmpi eq, %66, %67 : vector<16x8xi32>
    %69 = arith.extui %68 : vector<16x8xi1> to vector<16x8xi32>
    %70 = arith.sitofp %69 : vector<16x8xi32> to vector<16x8xf32>
    %71 = vector.broadcast %64 : vector<1x8xf32> to vector<8x8xf32>
    %72 = arith.subf %59, %71 : vector<8x8xf32>
    %cst_25 = arith.constant dense<0.000000e+00> : vector<16x8xf32>
    %73 = tpu.matmul %70, %72, %cst_25 {dimension_numbers = #tpu.dot_dimension_numbers<[1], [0], [0], [1], [0, 0, 1, 1], [], []>} : vector<16x8xf32>, vector<8x8xf32>, vector<16x8xf32> -> vector<16x8xf32>
    %74 = vector.broadcast %64 : vector<1x8xf32> to vector<16x8xf32>
    %75 = arith.addf %74, %73 : vector<16x8xf32>
    %76 = vector.extract_strided_slice %1 {offsets = [0, 16], sizes = [8, 8], strides = [1, 1]} : vector<8x32xbf16> to vector<8x8xbf16>
    %77 = vector.extract_strided_slice %3 {offsets = [0, 16], sizes = [16, 8], strides = [1, 1]} : vector<16x32xbf16> to vector<16x8xbf16>
    %78 = vector.extract_strided_slice %5 {offsets = [0, 16], sizes = [16, 8], strides = [1, 1]} : vector<16x32xbf16> to vector<16x8xbf16>
    %cst_26 = arith.constant dense<0.000000e+00> : vector<8x16xf32>
    %79 = tpu.matmul %76, %77, %cst_26 {dimension_numbers = #tpu.dot_dimension_numbers<[1], [1], [0], [0], [0, 0, 1, 0], [], []>} : vector<8x8xbf16>, vector<16x8xbf16>, vector<8x16xf32> -> vector<8x16xf32>
    %cst_27 = arith.constant 0.353553385 : f32
    %80 = vector.broadcast %cst_27 : f32 to vector<8x16xf32>
    %81 = arith.mulf %79, %80 : vector<8x16xf32>
    %cst_28 = arith.constant dense<0xFF800000> : vector<8xf32>
    %82 = vector.multi_reduction <maximumf>, %81, %cst_28 [1] : vector<8x16xf32> to vector<8xf32>
    %83 = vector.shape_cast %82 : vector<8xf32> to vector<8x1xf32>
    %84 = vector.broadcast %83 : vector<8x1xf32> to vector<8x16xf32>
    %85 = arith.subf %81, %84 : vector<8x16xf32>
    %86 = math.exp %85 : vector<8x16xf32>
    %cst_29 = arith.constant dense<0.000000e+00> : vector<8xf32>
    %87 = vector.multi_reduction <add>, %86, %cst_29 [1] : vector<8x16xf32> to vector<8xf32>
    %88 = vector.shape_cast %87 : vector<8xf32> to vector<8x1xf32>
    %89 = tpu.reciprocal %88 {approx = true} : vector<8x1xf32> -> vector<8x1xf32>
    %90 = vector.broadcast %89 : vector<8x1xf32> to vector<8x16xf32>
    %91 = arith.mulf %86, %90 : vector<8x16xf32>
    %92 = arith.truncf %91 : vector<8x16xf32> to vector<8x16xbf16>
    %cst_30 = arith.constant dense<0.000000e+00> : vector<8x8xf32>
    %93 = tpu.matmul %92, %78, %cst_30 {dimension_numbers = #tpu.dot_dimension_numbers<[1], [0], [0], [1], [0, 0, 1, 1], [], []>} : vector<8x16xbf16>, vector<16x8xbf16>, vector<8x8xf32> -> vector<8x8xf32>
    %94 = arith.extf %78 : vector<16x8xbf16> to vector<16x8xf32>
    %cst_31 = arith.constant dense<0.000000e+00> : vector<8xf32>
    %95 = vector.multi_reduction <add>, %94, %cst_31 [0] : vector<16x8xf32> to vector<8xf32>
    %96 = vector.shape_cast %95 : vector<8xf32> to vector<1x8xf32>
    %cst_32 = arith.constant 1.600000e+01 : f32
    %97 = vector.broadcast %cst_32 : f32 to vector<1x8xf32>
    %98 = arith.divf %96, %97 : vector<1x8xf32>
    %99 = vector.extract_strided_slice %7 {offsets = [2, 0], sizes = [1, 8], strides = [1, 1]} : vector<4x8xi32> to vector<1x8xi32>
    %100 = tpu.iota {dimensions = array<i32: 0>} : vector<16x8xi32>
    %101 = vector.broadcast %99 : vector<1x8xi32> to vector<16x8xi32>
    %102 = arith.cmpi eq, %100, %101 : vector<16x8xi32>
    %103 = arith.extui %102 : vector<16x8xi1> to vector<16x8xi32>
    %104 = arith.sitofp %103 : vector<16x8xi32> to vector<16x8xf32>
    %105 = vector.broadcast %98 : vector<1x8xf32> to vector<8x8xf32>
    %106 = arith.subf %93, %105 : vector<8x8xf32>
    %cst_33 = arith.constant dense<0.000000e+00> : vector<16x8xf32>
    %107 = tpu.matmul %104, %106, %cst_33 {dimension_numbers = #tpu.dot_dimension_numbers<[1], [0], [0], [1], [0, 0, 1, 1], [], []>} : vector<16x8xf32>, vector<8x8xf32>, vector<16x8xf32> -> vector<16x8xf32>
    %108 = vector.broadcast %98 : vector<1x8xf32> to vector<16x8xf32>
    %109 = arith.addf %108, %107 : vector<16x8xf32>
    %110 = vector.extract_strided_slice %1 {offsets = [0, 24], sizes = [8, 8], strides = [1, 1]} : vector<8x32xbf16> to vector<8x8xbf16>
    %111 = vector.extract_strided_slice %3 {offsets = [0, 24], sizes = [16, 8], strides = [1, 1]} : vector<16x32xbf16> to vector<16x8xbf16>
    %112 = vector.extract_strided_slice %5 {offsets = [0, 24], sizes = [16, 8], strides = [1, 1]} : vector<16x32xbf16> to vector<16x8xbf16>
    %cst_34 = arith.constant dense<0.000000e+00> : vector<8x16xf32>
    %113 = tpu.matmul %110, %111, %cst_34 {dimension_numbers = #tpu.dot_dimension_numbers<[1], [1], [0], [0], [0, 0, 1, 0], [], []>} : vector<8x8xbf16>, vector<16x8xbf16>, vector<8x16xf32> -> vector<8x16xf32>
    %cst_35 = arith.constant 0.353553385 : f32
    %114 = vector.broadcast %cst_35 : f32 to vector<8x16xf32>
    %115 = arith.mulf %113, %114 : vector<8x16xf32>
    %cst_36 = arith.constant dense<0xFF800000> : vector<8xf32>
    %116 = vector.multi_reduction <maximumf>, %115, %cst_36 [1] : vector<8x16xf32> to vector<8xf32>
    %117 = vector.shape_cast %116 : vector<8xf32> to vector<8x1xf32>
    %118 = vector.broadcast %117 : vector<8x1xf32> to vector<8x16xf32>
    %119 = arith.subf %115, %118 : vector<8x16xf32>
    %120 = math.exp %119 : vector<8x16xf32>
    %cst_37 = arith.constant dense<0.000000e+00> : vector<8xf32>
    %121 = vector.multi_reduction <add>, %120, %cst_37 [1] : vector<8x16xf32> to vector<8xf32>
    %122 = vector.shape_cast %121 : vector<8xf32> to vector<8x1xf32>
    %123 = tpu.reciprocal %122 {approx = true} : vector<8x1xf32> -> vector<8x1xf32>
    %124 = vector.broadcast %123 : vector<8x1xf32> to vector<8x16xf32>
    %125 = arith.mulf %120, %124 : vector<8x16xf32>
    %126 = arith.truncf %125 : vector<8x16xf32> to vector<8x16xbf16>
    %cst_38 = arith.constant dense<0.000000e+00> : vector<8x8xf32>
    %127 = tpu.matmul %126, %112, %cst_38 {dimension_numbers = #tpu.dot_dimension_numbers<[1], [0], [0], [1], [0, 0, 1, 1], [], []>} : vector<8x16xbf16>, vector<16x8xbf16>, vector<8x8xf32> -> vector<8x8xf32>
    %128 = arith.extf %112 : vector<16x8xbf16> to vector<16x8xf32>
    %cst_39 = arith.constant dense<0.000000e+00> : vector<8xf32>
    %129 = vector.multi_reduction <add>, %128, %cst_39 [0] : vector<16x8xf32> to vector<8xf32>
    %130 = vector.shape_cast %129 : vector<8xf32> to vector<1x8xf32>
    %cst_40 = arith.constant 1.600000e+01 : f32
    %131 = vector.broadcast %cst_40 : f32 to vector<1x8xf32>
    %132 = arith.divf %130, %131 : vector<1x8xf32>
    %133 = vector.extract_strided_slice %7 {offsets = [3, 0], sizes = [1, 8], strides = [1, 1]} : vector<4x8xi32> to vector<1x8xi32>
    %134 = tpu.iota {dimensions = array<i32: 0>} : vector<16x8xi32>
    %135 = vector.broadcast %133 : vector<1x8xi32> to vector<16x8xi32>
    %136 = arith.cmpi eq, %134, %135 : vector<16x8xi32>
    %137 = arith.extui %136 : vector<16x8xi1> to vector<16x8xi32>
    %138 = arith.sitofp %137 : vector<16x8xi32> to vector<16x8xf32>
    %139 = vector.broadcast %132 : vector<1x8xf32> to vector<8x8xf32>
    %140 = arith.subf %127, %139 : vector<8x8xf32>
    %cst_41 = arith.constant dense<0.000000e+00> : vector<16x8xf32>
    %141 = tpu.matmul %138, %140, %cst_41 {dimension_numbers = #tpu.dot_dimension_numbers<[1], [0], [0], [1], [0, 0, 1, 1], [], []>} : vector<16x8xf32>, vector<8x8xf32>, vector<16x8xf32> -> vector<16x8xf32>
    %142 = vector.broadcast %132 : vector<1x8xf32> to vector<16x8xf32>
    %143 = arith.addf %142, %141 : vector<16x8xf32>
    %144 = tpu.concatenate %41, %75, %109, %143 in 1 : vector<16x8xf32>, vector<16x8xf32>, vector<16x8xf32>, vector<16x8xf32> -> vector<16x32xf32>
    %145 = arith.truncf %144 : vector<16x32xf32> to vector<16x32xbf16>
    %c0_42 = arith.constant 0 : index
    %c0_43 = arith.constant 0 : index
    %c0_44 = arith.constant 0 : index
    %146 = vector.load %arg5[%c0_42, %c0_43, %c0_44] : memref<1x16x32xbf16, #tpu.memory_space<vmem>>, vector<1x16x32xbf16>
    %147 = vector.shape_cast %146 : vector<1x16x32xbf16> to vector<16x32xbf16>
    %148 = vector.shape_cast %145 : vector<16x32xbf16> to vector<1x16x32xbf16>
    tpu.vector_store %arg5[%c0_42, %c0_43, %c0_44], %148 {strides = array<i32>} : memref<1x16x32xbf16, #tpu.memory_space<vmem>>, vector<1x16x32xbf16>,
    return
  }
  func.func @transform_0(%arg0: i32) -> (i32, i32, i32) {
    %c0_i32 = arith.constant 0 : i32
    %c0_i32_0 = arith.constant 0 : i32
    %c0_i32_1 = arith.constant 0 : i32
    return %arg0, %c0_i32, %c0_i32_0 : i32, i32, i32
  }
  func.func @transform_1(%arg0: i32) -> (i32, i32, i32) {
    %c0_i32 = arith.constant 0 : i32
    %c0_i32_0 = arith.constant 0 : i32
    %c0_i32_1 = arith.constant 0 : i32
    return %arg0, %c0_i32, %c0_i32_0 : i32, i32, i32
  }
  func.func @transform_2(%arg0: i32) -> (i32, i32, i32) {
    %c0_i32 = arith.constant 0 : i32
    %c0_i32_0 = arith.constant 0 : i32
    %c0_i32_1 = arith.constant 0 : i32
    return %arg0, %c0_i32, %c0_i32_0 : i32, i32, i32
  }
  func.func @transform_3(%arg0: i32) -> (i32, i32, i32) {
    %c0_i32 = arith.constant 0 : i32
    %c0_i32_0 = arith.constant 0 : i32
    %c0_i32_1 = arith.constant 0 : i32
    return %arg0, %c0_i32, %c0_i32_0 : i32, i32, i32
  }
  func.func @transform_4(%arg0: i32) -> (i32, i32, i32) {
    %c0_i32 = arith.constant 0 : i32
    %c0_i32_0 = arith.constant 0 : i32
    %c0_i32_1 = arith.constant 0 : i32
    return %arg0, %c0_i32, %c0_i32_0 : i32, i32, i32
  }
}

</mosaic_0001>

<llo_original>
// kernel: prob_attention_forward.7
$region0: #{prob_attention_forward.7}
  #allocation0 [shape = 'u32[]', space=smem, size = 0x4, offset = 0x4, fixed_abs, tag = 'smem constant byte address 0x4 - core index']
  #allocation1 [shape = 'u32[144,128]{1,0:T(1,128)}', space=vmem, size = 0x12000, scoped, tag = 'internal scratch']
  %s0 = inlined_call_operand.vmem [shape: bf16[32,32], index: 0, kind: input, shape index: {}]
  %s1 = inlined_call_operand.vmem [shape: bf16[32,32], index: 1, kind: input, shape index: {}]
  %s2 = inlined_call_operand.vmem [shape: bf16[32,32], index: 2, kind: output, shape index: {}]
  %s3 = sld [smem:[#allocation0]]
  $region18: #{prob_attention_forward.7} parent=0
    _
  %s5 = ssub.s32 1, %s3
  %s6 = scalar_select 0, %s5, %s3
  // Predicated region
  $region2: #{prob_attention_forward.7} parent=0 // pred_check
    _
  $region3: #{prob_attention_forward.7} parent=0 // pred_check_branch
    %8 = sbr.rel (0) target = $region5
  $region4: #{prob_attention_forward.7} parent=0 // pred_region
    _
  $region5: #{prob_attention_forward.7} parent=0 // pred_fallthru
    _
  // Predicated region
  $region6: #{prob_attention_forward.7} parent=0 // pred_check
    _
  $region7: #{prob_attention_forward.7} parent=0 // pred_check_branch
    %10 = sbr.rel (0) target = $region9
  $region8: #{prob_attention_forward.7} parent=0 // pred_region
    _
  $region9: #{prob_attention_forward.7} parent=0 // pred_fallthru
    _
  %v12 = vld [vmem:[%s0] sm:$0xf]
  %v13 = vld [vmem:[%s0 + $0x4] sm:$0xf]
  %v14 = vld [vmem:[%s0 + $0x8] sm:$0xf]
  %v15 = vld [vmem:[%s0 + $0xc] sm:$0xf]
  %v16 = vld [vmem:[%s1] sm:$0xf]
  %v17 = vld [vmem:[%s1 + $0x4] sm:$0xf]
  %v18 = vld [vmem:[%s1 + $0x8] sm:$0xf]
  %v19 = vld [vmem:[%s1 + $0xc] sm:$0xf]
  %v24 = vunpack.c.l.b16 %v12
  %v25 = vunpack.c.l.b16 %v13
  %v26 = vunpack.c.l.b16 %v14
  %v27 = vunpack.c.l.b16 %v15
  %v28 = vpack.c.b16 %v25, %v24
  %v29 = vpack.c.b16 %v27, %v26
  %v34 = vunpack.c.l.b16 %v16
  %v35 = vunpack.c.l.b16 %v17
  %v36 = vunpack.c.l.b16 %v18
  %v37 = vunpack.c.l.b16 %v19
  %v38 = vpack.c.b16 %v35, %v34
  %v39 = vpack.c.b16 %v37, %v36
  %vm42 = vcmask 261120
  %v44 = vsel %vm42, %v28, 0
  %v47 = vsel %vm42, %v29, 0
  %49 = vmatprep.subr.bf16.mxu0 0
  %50 = vmatpush1.bf16.msra.mxu0 0
  %51 = vmatprep.subr.bf16.mxu0 0
  %52 = vmatpush1.bf16.msra.mxu0 0
  %53 = vmatprep.subr.bf16.mxu0 0
  %54 = vmatpush1.bf16.msra.mxu0 0
  %55 = vmatprep.subr.bf16.mxu0 0
  %56 = vmatpush1.bf16.msra.mxu0 0
  %57 = vmatprep.subr.bf16.mxu0 0
  %58 = vmatpush1.bf16.msra.mxu0 0
  %59 = vmatprep.subr.bf16.mxu0 0
  %60 = vmatpush1.bf16.msra.mxu0 0
  %61 = vmatprep.subr.bf16.mxu0 0
  %62 = vmatpush1.bf16.msra.mxu0 %v39
  %63 = vmatprep.subr.bf16.mxu0 0
  %64 = vmatpush1.bf16.msra.mxu0 %v38
  %65 = vmatprep.subr.bf16.mxu0 0
  %66 = vmatpush2.bf16.msra.mxu0 0
  %67 = vmatprep.subr.bf16.mxu0 0
  %68 = vmatpush2.bf16.msra.mxu0 0
  %69 = vmatprep.subr.bf16.mxu0 0
  %70 = vmatpush2.bf16.msra.mxu0 0
  %71 = vmatprep.subr.bf16.mxu0 0
  %72 = vmatpush2.bf16.msra.mxu0 0
  %73 = vmatprep.subr.bf16.mxu0 0
  %74 = vmatpush2.bf16.msra.mxu0 0
  %75 = vmatprep.subr.bf16.mxu0 0
  %76 = vmatpush2.bf16.msra.mxu0 0
  %77 = vmatprep.subr.bf16.mxu0 0
  %78 = vmatpush2.bf16.msra.mxu0 0
  %79 = vmatprep.subr.bf16.mxu0 0
  %80 = vmatpush2.bf16.msra.mxu0 0
  %81 = vmatprep.mubr.bf16.mxu0 0
  %82 = vmatmul.mubr.bf16.gmra.mxu0 %v44
  %v83 = vpop.f32.mrf.mxu0
  %v84 = vadd.f32 0.0, %v83
  %v85 = vpop.f32.mrf.mxu0
  %v86 = vpop.f32.mrf.mxu0
  %v87 = vadd.f32 0.0, %v86
  %v88 = vpop.f32.mrf.mxu0
  %89 = vmatprep.mubr.bf16.mxu0 0
  %90 = vmatmul.mubr.bf16.gmra.mxu0 %v47
  %v91 = vpop.f32.mrf.mxu0
  %v92 = vadd.f32 0.0, %v91
  %v93 = vpop.f32.mrf.mxu0
  %v94 = vpop.f32.mrf.mxu0
  %v95 = vadd.f32 0.0, %v94
  %v96 = vpop.f32.mrf.mxu0
  %97 = vdwg.mxu0
  %v98 = vpack.c.bf16 %v87, %v84
  %v99 = vpack.c.bf16 %v95, %v92
  %v102 = vunpack.c.l.b16 %v98
  %v103 = vunpack.c.h.b16 %v98
  %v104 = vunpack.c.l.b16 %v99
  %v105 = vunpack.c.h.b16 %v99
  %v106 = vpack.c.b16 %v102, %v102
  %v107 = vpack.c.b16 %v103, %v103
  %v108 = vpack.c.b16 %v104, %v104
  %v109 = vpack.c.b16 %v105, %v105
  %vm114 = vcmask 257024
  %115 = vst.msk [vmem:[%s2] sm:$0xf] %vm114, %v106
  %116 = vst.msk [vmem:[%s2 + $0x4] sm:$0xf] %vm114, %v107
  %117 = vst.msk [vmem:[%s2 + $0x8] sm:$0xf] %vm114, %v108
  %118 = vst.msk [vmem:[%s2 + $0xc] sm:$0xf] %vm114, %v109
  // Predicated region
  $region10: #{prob_attention_forward.7} parent=0 // pred_check
    _
  $region11: #{prob_attention_forward.7} parent=0 // pred_check_branch
    %120 = sbr.rel (0) target = $region13
  $region12: #{prob_attention_forward.7} parent=0 // pred_region
    _
  $region13: #{prob_attention_forward.7} parent=0 // pred_fallthru
    _
  // Predicated region
  $region14: #{prob_attention_forward.7} parent=0 // pred_check
    _
  $region15: #{prob_attention_forward.7} parent=0 // pred_check_branch
    %122 = sbr.rel (0) target = $region17
  $region16: #{prob_attention_forward.7} parent=0 // pred_region
    _
  $region17: #{prob_attention_forward.7} parent=0 // pred_fallthru
    _

// kernel: prob_attention_forward.8
$region0: #{prob_attention_forward.8}
  #allocation0 [shape = 'u32[]', space=smem, size = 0x4, offset = 0x4, fixed_abs, tag = 'smem constant byte address 0x4 - core index']
  #allocation1 [shape = 'u32[144,128]{1,0:T(1,128)}', space=vmem, size = 0x12000, scoped, tag = 'internal scratch']
  %s0 = inlined_call_operand.vmem [shape: bf16[2,16,32], index: 0, kind: input, shape index: {}]
  %s1 = inlined_call_operand.vmem [shape: bf16[2,16,8,32], index: 1, kind: input, shape index: {}]
  %s2 = inlined_call_operand.vmem [shape: f32[2,16,4], index: 2, kind: output, shape index: {}]
  %s3 = sld [smem:[#allocation0]]
  $region41: #{prob_attention_forward.8} parent=0
    _
  %s5 = ssub.s32 1, %s3
  %s6 = scalar_select 0, %s5, %s3
  loop: start=0, step=1, limit=4
  $region2: #{prob_attention_forward.8} parent=0 // loop_pre_header
    _
  $region3: #{prob_attention_forward.8} parent=0 // loop_header
    %s8 = sphi 0, %s12
    %p9 = scmp.ge.s32.totalorder %s8, 4
    %s15 = sphi 0, %s27
    %s16 = sphi 0, %s23
    %s17 = sphi 0, %s15
    %s18 = sphi 0, %s16
    %s19 = sphi 0, %s17
    %s20 = sphi 0, %s18
    %s32 = sphi 0, %s34
    %s35 = sphi 0, %s32
    %s36 = sphi 0, %s35
    %s52 = sphi 0, %s36
    %s60 = sphi 0, %s62
    %s63 = sphi 0, %s60
    %s64 = sphi 0, %s63
    %s80 = sphi 0, %s64
    %s88 = sphi 0, %s90
    %s91 = sphi 0, %s88
    %s92 = sphi 0, %s91
    %s108 = sphi 0, %s92
  $region4: #{prob_attention_forward.8} parent=0 // loop_header_branch
    %11 = sbr.rel (%p9) target = $region8
  $region5: #{prob_attention_forward.8} parent=0 // loop_body
    %s13 = ssub.s32 %s8, 1
    %s14 = ssub.s32 %s8, 2
    %s21 = sadd.s32 1, %s16
    %p22 = scmp.ge.s32.totalorder %s21, 1
    %s23 = scalar_select %p22, 0, %s21
    %s24 = sadd.s32 1, %s15
    %s25 = scalar_select %p22, %s24, %s15
    %p26 = scmp.ge.s32.totalorder %s25, 2
    %s27 = scalar_select %p26, 0, %s25
    %s28 = ssub.s32 %s15, %s27
    %s29 = ssub.s32 %s16, %s23
    %s30 = sor.u32 %s28, %s29
    %p31 = scmp.eq.s32.totalorder %s30, 0
    %s33 = sadd.s32 %s32, 1
    %s34 = scalar_select %p31, %s32, %s33
    %p37 = pneg %p31
    %p38 = scmp.eq.s32.totalorder %s8, 1
    %p39 = por %p37, %p38
    %p40 = scmp.ne.s32.totalorder %s32, %s35
    %p41 = scmp.eq.s32.totalorder %s8, 0
    %p42 = por %p40, %p41
    %p43 = scmp.ne.s32.totalorder %s32, %s35
    %p44 = scmp.eq.s32.totalorder %s13, 1
    %p45 = por %p43, %p44
    %p46 = scmp.ne.s32.totalorder %s35, %s36
    %p47 = scmp.eq.s32.totalorder %s13, 0
    %p48 = por %p46, %p47
    %p49 = scmp.ne.s32.totalorder %s35, %s36
    %p50 = scmp.eq.s32.totalorder %s14, 1
    %p51 = por %p49, %p50
    %p53 = scmp.ne.s32.totalorder %s36, %s52
    %p54 = scmp.eq.s32.totalorder %s14, 0
    %p55 = por %p53, %p54
    %s56 = ssub.s32 %s15, %s27
    %s57 = ssub.s32 %s16, %s23
    %s58 = sor.u32 %s56, %s57
    %p59 = scmp.eq.s32.totalorder %s58, 0
    %s61 = sadd.s32 %s60, 1
    %s62 = scalar_select %p59, %s60, %s61
    %p65 = pneg %p59
    %p66 = scmp.eq.s32.totalorder %s8, 1
    %p67 = por %p65, %p66
    %p68 = scmp.ne.s32.totalorder %s60, %s63
    %p69 = scmp.eq.s32.totalorder %s8, 0
    %p70 = por %p68, %p69
    %p71 = scmp.ne.s32.totalorder %s60, %s63
    %p72 = scmp.eq.s32.totalorder %s13, 1
    %p73 = por %p71, %p72
    %p74 = scmp.ne.s32.totalorder %s63, %s64
    %p75 = scmp.eq.s32.totalorder %s13, 0
    %p76 = por %p74, %p75
    %p77 = scmp.ne.s32.totalorder %s63, %s64
    %p78 = scmp.eq.s32.totalorder %s14, 1
    %p79 = por %p77, %p78
    %p81 = scmp.ne.s32.totalorder %s64, %s80
    %p82 = scmp.eq.s32.totalorder %s14, 0
    %p83 = por %p81, %p82
    %s84 = ssub.s32 %s15, %s27
    %s85 = ssub.s32 %s16, %s23
    %s86 = sor.u32 %s84, %s85
    %p87 = scmp.eq.s32.totalorder %s86, 0
    %s89 = sadd.s32 %s88, 1
    %s90 = scalar_select %p87, %s88, %s89
    %p93 = pneg %p87
    %p94 = scmp.eq.s32.totalorder %s8, 1
    %p95 = por %p93, %p94
    %p96 = scmp.ne.s32.totalorder %s88, %s91
    %p97 = scmp.eq.s32.totalorder %s8, 0
    %p98 = por %p96, %p97
    %p99 = scmp.ne.s32.totalorder %s88, %s91
    %p100 = scmp.eq.s32.totalorder %s13, 1
    %p101 = por %p99, %p100
    %p102 = scmp.ne.s32.totalorder %s91, %s92
    %p103 = scmp.eq.s32.totalorder %s13, 0
    %p104 = por %p102, %p103
    %p105 = scmp.ne.s32.totalorder %s91, %s92
    %p106 = scmp.eq.s32.totalorder %s14, 1
    %p107 = por %p105, %p106
    %p109 = scmp.ne.s32.totalorder %s92, %s108
    %p110 = scmp.eq.s32.totalorder %s14, 0
    %p111 = por %p109, %p110
    %p112 = scmp.le.s32.totalorder 1, %s8
    %p113 = scmp.lt.s32.totalorder %s8, 3
    %p114 = pnand %p112, %p113
    %p115 = pneg %p114
    // Predicated region
    $region9: #{prob_attention_forward.8} parent=5 // pred_check
      _
    $region10: #{prob_attention_forward.8} parent=5 // pred_check_branch
      %117 = sbr.rel (%p114) target = $region12
    $region11: #{prob_attention_forward.8} parent=5 // pred_region
      %s118 = ssub.s32 %s8, 1
    $region12: #{prob_attention_forward.8} parent=5 // pred_fallthru
      _
    %p119 = scmp.lt.s32.totalorder %s8, 2
    // Predicated region
    $region13: #{prob_attention_forward.8} parent=5 // pred_check
      %p120 = pneg %p119
    $region14: #{prob_attention_forward.8} parent=5 // pred_check_branch
      %122 = sbr.rel (%p120) target = $region16
    $region15: #{prob_attention_forward.8} parent=5 // pred_region
      // Predicated region
      $region17: #{prob_attention_forward.8} parent=15 // pred_check
        %p123 = pneg %p42
      $region18: #{prob_attention_forward.8} parent=15 // pred_check_branch
        %125 = sbr.rel (%p123) target = $region20
      $region19: #{prob_attention_forward.8} parent=15 // pred_region
        %s126 = smul.u32 2, %s16
        %p127 = scmp.lt.s32.totalorder %s15, 1
        %s128 = scalar_select %p127, %s15, 1
        %p129 = scmp.lt.s32.totalorder %s126, 1
        %s130 = scalar_select %p129, %s126, 1
        %s131 = smul.addr %s128, 2
        %s132 = sadd.s32 %s130, %s131
        %s133 = smul.addr %s132, 4
        %s134 = scalar_lea.vmem %s0, %s133
        %s135 = smul.u32 2, %s16
      $region20: #{prob_attention_forward.8} parent=15 // pred_fallthru
        _
      // Predicated region
      $region21: #{prob_attention_forward.8} parent=15 // pred_check
        %p136 = pneg %p70
      $region22: #{prob_attention_forward.8} parent=15 // pred_check_branch
        %138 = sbr.rel (%p136) target = $region24
      $region23: #{prob_attention_forward.8} parent=15 // pred_region
        %s139 = smul.u32 16, %s16
        %p140 = scmp.lt.s32.totalorder %s15, 1
        %s141 = scalar_select %p140, %s15, 1
        %p142 = scmp.lt.s32.totalorder %s139, 15
        %s143 = scalar_select %p142, %s139, 15
        %s144 = smul.addr %s141, 16
        %s145 = sadd.s32 %s143, %s144
        %s146 = smul.addr %s145, 4
        %s147 = scalar_lea.vmem %s1, %s146
        %s148 = smul.u32 16, %s16
      $region24: #{prob_attention_forward.8} parent=15 // pred_fallthru
        _
    $region16: #{prob_attention_forward.8} parent=5 // pred_fallthru
      _
    %p149 = scmp.le.s32.totalorder 1, %s8
    %p150 = scmp.lt.s32.totalorder %s8, 3
    %p151 = pnand %p149, %p150
    %p152 = pneg %p151
    // Predicated region
    $region25: #{prob_attention_forward.8} parent=5 // pred_check
      _
    $region26: #{prob_attention_forward.8} parent=5 // pred_check_branch
      %154 = sbr.rel (%p151) target = $region28
    $region27: #{prob_attention_forward.8} parent=5 // pred_region
      %s155 = ssub.s32 %s8, 1
      %s156 = smul.u32 2, %s18
      %p157 = scmp.lt.s32.totalorder %s17, 1
      %s158 = scalar_select %p157, %s17, 1
      %p159 = scmp.lt.s32.totalorder %s156, 1
      %s160 = scalar_select %p159, %s156, 1
      %s161 = smul.addr %s158, 2
      %s162 = sadd.s32 %s160, %s161
      %s163 = smul.addr %s162, 4
      %s164 = scalar_lea.vmem %s0, %s163
      %p165 = pneg %p48
      %p166 = pneg %p45
      %s167 = smul.u32 16, %s18
      %p168 = scmp.lt.s32.totalorder %s17, 1
      %s169 = scalar_select %p168, %s17, 1
      %p170 = scmp.lt.s32.totalorder %s167, 15
      %s171 = scalar_select %p170, %s167, 15
      %s172 = smul.addr %s169, 16
      %s173 = sadd.s32 %s171, %s172
      %s174 = smul.addr %s173, 4
      %s175 = scalar_lea.vmem %s1, %s174
      %p176 = pneg %p76
      %p177 = pneg %p73
      %p178 = pneg %p104
      %p179 = pneg %p101
      %s180 = smul.u32 2, %s18
      %p181 = scmp.lt.s32.totalorder %s17, 1
      %s182 = scalar_select %p181, %s17, 1
      %p183 = scmp.lt.s32.totalorder %s180, 1
      %s184 = scalar_select %p183, %s180, 1
      %s185 = smul.addr %s182, 2
      %s186 = sadd.s32 %s184, %s185
      %s187 = smul.addr %s186, 8
      %s188 = scalar_lea.vmem %s2, %s187
      %s189 = smul.u32 2, %s18
      %p190 = scmp.lt.s32.totalorder %s17, 1
      %s191 = scalar_select %p190, %s17, 1
      %p192 = scmp.lt.s32.totalorder %s189, 1
      %s193 = scalar_select %p192, %s189, 1
      %s194 = smul.addr %s191, 2
      %s195 = sadd.s32 %s193, %s194
      %s196 = smul.addr %s195, 4
      %s197 = scalar_lea.vmem %s0, %s196
      %s198 = smul.u32 2, %s18
      %s199 = smul.u32 16, %s18
      %p200 = scmp.lt.s32.totalorder %s17, 1
      %s201 = scalar_select %p200, %s17, 1
      %p202 = scmp.lt.s32.totalorder %s199, 15
      %s203 = scalar_select %p202, %s199, 15
      %s204 = smul.addr %s201, 16
      %s205 = sadd.s32 %s203, %s204
      %s206 = smul.addr %s205, 4
      %s207 = scalar_lea.vmem %s1, %s206
      %s208 = smul.u32 16, %s18
      %s209 = smul.u32 2, %s18
      %p210 = scmp.lt.s32.totalorder %s17, 1
      %s211 = scalar_select %p210, %s17, 1
      %p212 = scmp.lt.s32.totalorder %s209, 1
      %s213 = scalar_select %p212, %s209, 1
      %s214 = smul.addr %s211, 2
      %s215 = sadd.s32 %s213, %s214
      %s216 = smul.addr %s215, 8
      %s217 = scalar_lea.vmem %s2, %s216
      %s218 = smul.u32 2, %s18
      %v219 = vld [vmem:[%s197] sm:$0xf]
      %v220 = vld [vmem:[%s197 + $0x4] sm:$0xf]
      %v221 = vunpack.c.l.bf16 %v219
      %v222 = vunpack.c.l.bf16 %v220
      %v223 = vld [vmem:[%s207] sm:$0xf]
      %v224 = vld [vmem:[%s207 + $0x4] sm:$0xf]
      %v225 = vld [vmem:[%s207 + $0x8] sm:$0xf]
      %v226 = vld [vmem:[%s207 + $0xc] sm:$0xf]
      %v227 = vld [vmem:[%s207 + $0x10] sm:$0xf]
      %v228 = vld [vmem:[%s207 + $0x14] sm:$0xf]
      %v229 = vld [vmem:[%s207 + $0x18] sm:$0xf]
      %v230 = vld [vmem:[%s207 + $0x1c] sm:$0xf]
      %v231 = vld [vmem:[%s207 + $0x20] sm:$0xf]
      %v232 = vld [vmem:[%s207 + $0x24] sm:$0xf]
      %v233 = vld [vmem:[%s207 + $0x28] sm:$0xf]
      %v234 = vld [vmem:[%s207 + $0x2c] sm:$0xf]
      %v235 = vld [vmem:[%s207 + $0x30] sm:$0xf]
      %v236 = vld [vmem:[%s207 + $0x34] sm:$0xf]
      %v237 = vld [vmem:[%s207 + $0x38] sm:$0xf]
      %v238 = vld [vmem:[%s207 + $0x3c] sm:$0xf]
      %v239 = vunpack.c.l.bf16 %v223
      %v240 = vunpack.c.l.bf16 %v224
      %v241 = vunpack.c.l.bf16 %v225
      %v242 = vunpack.c.l.bf16 %v226
      %v243 = vunpack.c.l.bf16 %v227
      %v244 = vunpack.c.l.bf16 %v228
      %v245 = vunpack.c.l.bf16 %v229
      %v246 = vunpack.c.l.bf16 %v230
      %v247 = vunpack.c.l.bf16 %v231
      %v248 = vunpack.c.l.bf16 %v232
      %v249 = vunpack.c.l.bf16 %v233
      %v250 = vunpack.c.l.bf16 %v234
      %v251 = vunpack.c.l.bf16 %v235
      %v252 = vunpack.c.l.bf16 %v236
      %v253 = vunpack.c.l.bf16 %v237
      %v254 = vunpack.c.l.bf16 %v238
      %v257 = vcombine.high %v221, %v221
      %v259 = vunpack.c.l.s4 1966171168
      %v260 = vunpack.c.0.s8 %v259
      %v261 = vlaneseq
      %v262 = vshrl.u32 %v261, 7
      %v263 = vsub.s32 %v260, %v262
      %v264 = vrot.slane %v221, %v263
      %v266 = vunpack.c.l.s4 1966171168
      %v267 = vunpack.c.0.s8 %v266
      %v268 = vlaneseq
      %v269 = vshrl.u32 %v268, 7
      %v270 = vsub.s32 %v267, %v269
      %v271 = vrot.slane %v257, %v270
      %v272 = vcombine.high %v264, %v264
      %v273 = vcombine.high %v271, %v271
      %v275 = vunpack.c.l.s4 1966171168
      %v276 = vunpack.c.0.s8 %v275
      %v277 = vlaneseq
      %v278 = vshrl.u32 %v277, 7
      %v279 = vsub.s32 %v276, %v278
      %v280 = vrot.slane %v264, %v279
      %v282 = vunpack.c.l.s4 1966171168
      %v283 = vunpack.c.0.s8 %v282
      %v284 = vlaneseq
      %v285 = vshrl.u32 %v284, 7
      %v286 = vsub.s32 %v283, %v285
      %v287 = vrot.slane %v271, %v286
      %v289 = vunpack.c.l.s4 1966171168
      %v290 = vunpack.c.0.s8 %v289
      %v291 = vlaneseq
      %v292 = vshrl.u32 %v291, 7
      %v293 = vsub.s32 %v290, %v292
      %v294 = vrot.slane %v272, %v293
      %v296 = vunpack.c.l.s4 1966171168
      %v297 = vunpack.c.0.s8 %v296
      %v298 = vlaneseq
      %v299 = vshrl.u32 %v298, 7
      %v300 = vsub.s32 %v297, %v299
      %v301 = vrot.slane %v273, %v300
      %v302 = vcombine.high %v280, %v280
      %v303 = vcombine.high %v287, %v287
      %v304 = vcombine.high %v294, %v294
      %v305 = vcombine.high %v301, %v301
      %v306 = vcombine.high %v222, %v222
      %v308 = vunpack.c.l.s4 1966171168
      %v309 = vunpack.c.0.s8 %v308
      %v310 = vlaneseq
      %v311 = vshrl.u32 %v310, 7
      %v312 = vsub.s32 %v309, %v311
      %v313 = vrot.slane %v222, %v312
      %v315 = vunpack.c.l.s4 1966171168
      %v316 = vunpack.c.0.s8 %v315
      %v317 = vlaneseq
      %v318 = vshrl.u32 %v317, 7
      %v319 = vsub.s32 %v316, %v318
      %v320 = vrot.slane %v306, %v319
      %v321 = vcombine.high %v313, %v313
      %v322 = vcombine.high %v320, %v320
      %v324 = vunpack.c.l.s4 1966171168
      %v325 = vunpack.c.0.s8 %v324
      %v326 = vlaneseq
      %v327 = vshrl.u32 %v326, 7
      %v328 = vsub.s32 %v325, %v327
      %v329 = vrot.slane %v313, %v328
      %v331 = vunpack.c.l.s4 1966171168
      %v332 = vunpack.c.0.s8 %v331
      %v333 = vlaneseq
      %v334 = vshrl.u32 %v333, 7
      %v335 = vsub.s32 %v332, %v334
      %v336 = vrot.slane %v320, %v335
      %v338 = vunpack.c.l.s4 1966171168
      %v339 = vunpack.c.0.s8 %v338
      %v340 = vlaneseq
      %v341 = vshrl.u32 %v340, 7
      %v342 = vsub.s32 %v339, %v341
      %v343 = vrot.slane %v321, %v342
      %v345 = vunpack.c.l.s4 1966171168
      %v346 = vunpack.c.0.s8 %v345
      %v347 = vlaneseq
      %v348 = vshrl.u32 %v347, 7
      %v349 = vsub.s32 %v346, %v348
      %v350 = vrot.slane %v322, %v349
      %v351 = vcombine.high %v329, %v329
      %v352 = vcombine.high %v336, %v336
      %v353 = vcombine.high %v343, %v343
      %v354 = vcombine.high %v350, %v350
      %v355 = vlaneseq
      %v356 = vshrl.u32 %v355, 7
      %v357 = vsub.s32 0, %v356
      %v358 = vrot.slane %v280, %v357
      %v359 = vlaneseq
      %v360 = vshrl.u32 %v359, 7
      %v361 = vsub.s32 0, %v360
      %v362 = vrot.slane %v294, %v361
      %v363 = vlaneseq
      %v364 = vshrl.u32 %v363, 7
      %v365 = vsub.s32 0, %v364
      %v366 = vrot.slane %v302, %v365
      %v367 = vlaneseq
      %v368 = vshrl.u32 %v367, 7
      %v369 = vsub.s32 0, %v368
      %v370 = vrot.slane %v304, %v369
      %v371 = vlaneseq
      %v372 = vshrl.u32 %v371, 7
      %v373 = vsub.s32 0, %v372
      %v374 = vrot.slane %v287, %v373
      %v375 = vlaneseq
      %v376 = vshrl.u32 %v375, 7
      %v377 = vsub.s32 0, %v376
      %v378 = vrot.slane %v301, %v377
      %v379 = vlaneseq
      %v380 = vshrl.u32 %v379, 7
      %v381 = vsub.s32 0, %v380
      %v382 = vrot.slane %v303, %v381
      %v383 = vlaneseq
      %v384 = vshrl.u32 %v383, 7
      %v385 = vsub.s32 0, %v384
      %v386 = vrot.slane %v305, %v385
      %v387 = vlaneseq
      %v388 = vshrl.u32 %v387, 7
      %v389 = vsub.s32 0, %v388
      %v390 = vrot.slane %v329, %v389
      %v391 = vlaneseq
      %v392 = vshrl.u32 %v391, 7
      %v393 = vsub.s32 0, %v392
      %v394 = vrot.slane %v343, %v393
      %v395 = vlaneseq
      %v396 = vshrl.u32 %v395, 7
      %v397 = vsub.s32 0, %v396
      %v398 = vrot.slane %v351, %v397
      %v399 = vlaneseq
      %v400 = vshrl.u32 %v399, 7
      %v401 = vsub.s32 0, %v400
      %v402 = vrot.slane %v353, %v401
      %v403 = vlaneseq
      %v404 = vshrl.u32 %v403, 7
      %v405 = vsub.s32 0, %v404
      %v406 = vrot.slane %v336, %v405
      %v407 = vlaneseq
      %v408 = vshrl.u32 %v407, 7
      %v409 = vsub.s32 0, %v408
      %v410 = vrot.slane %v350, %v409
      %v411 = vlaneseq
      %v412 = vshrl.u32 %v411, 7
      %v413 = vsub.s32 0, %v412
      %v414 = vrot.slane %v352, %v413
      %v415 = vlaneseq
      %v416 = vshrl.u32 %v415, 7
      %v417 = vsub.s32 0, %v416
      %v418 = vrot.slane %v354, %v417
      %v435 = vmul.f32 %v358, %v239
      %v436 = vmul.f32 %v362, %v240
      %v437 = vmul.f32 %v366, %v241
      %v438 = vmul.f32 %v370, %v242
      %v439 = vmul.f32 %v374, %v243
      %v440 = vmul.f32 %v378, %v244
      %v441 = vmul.f32 %v382, %v245
      %v442 = vmul.f32 %v386, %v246
      %v443 = vmul.f32 %v390, %v247
      %v444 = vmul.f32 %v394, %v248
      %v445 = vmul.f32 %v398, %v249
      %v446 = vmul.f32 %v402, %v250
      %v447 = vmul.f32 %v406, %v251
      %v448 = vmul.f32 %v410, %v252
      %v449 = vmul.f32 %v414, %v253
      %v450 = vmul.f32 %v418, %v254
      %vm451 = vcmask 64512
      %v452 = vsel %vm451, %v435, 0.0
      %453 = vadd.xlane.f32.xlu0 %v452
      %v454 = vpop.xlane.xlu0 %453
      %v455 = vsel %vm451, %v436, 0.0
      %456 = vadd.xlane.f32.xlu0 %v455
      %v457 = vpop.xlane.xlu0 %456
      %v458 = vsel %vm451, %v437, 0.0
      %459 = vadd.xlane.f32.xlu0 %v458
      %v460 = vpop.xlane.xlu0 %459
      %v461 = vsel %vm451, %v438, 0.0
      %462 = vadd.xlane.f32.xlu0 %v461
      %v463 = vpop.xlane.xlu0 %462
      %v464 = vsel %vm451, %v439, 0.0
      %465 = vadd.xlane.f32.xlu0 %v464
      %v466 = vpop.xlane.xlu0 %465
      %v467 = vsel %vm451, %v440, 0.0
      %468 = vadd.xlane.f32.xlu0 %v467
      %v469 = vpop.xlane.xlu0 %468
      %v470 = vsel %vm451, %v441, 0.0
      %471 = vadd.xlane.f32.xlu0 %v470
      %v472 = vpop.xlane.xlu0 %471
      %v473 = vsel %vm451, %v442, 0.0
      %474 = vadd.xlane.f32.xlu0 %v473
      %v475 = vpop.xlane.xlu0 %474
      %v476 = vsel %vm451, %v443, 0.0
      %477 = vadd.xlane.f32.xlu0 %v476
      %v478 = vpop.xlane.xlu0 %477
      %v479 = vsel %vm451, %v444, 0.0
      %480 = vadd.xlane.f32.xlu0 %v479
      %v481 = vpop.xlane.xlu0 %480
      %v482 = vsel %vm451, %v445, 0.0
      %483 = vadd.xlane.f32.xlu0 %v482
      %v484 = vpop.xlane.xlu0 %483
      %v485 = vsel %vm451, %v446, 0.0
      %486 = vadd.xlane.f32.xlu0 %v485
      %v487 = vpop.xlane.xlu0 %486
      %v488 = vsel %vm451, %v447, 0.0
      %489 = vadd.xlane.f32.xlu0 %v488
      %v490 = vpop.xlane.xlu0 %489
      %v491 = vsel %vm451, %v448, 0.0
      %492 = vadd.xlane.f32.xlu0 %v491
      %v493 = vpop.xlane.xlu0 %492
      %v494 = vsel %vm451, %v449, 0.0
      %495 = vadd.xlane.f32.xlu0 %v494
      %v496 = vpop.xlane.xlu0 %495
      %v497 = vsel %vm451, %v450, 0.0
      %498 = vadd.xlane.f32.xlu0 %v497
      %v499 = vpop.xlane.xlu0 %498
      %v516 = vlaneseq
      %v517 = vand.u32 %v516, 127
      %v518 = vlaneseq
      %v519 = vshrl.u32 %v518, 7
      %v520 = vsub.s32 %v517, %v519
      %v521 = vrot.slane %v454, %v520
      %v522 = vlaneseq
      %v523 = vshrl.u32 %v522, 7
      %v524 = vsub.s32 %v517, %v523
      %v525 = vrot.slane %v457, %v524
      %v526 = vlaneseq
      %v527 = vshrl.u32 %v526, 7
      %v528 = vsub.s32 %v517, %v527
      %v529 = vrot.slane %v460, %v528
      %v530 = vlaneseq
      %v531 = vshrl.u32 %v530, 7
      %v532 = vsub.s32 %v517, %v531
      %v533 = vrot.slane %v463, %v532
      %v534 = vlaneseq
      %v535 = vshrl.u32 %v534, 7
      %v536 = vsub.s32 %v517, %v535
      %v537 = vrot.slane %v466, %v536
      %v538 = vlaneseq
      %v539 = vshrl.u32 %v538, 7
      %v540 = vsub.s32 %v517, %v539
      %v541 = vrot.slane %v469, %v540
      %v542 = vlaneseq
      %v543 = vshrl.u32 %v542, 7
      %v544 = vsub.s32 %v517, %v543
      %v545 = vrot.slane %v472, %v544
      %v546 = vlaneseq
      %v547 = vshrl.u32 %v546, 7
      %v548 = vsub.s32 %v517, %v547
      %v549 = vrot.slane %v475, %v548
      %v550 = vlaneseq
      %v551 = vshrl.u32 %v550, 7
      %v552 = vsub.s32 %v517, %v551
      %v553 = vrot.slane %v478, %v552
      %v554 = vlaneseq
      %v555 = vshrl.u32 %v554, 7
      %v556 = vsub.s32 %v517, %v555
      %v557 = vrot.slane %v481, %v556
      %v558 = vlaneseq
      %v559 = vshrl.u32 %v558, 7
      %v560 = vsub.s32 %v517, %v559
      %v561 = vrot.slane %v484, %v560
      %v562 = vlaneseq
      %v563 = vshrl.u32 %v562, 7
      %v564 = vsub.s32 %v517, %v563
      %v565 = vrot.slane %v487, %v564
      %v566 = vlaneseq
      %v567 = vshrl.u32 %v566, 7
      %v568 = vsub.s32 %v517, %v567
      %v569 = vrot.slane %v490, %v568
      %v570 = vlaneseq
      %v571 = vshrl.u32 %v570, 7
      %v572 = vsub.s32 %v517, %v571
      %v573 = vrot.slane %v493, %v572
      %v574 = vlaneseq
      %v575 = vshrl.u32 %v574, 7
      %v576 = vsub.s32 %v517, %v575
      %v577 = vrot.slane %v496, %v576
      %v578 = vlaneseq
      %v579 = vshrl.u32 %v578, 7
      %v580 = vsub.s32 %v517, %v579
      %v581 = vrot.slane %v499, %v580
      %vm582 = vcmask 1041409
      %v583 = vsel %vm582, %v525, %v521
      %vm584 = vcmask 1042434
      %v585 = vsel %vm584, %v529, %v583
      %vm586 = vcmask 1043459
      %v587 = vsel %vm586, %v533, %v585
      %vm588 = vcmask 1044484
      %v589 = vsel %vm588, %v537, %v587
      %vm590 = vcmask 1045509
      %v591 = vsel %vm590, %v541, %v589
      %vm592 = vcmask 1046534
      %v593 = vsel %vm592, %v545, %v591
      %vm594 = vcmask 1047559
      %v595 = vsel %vm594, %v549, %v593
      %v596 = vsel %vm582, %v557, %v553
      %v597 = vsel %vm584, %v561, %v596
      %v598 = vsel %vm586, %v565, %v597
      %v599 = vsel %vm588, %v569, %v598
      %v600 = vsel %vm590, %v573, %v599
      %v601 = vsel %vm592, %v577, %v600
      %v602 = vsel %vm594, %v581, %v601
      %v605 = vsel %vm451, %v595, -inf
      %606 = vmax.xlane.f32.xlu0 %v605
      %v607 = vpop.xlane.xlu0 %606
      %v608 = vsel %vm451, %v602, -inf
      %609 = vmax.xlane.f32.xlu0 %v608
      %v610 = vpop.xlane.xlu0 %609
      %v611 = vsel %vm451, %v595, 0.0
      %612 = vadd.xlane.f32.xlu0 %v611
      %v613 = vpop.xlane.xlu0 %612
      %v614 = vsel %vm451, %v602, 0.0
      %615 = vadd.xlane.f32.xlu0 %v614
      %v616 = vpop.xlane.xlu0 %615
      %v617 = vrcp.pop 8.0
      %v618 = vmul.f32 %v613, %v617
      %v619 = vmul.f32 %v616, %v617
      %v620 = vsub.f32 %v607, %v618
      %v621 = vsub.f32 %v610, %v619
      %638 = vrot.lane.b32.xlu0 %v435, 120
      %v639 = vpop.permute.xlu0 %638
      %640 = vrot.lane.b32.xlu0 %v436, 120
      %v641 = vpop.permute.xlu0 %640
      %642 = vrot.lane.b32.xlu0 %v437, 120
      %v643 = vpop.permute.xlu0 %642
      %644 = vrot.lane.b32.xlu0 %v438, 120
      %v645 = vpop.permute.xlu0 %644
      %646 = vrot.lane.b32.xlu0 %v439, 120
      %v647 = vpop.permute.xlu0 %646
      %648 = vrot.lane.b32.xlu0 %v440, 120
      %v649 = vpop.permute.xlu0 %648
      %650 = vrot.lane.b32.xlu0 %v441, 120
      %v651 = vpop.permute.xlu0 %650
      %652 = vrot.lane.b32.xlu0 %v442, 120
      %v653 = vpop.permute.xlu0 %652
      %654 = vrot.lane.b32.xlu0 %v443, 120
      %v655 = vpop.permute.xlu0 %654
      %656 = vrot.lane.b32.xlu0 %v444, 120
      %v657 = vpop.permute.xlu0 %656
      %658 = vrot.lane.b32.xlu0 %v445, 120
      %v659 = vpop.permute.xlu0 %658
      %660 = vrot.lane.b32.xlu0 %v446, 120
      %v661 = vpop.permute.xlu0 %660
      %662 = vrot.lane.b32.xlu0 %v447, 120
      %v663 = vpop.permute.xlu0 %662
      %664 = vrot.lane.b32.xlu0 %v448, 120
      %v665 = vpop.permute.xlu0 %664
      %666 = vrot.lane.b32.xlu0 %v449, 120
      %v667 = vpop.permute.xlu0 %666
      %668 = vrot.lane.b32.xlu0 %v450, 120
      %v669 = vpop.permute.xlu0 %668
      %v686 = vsel %vm451, %v639, 0.0
      %687 = vadd.xlane.f32.xlu0 %v686
      %v688 = vpop.xlane.xlu0 %687
      %v689 = vsel %vm451, %v641, 0.0
      %690 = vadd.xlane.f32.xlu0 %v689
      %v691 = vpop.xlane.xlu0 %690
      %v692 = vsel %vm451, %v643, 0.0
      %693 = vadd.xlane.f32.xlu0 %v692
      %v694 = vpop.xlane.xlu0 %693
      %v695 = vsel %vm451, %v645, 0.0
      %696 = vadd.xlane.f32.xlu0 %v695
      %v697 = vpop.xlane.xlu0 %696
      %v698 = vsel %vm451, %v647, 0.0
      %699 = vadd.xlane.f32.xlu0 %v698
      %v700 = vpop.xlane.xlu0 %699
      %v701 = vsel %vm451, %v649, 0.0
      %702 = vadd.xlane.f32.xlu0 %v701
      %v703 = vpop.xlane.xlu0 %702
      %v704 = vsel %vm451, %v651, 0.0
      %705 = vadd.xlane.f32.xlu0 %v704
      %v706 = vpop.xlane.xlu0 %705
      %v707 = vsel %vm451, %v653, 0.0
      %708 = vadd.xlane.f32.xlu0 %v707
      %v709 = vpop.xlane.xlu0 %708
      %v710 = vsel %vm451, %v655, 0.0
      %711 = vadd.xlane.f32.xlu0 %v710
      %v712 = vpop.xlane.xlu0 %711
      %v713 = vsel %vm451, %v657, 0.0
      %714 = vadd.xlane.f32.xlu0 %v713
      %v715 = vpop.xlane.xlu0 %714
      %v716 = vsel %vm451, %v659, 0.0
      %717 = vadd.xlane.f32.xlu0 %v716
      %v718 = vpop.xlane.xlu0 %717
      %v719 = vsel %vm451, %v661, 0.0
      %720 = vadd.xlane.f32.xlu0 %v719
      %v721 = vpop.xlane.xlu0 %720
      %v722 = vsel %vm451, %v663, 0.0
      %723 = vadd.xlane.f32.xlu0 %v722
      %v724 = vpop.xlane.xlu0 %723
      %v725 = vsel %vm451, %v665, 0.0
      %726 = vadd.xlane.f32.xlu0 %v725
      %v727 = vpop.xlane.xlu0 %726
      %v728 = vsel %vm451, %v667, 0.0
      %729 = vadd.xlane.f32.xlu0 %v728
      %v730 = vpop.xlane.xlu0 %729
      %v731 = vsel %vm451, %v669, 0.0
      %732 = vadd.xlane.f32.xlu0 %v731
      %v733 = vpop.xlane.xlu0 %732
      %v750 = vlaneseq
      %v751 = vshrl.u32 %v750, 7
      %v752 = vsub.s32 %v517, %v751
      %v753 = vrot.slane %v688, %v752
      %v754 = vlaneseq
      %v755 = vshrl.u32 %v754, 7
      %v756 = vsub.s32 %v517, %v755
      %v757 = vrot.slane %v691, %v756
      %v758 = vlaneseq
      %v759 = vshrl.u32 %v758, 7
      %v760 = vsub.s32 %v517, %v759
      %v761 = vrot.slane %v694, %v760
      %v762 = vlaneseq
      %v763 = vshrl.u32 %v762, 7
      %v764 = vsub.s32 %v517, %v763
      %v765 = vrot.slane %v697, %v764
      %v766 = vlaneseq
      %v767 = vshrl.u32 %v766, 7
      %v768 = vsub.s32 %v517, %v767
      %v769 = vrot.slane %v700, %v768
      %v770 = vlaneseq
      %v771 = vshrl.u32 %v770, 7
      %v772 = vsub.s32 %v517, %v771
      %v773 = vrot.slane %v703, %v772
      %v774 = vlaneseq
      %v775 = vshrl.u32 %v774, 7
      %v776 = vsub.s32 %v517, %v775
      %v777 = vrot.slane %v706, %v776
      %v778 = vlaneseq
      %v779 = vshrl.u32 %v778, 7
      %v780 = vsub.s32 %v517, %v779
      %v781 = vrot.slane %v709, %v780
      %v782 = vlaneseq
      %v783 = vshrl.u32 %v782, 7
      %v784 = vsub.s32 %v517, %v783
      %v785 = vrot.slane %v712, %v784
      %v786 = vlaneseq
      %v787 = vshrl.u32 %v786, 7
      %v788 = vsub.s32 %v517, %v787
      %v789 = vrot.slane %v715, %v788
      %v790 = vlaneseq
      %v791 = vshrl.u32 %v790, 7
      %v792 = vsub.s32 %v517, %v791
      %v793 = vrot.slane %v718, %v792
      %v794 = vlaneseq
      %v795 = vshrl.u32 %v794, 7
      %v796 = vsub.s32 %v517, %v795
      %v797 = vrot.slane %v721, %v796
      %v798 = vlaneseq
      %v799 = vshrl.u32 %v798, 7
      %v800 = vsub.s32 %v517, %v799
      %v801 = vrot.slane %v724, %v800
      %v802 = vlaneseq
      %v803 = vshrl.u32 %v802, 7
      %v804 = vsub.s32 %v517, %v803
      %v805 = vrot.slane %v727, %v804
      %v806 = vlaneseq
      %v807 = vshrl.u32 %v806, 7
      %v808 = vsub.s32 %v517, %v807
      %v809 = vrot.slane %v730, %v808
      %v810 = vlaneseq
      %v811 = vshrl.u32 %v810, 7
      %v812 = vsub.s32 %v517, %v811
      %v813 = vrot.slane %v733, %v812
      %v814 = vsel %vm582, %v757, %v753
      %v815 = vsel %vm584, %v761, %v814
      %v816 = vsel %vm586, %v765, %v815
      %v817 = vsel %vm588, %v769, %v816
      %v818 = vsel %vm590, %v773, %v817
      %v819 = vsel %vm592, %v777, %v818
      %v820 = vsel %vm594, %v781, %v819
      %v821 = vsel %vm582, %v789, %v785
      %v822 = vsel %vm584, %v793, %v821
      %v823 = vsel %vm586, %v797, %v822
      %v824 = vsel %vm588, %v801, %v823
      %v825 = vsel %vm590, %v805, %v824
      %v826 = vsel %vm592, %v809, %v825
      %v827 = vsel %vm594, %v813, %v826
      %v830 = vsel %vm451, %v820, -inf
      %831 = vmax.xlane.f32.xlu0 %v830
      %v832 = vpop.xlane.xlu0 %831
      %v833 = vsel %vm451, %v827, -inf
      %834 = vmax.xlane.f32.xlu0 %v833
      %v835 = vpop.xlane.xlu0 %834
      %v836 = vsel %vm451, %v820, 0.0
      %837 = vadd.xlane.f32.xlu0 %v836
      %v838 = vpop.xlane.xlu0 %837
      %v839 = vsel %vm451, %v827, 0.0
      %840 = vadd.xlane.f32.xlu0 %v839
      %v841 = vpop.xlane.xlu0 %840
      %v842 = vmul.f32 %v838, %v617
      %v843 = vmul.f32 %v841, %v617
      %v844 = vsub.f32 %v832, %v842
      %v845 = vsub.f32 %v835, %v843
      %846 = vrot.lane.b32.xlu0 %v435, 112
      %v847 = vpop.permute.xlu0 %846
      %848 = vrot.lane.b32.xlu0 %v436, 112
      %v849 = vpop.permute.xlu0 %848
      %850 = vrot.lane.b32.xlu0 %v437, 112
      %v851 = vpop.permute.xlu0 %850
      %852 = vrot.lane.b32.xlu0 %v438, 112
      %v853 = vpop.permute.xlu0 %852
      %854 = vrot.lane.b32.xlu0 %v439, 112
      %v855 = vpop.permute.xlu0 %854
      %856 = vrot.lane.b32.xlu0 %v440, 112
      %v857 = vpop.permute.xlu0 %856
      %858 = vrot.lane.b32.xlu0 %v441, 112
      %v859 = vpop.permute.xlu0 %858
      %860 = vrot.lane.b32.xlu0 %v442, 112
      %v861 = vpop.permute.xlu0 %860
      %862 = vrot.lane.b32.xlu0 %v443, 112
      %v863 = vpop.permute.xlu0 %862
      %864 = vrot.lane.b32.xlu0 %v444, 112
      %v865 = vpop.permute.xlu0 %864
      %866 = vrot.lane.b32.xlu0 %v445, 112
      %v867 = vpop.permute.xlu0 %866
      %868 = vrot.lane.b32.xlu0 %v446, 112
      %v869 = vpop.permute.xlu0 %868
      %870 = vrot.lane.b32.xlu0 %v447, 112
      %v871 = vpop.permute.xlu0 %870
      %872 = vrot.lane.b32.xlu0 %v448, 112
      %v873 = vpop.permute.xlu0 %872
      %874 = vrot.lane.b32.xlu0 %v449, 112
      %v875 = vpop.permute.xlu0 %874
      %876 = vrot.lane.b32.xlu0 %v450, 112
      %v877 = vpop.permute.xlu0 %876
      %v894 = vsel %vm451, %v847, 0.0
      %895 = vadd.xlane.f32.xlu0 %v894
      %v896 = vpop.xlane.xlu0 %895
      %v897 = vsel %vm451, %v849, 0.0
      %898 = vadd.xlane.f32.xlu0 %v897
      %v899 = vpop.xlane.xlu0 %898
      %v900 = vsel %vm451, %v851, 0.0
      %901 = vadd.xlane.f32.xlu0 %v900
      %v902 = vpop.xlane.xlu0 %901
      %v903 = vsel %vm451, %v853, 0.0
      %904 = vadd.xlane.f32.xlu0 %v903
      %v905 = vpop.xlane.xlu0 %904
      %v906 = vsel %vm451, %v855, 0.0
      %907 = vadd.xlane.f32.xlu0 %v906
      %v908 = vpop.xlane.xlu0 %907
      %v909 = vsel %vm451, %v857, 0.0
      %910 = vadd.xlane.f32.xlu0 %v909
      %v911 = vpop.xlane.xlu0 %910
      %v912 = vsel %vm451, %v859, 0.0
      %913 = vadd.xlane.f32.xlu0 %v912
      %v914 = vpop.xlane.xlu0 %913
      %v915 = vsel %vm451, %v861, 0.0
      %916 = vadd.xlane.f32.xlu0 %v915
      %v917 = vpop.xlane.xlu0 %916
      %v918 = vsel %vm451, %v863, 0.0
      %919 = vadd.xlane.f32.xlu0 %v918
      %v920 = vpop.xlane.xlu0 %919
      %v921 = vsel %vm451, %v865, 0.0
      %922 = vadd.xlane.f32.xlu0 %v921
      %v923 = vpop.xlane.xlu0 %922
      %v924 = vsel %vm451, %v867, 0.0
      %925 = vadd.xlane.f32.xlu0 %v924
      %v926 = vpop.xlane.xlu0 %925
      %v927 = vsel %vm451, %v869, 0.0
      %928 = vadd.xlane.f32.xlu0 %v927
      %v929 = vpop.xlane.xlu0 %928
      %v930 = vsel %vm451, %v871, 0.0
      %931 = vadd.xlane.f32.xlu0 %v930
      %v932 = vpop.xlane.xlu0 %931
      %v933 = vsel %vm451, %v873, 0.0
      %934 = vadd.xlane.f32.xlu0 %v933
      %v935 = vpop.xlane.xlu0 %934
      %v936 = vsel %vm451, %v875, 0.0
      %937 = vadd.xlane.f32.xlu0 %v936
      %v938 = vpop.xlane.xlu0 %937
      %v939 = vsel %vm451, %v877, 0.0
      %940 = vadd.xlane.f32.xlu0 %v939
      %v941 = vpop.xlane.xlu0 %940
      %v958 = vlaneseq
      %v959 = vshrl.u32 %v958, 7
      %v960 = vsub.s32 %v517, %v959
      %v961 = vrot.slane %v896, %v960
      %v962 = vlaneseq
      %v963 = vshrl.u32 %v962, 7
      %v964 = vsub.s32 %v517, %v963
      %v965 = vrot.slane %v899, %v964
      %v966 = vlaneseq
      %v967 = vshrl.u32 %v966, 7
      %v968 = vsub.s32 %v517, %v967
      %v969 = vrot.slane %v902, %v968
      %v970 = vlaneseq
      %v971 = vshrl.u32 %v970, 7
      %v972 = vsub.s32 %v517, %v971
      %v973 = vrot.slane %v905, %v972
      %v974 = vlaneseq
      %v975 = vshrl.u32 %v974, 7
      %v976 = vsub.s32 %v517, %v975
      %v977 = vrot.slane %v908, %v976
      %v978 = vlaneseq
      %v979 = vshrl.u32 %v978, 7
      %v980 = vsub.s32 %v517, %v979
      %v981 = vrot.slane %v911, %v980
      %v982 = vlaneseq
      %v983 = vshrl.u32 %v982, 7
      %v984 = vsub.s32 %v517, %v983
      %v985 = vrot.slane %v914, %v984
      %v986 = vlaneseq
      %v987 = vshrl.u32 %v986, 7
      %v988 = vsub.s32 %v517, %v987
      %v989 = vrot.slane %v917, %v988
      %v990 = vlaneseq
      %v991 = vshrl.u32 %v990, 7
      %v992 = vsub.s32 %v517, %v991
      %v993 = vrot.slane %v920, %v992
      %v994 = vlaneseq
      %v995 = vshrl.u32 %v994, 7
      %v996 = vsub.s32 %v517, %v995
      %v997 = vrot.slane %v923, %v996
      %v998 = vlaneseq
      %v999 = vshrl.u32 %v998, 7
      %v1000 = vsub.s32 %v517, %v999
      %v1001 = vrot.slane %v926, %v1000
      %v1002 = vlaneseq
      %v1003 = vshrl.u32 %v1002, 7
      %v1004 = vsub.s32 %v517, %v1003
      %v1005 = vrot.slane %v929, %v1004
      %v1006 = vlaneseq
      %v1007 = vshrl.u32 %v1006, 7
      %v1008 = vsub.s32 %v517, %v1007
      %v1009 = vrot.slane %v932, %v1008
      %v1010 = vlaneseq
      %v1011 = vshrl.u32 %v1010, 7
      %v1012 = vsub.s32 %v517, %v1011
      %v1013 = vrot.slane %v935, %v1012
      %v1014 = vlaneseq
      %v1015 = vshrl.u32 %v1014, 7
      %v1016 = vsub.s32 %v517, %v1015
      %v1017 = vrot.slane %v938, %v1016
      %v1018 = vlaneseq
      %v1019 = vshrl.u32 %v1018, 7
      %v1020 = vsub.s32 %v517, %v1019
      %v1021 = vrot.slane %v941, %v1020
      %v1022 = vsel %vm582, %v965, %v961
      %v1023 = vsel %vm584, %v969, %v1022
      %v1024 = vsel %vm586, %v973, %v1023
      %v1025 = vsel %vm588, %v977, %v1024
      %v1026 = vsel %vm590, %v981, %v1025
      %v1027 = vsel %vm592, %v985, %v1026
      %v1028 = vsel %vm594, %v989, %v1027
      %v1029 = vsel %vm582, %v997, %v993
      %v1030 = vsel %vm584, %v1001, %v1029
      %v1031 = vsel %vm586, %v1005, %v1030
      %v1032 = vsel %vm588, %v1009, %v1031
      %v1033 = vsel %vm590, %v1013, %v1032
      %v1034 = vsel %vm592, %v1017, %v1033
      %v1035 = vsel %vm594, %v1021, %v1034
      %v1038 = vsel %vm451, %v1028, -inf
      %1039 = vmax.xlane.f32.xlu0 %v1038
      %v1040 = vpop.xlane.xlu0 %1039
      %v1041 = vsel %vm451, %v1035, -inf
      %1042 = vmax.xlane.f32.xlu0 %v1041
      %v1043 = vpop.xlane.xlu0 %1042
      %v1044 = vsel %vm451, %v1028, 0.0
      %1045 = vadd.xlane.f32.xlu0 %v1044
      %v1046 = vpop.xlane.xlu0 %1045
      %v1047 = vsel %vm451, %v1035, 0.0
      %1048 = vadd.xlane.f32.xlu0 %v1047
      %v1049 = vpop.xlane.xlu0 %1048
      %v1050 = vmul.f32 %v1046, %v617
      %v1051 = vmul.f32 %v1049, %v617
      %v1052 = vsub.f32 %v1040, %v1050
      %v1053 = vsub.f32 %v1043, %v1051
      %1054 = vrot.lane.b32.xlu0 %v435, 104
      %v1055 = vpop.permute.xlu0 %1054
      %1056 = vrot.lane.b32.xlu0 %v436, 104
      %v1057 = vpop.permute.xlu0 %1056
      %1058 = vrot.lane.b32.xlu0 %v437, 104
      %v1059 = vpop.permute.xlu0 %1058
      %1060 = vrot.lane.b32.xlu0 %v438, 104
      %v1061 = vpop.permute.xlu0 %1060
      %1062 = vrot.lane.b32.xlu0 %v439, 104
      %v1063 = vpop.permute.xlu0 %1062
      %1064 = vrot.lane.b32.xlu0 %v440, 104
      %v1065 = vpop.permute.xlu0 %1064
      %1066 = vrot.lane.b32.xlu0 %v441, 104
      %v1067 = vpop.permute.xlu0 %1066
      %1068 = vrot.lane.b32.xlu0 %v442, 104
      %v1069 = vpop.permute.xlu0 %1068
      %1070 = vrot.lane.b32.xlu0 %v443, 104
      %v1071 = vpop.permute.xlu0 %1070
      %1072 = vrot.lane.b32.xlu0 %v444, 104
      %v1073 = vpop.permute.xlu0 %1072
      %1074 = vrot.lane.b32.xlu0 %v445, 104
      %v1075 = vpop.permute.xlu0 %1074
      %1076 = vrot.lane.b32.xlu0 %v446, 104
      %v1077 = vpop.permute.xlu0 %1076
      %1078 = vrot.lane.b32.xlu0 %v447, 104
      %v1079 = vpop.permute.xlu0 %1078
      %1080 = vrot.lane.b32.xlu0 %v448, 104
      %v1081 = vpop.permute.xlu0 %1080
      %1082 = vrot.lane.b32.xlu0 %v449, 104
      %v1083 = vpop.permute.xlu0 %1082
      %1084 = vrot.lane.b32.xlu0 %v450, 104
      %v1085 = vpop.permute.xlu0 %1084
      %v1102 = vsel %vm451, %v1055, 0.0
      %1103 = vadd.xlane.f32.xlu0 %v1102
      %v1104 = vpop.xlane.xlu0 %1103
      %v1105 = vsel %vm451, %v1057, 0.0
      %1106 = vadd.xlane.f32.xlu0 %v1105
      %v1107 = vpop.xlane.xlu0 %1106
      %v1108 = vsel %vm451, %v1059, 0.0
      %1109 = vadd.xlane.f32.xlu0 %v1108
      %v1110 = vpop.xlane.xlu0 %1109
      %v1111 = vsel %vm451, %v1061, 0.0
      %1112 = vadd.xlane.f32.xlu0 %v1111
      %v1113 = vpop.xlane.xlu0 %1112
      %v1114 = vsel %vm451, %v1063, 0.0
      %1115 = vadd.xlane.f32.xlu0 %v1114
      %v1116 = vpop.xlane.xlu0 %1115
      %v1117 = vsel %vm451, %v1065, 0.0
      %1118 = vadd.xlane.f32.xlu0 %v1117
      %v1119 = vpop.xlane.xlu0 %1118
      %v1120 = vsel %vm451, %v1067, 0.0
      %1121 = vadd.xlane.f32.xlu0 %v1120
      %v1122 = vpop.xlane.xlu0 %1121
      %v1123 = vsel %vm451, %v1069, 0.0
      %1124 = vadd.xlane.f32.xlu0 %v1123
      %v1125 = vpop.xlane.xlu0 %1124
      %v1126 = vsel %vm451, %v1071, 0.0
      %1127 = vadd.xlane.f32.xlu0 %v1126
      %v1128 = vpop.xlane.xlu0 %1127
      %v1129 = vsel %vm451, %v1073, 0.0
      %1130 = vadd.xlane.f32.xlu0 %v1129
      %v1131 = vpop.xlane.xlu0 %1130
      %v1132 = vsel %vm451, %v1075, 0.0
      %1133 = vadd.xlane.f32.xlu0 %v1132
      %v1134 = vpop.xlane.xlu0 %1133
      %v1135 = vsel %vm451, %v1077, 0.0
      %1136 = vadd.xlane.f32.xlu0 %v1135
      %v1137 = vpop.xlane.xlu0 %1136
      %v1138 = vsel %vm451, %v1079, 0.0
      %1139 = vadd.xlane.f32.xlu0 %v1138
      %v1140 = vpop.xlane.xlu0 %1139
      %v1141 = vsel %vm451, %v1081, 0.0
      %1142 = vadd.xlane.f32.xlu0 %v1141
      %v1143 = vpop.xlane.xlu0 %1142
      %v1144 = vsel %vm451, %v1083, 0.0
      %1145 = vadd.xlane.f32.xlu0 %v1144
      %v1146 = vpop.xlane.xlu0 %1145
      %v1147 = vsel %vm451, %v1085, 0.0
      %1148 = vadd.xlane.f32.xlu0 %v1147
      %v1149 = vpop.xlane.xlu0 %1148
      %v1166 = vlaneseq
      %v1167 = vshrl.u32 %v1166, 7
      %v1168 = vsub.s32 %v517, %v1167
      %v1169 = vrot.slane %v1104, %v1168
      %v1170 = vlaneseq
      %v1171 = vshrl.u32 %v1170, 7
      %v1172 = vsub.s32 %v517, %v1171
      %v1173 = vrot.slane %v1107, %v1172
      %v1174 = vlaneseq
      %v1175 = vshrl.u32 %v1174, 7
      %v1176 = vsub.s32 %v517, %v1175
      %v1177 = vrot.slane %v1110, %v1176
      %v1178 = vlaneseq
      %v1179 = vshrl.u32 %v1178, 7
      %v1180 = vsub.s32 %v517, %v1179
      %v1181 = vrot.slane %v1113, %v1180
      %v1182 = vlaneseq
      %v1183 = vshrl.u32 %v1182, 7
      %v1184 = vsub.s32 %v517, %v1183
      %v1185 = vrot.slane %v1116, %v1184
      %v1186 = vlaneseq
      %v1187 = vshrl.u32 %v1186, 7
      %v1188 = vsub.s32 %v517, %v1187
      %v1189 = vrot.slane %v1119, %v1188
      %v1190 = vlaneseq
      %v1191 = vshrl.u32 %v1190, 7
      %v1192 = vsub.s32 %v517, %v1191
      %v1193 = vrot.slane %v1122, %v1192
      %v1194 = vlaneseq
      %v1195 = vshrl.u32 %v1194, 7
      %v1196 = vsub.s32 %v517, %v1195
      %v1197 = vrot.slane %v1125, %v1196
      %v1198 = vlaneseq
      %v1199 = vshrl.u32 %v1198, 7
      %v1200 = vsub.s32 %v517, %v1199
      %v1201 = vrot.slane %v1128, %v1200
      %v1202 = vlaneseq
      %v1203 = vshrl.u32 %v1202, 7
      %v1204 = vsub.s32 %v517, %v1203
      %v1205 = vrot.slane %v1131, %v1204
      %v1206 = vlaneseq
      %v1207 = vshrl.u32 %v1206, 7
      %v1208 = vsub.s32 %v517, %v1207
      %v1209 = vrot.slane %v1134, %v1208
      %v1210 = vlaneseq
      %v1211 = vshrl.u32 %v1210, 7
      %v1212 = vsub.s32 %v517, %v1211
      %v1213 = vrot.slane %v1137, %v1212
      %v1214 = vlaneseq
      %v1215 = vshrl.u32 %v1214, 7
      %v1216 = vsub.s32 %v517, %v1215
      %v1217 = vrot.slane %v1140, %v1216
      %v1218 = vlaneseq
      %v1219 = vshrl.u32 %v1218, 7
      %v1220 = vsub.s32 %v517, %v1219
      %v1221 = vrot.slane %v1143, %v1220
      %v1222 = vlaneseq
      %v1223 = vshrl.u32 %v1222, 7
      %v1224 = vsub.s32 %v517, %v1223
      %v1225 = vrot.slane %v1146, %v1224
      %v1226 = vlaneseq
      %v1227 = vshrl.u32 %v1226, 7
      %v1228 = vsub.s32 %v517, %v1227
      %v1229 = vrot.slane %v1149, %v1228
      %v1230 = vsel %vm582, %v1173, %v1169
      %v1231 = vsel %vm584, %v1177, %v1230
      %v1232 = vsel %vm586, %v1181, %v1231
      %v1233 = vsel %vm588, %v1185, %v1232
      %v1234 = vsel %vm590, %v1189, %v1233
      %v1235 = vsel %vm592, %v1193, %v1234
      %v1236 = vsel %vm594, %v1197, %v1235
      %v1237 = vsel %vm582, %v1205, %v1201
      %v1238 = vsel %vm584, %v1209, %v1237
      %v1239 = vsel %vm586, %v1213, %v1238
      %v1240 = vsel %vm588, %v1217, %v1239
      %v1241 = vsel %vm590, %v1221, %v1240
      %v1242 = vsel %vm592, %v1225, %v1241
      %v1243 = vsel %vm594, %v1229, %v1242
      %v1246 = vsel %vm451, %v1236, -inf
      %1247 = vmax.xlane.f32.xlu0 %v1246
      %v1248 = vpop.xlane.xlu0 %1247
      %v1249 = vsel %vm451, %v1243, -inf
      %1250 = vmax.xlane.f32.xlu0 %v1249
      %v1251 = vpop.xlane.xlu0 %1250
      %v1252 = vsel %vm451, %v1236, 0.0
      %1253 = vadd.xlane.f32.xlu0 %v1252
      %v1254 = vpop.xlane.xlu0 %1253
      %v1255 = vsel %vm451, %v1243, 0.0
      %1256 = vadd.xlane.f32.xlu0 %v1255
      %v1257 = vpop.xlane.xlu0 %1256
      %v1258 = vmul.f32 %v1254, %v617
      %v1259 = vmul.f32 %v1257, %v617
      %v1260 = vsub.f32 %v1248, %v1258
      %v1261 = vsub.f32 %v1251, %v1259
      %vm1262 = vcmask 7168
      %v1263 = vsel %vm1262, %v620, %v844
      %v1264 = vsel %vm1262, %v621, %v845
      %vm1265 = vcmask 15360
      %v1266 = vsel %vm1265, %v1263, %v1052
      %v1267 = vsel %vm1265, %v1264, %v1053
      %vm1268 = vcmask 23552
      %v1269 = vsel %vm1268, %v1266, %v1260
      %v1270 = vsel %vm1268, %v1267, %v1261
      %vm1271 = vcmask 31744
      %1272 = vst.msk [vmem:[%s217] sm:$0xff] %vm1271, %v1269
      %1273 = vst.msk [vmem:[%s217 + $0x8] sm:$0xff] %vm1271, %v1270
      %s1274 = smul.u32 2, %s18
      %p1275 = scmp.lt.s32.totalorder %s17, 1
      %s1276 = scalar_select %p1275, %s17, 1
      %p1277 = scmp.lt.s32.totalorder %s1274, 1
      %s1278 = scalar_select %p1277, %s1274, 1
      %s1279 = smul.addr %s1276, 2
      %s1280 = sadd.s32 %s1278, %s1279
      %s1281 = smul.addr %s1280, 8
      %s1282 = scalar_lea.vmem %s2, %s1281
      // Predicated region
      $region29: #{prob_attention_forward.8} parent=27 // pred_check
        %p1283 = pneg %p101
      $region30: #{prob_attention_forward.8} parent=27 // pred_check_branch
        %1285 = sbr.rel (%p1283) target = $region32
      $region31: #{prob_attention_forward.8} parent=27 // pred_region
        %s1286 = smul.u32 2, %s18
      $region32: #{prob_attention_forward.8} parent=27 // pred_fallthru
        _
    $region28: #{prob_attention_forward.8} parent=5 // pred_fallthru
      _
    %p1287 = scmp.le.s32.totalorder 2, %s8
    // Predicated region
    $region33: #{prob_attention_forward.8} parent=5 // pred_check
      %p1288 = pneg %p1287
    $region34: #{prob_attention_forward.8} parent=5 // pred_check_branch
      %1290 = sbr.rel (%p1288) target = $region36
    $region35: #{prob_attention_forward.8} parent=5 // pred_region
      %s1291 = ssub.s32 %s8, 2
      // Predicated region
      $region37: #{prob_attention_forward.8} parent=35 // pred_check
        %p1292 = pneg %p107
      $region38: #{prob_attention_forward.8} parent=35 // pred_check_branch
        %1294 = sbr.rel (%p1292) target = $region40
      $region39: #{prob_attention_forward.8} parent=35 // pred_region
        %s1295 = smul.u32 2, %s20
        %p1296 = scmp.lt.s32.totalorder %s19, 1
        %s1297 = scalar_select %p1296, %s19, 1
        %p1298 = scmp.lt.s32.totalorder %s1295, 1
        %s1299 = scalar_select %p1298, %s1295, 1
        %s1300 = smul.addr %s1297, 2
        %s1301 = sadd.s32 %s1299, %s1300
        %s1302 = smul.addr %s1301, 8
        %s1303 = scalar_lea.vmem %s2, %s1302
      $region40: #{prob_attention_forward.8} parent=35 // pred_fallthru
        _
    $region36: #{prob_attention_forward.8} parent=5 // pred_fallthru
      _
  $region6: #{prob_attention_forward.8} parent=0 // loop_footer
    %s12 = sadd.s32 1, %s8
  $region7: #{prob_attention_forward.8} parent=0 // loop_footer_branch
    %7 = sbr.rel target = $region3
  $region8: #{prob_attention_forward.8} parent=0 // loop_exit
    _

// kernel: prob_attention_forward.11
$region0: #{prob_attention_forward.11}
  #allocation0 [shape = 'u32[]', space=smem, size = 0x4, offset = 0x4, fixed_abs, tag = 'smem constant byte address 0x4 - core index']
  #allocation1 [shape = 'u32[144,128]{1,0:T(1,128)}', space=vmem, size = 0x12000, scoped, tag = 'internal scratch']
  %s0 = inlined_call_operand.vmem [shape: bf16[32,32], index: 0, kind: input, shape index: {}]
  %s1 = inlined_call_operand.vmem [shape: bf16[32,32], index: 1, kind: input, shape index: {}]
  %s2 = inlined_call_operand.vmem [shape: f32[32,32], index: 2, kind: input, shape index: {}]
  %s3 = inlined_call_operand.vmem [shape: f32[1,32], index: 3, kind: input, shape index: {}]
  %s4 = inlined_call_operand.vmem [shape: f32[1,32], index: 4, kind: input, shape index: {}]
  %s5 = inlined_call_operand.hbm [shape: f32[32,32], index: 5, kind: output, shape index: {}]
  %s6 = sld [smem:[#allocation0]]
  $region30: #{prob_attention_forward.11} parent=0
    _
  %s8 = ssub.s32 1, %s6
  %s9 = scalar_select 0, %s8, %s6
  $region1: #{prob_attention_forward.11} parent=0
    #allocation2 [shape = 'u8[16384]{0}', space=vmem, size = 0x4000, scoped, tag = 'output window, operand 0, single buffered']
    #allocation3 [shape = 's32[1]{0}', space=sflag, size = 0x4, scoped, tag = 'scoped memory for prob_attention_forward.11']
    %10 = vsyncpa [#allocation3], 0
    // Predicated region
    $region2: #{prob_attention_forward.11} parent=1 // pred_check
      _
    $region3: #{prob_attention_forward.11} parent=1 // pred_check_branch
      %12 = sbr.rel (0) target = $region5
    $region4: #{prob_attention_forward.11} parent=1 // pred_region
      _
    $region5: #{prob_attention_forward.11} parent=1 // pred_fallthru
      _
    // Predicated region
    $region6: #{prob_attention_forward.11} parent=1 // pred_check
      _
    $region7: #{prob_attention_forward.11} parent=1 // pred_check_branch
      %14 = sbr.rel (0) target = $region9
    $region8: #{prob_attention_forward.11} parent=1 // pred_region
      _
    $region9: #{prob_attention_forward.11} parent=1 // pred_fallthru
      _
    // Predicated region
    $region10: #{prob_attention_forward.11} parent=1 // pred_check
      _
    $region11: #{prob_attention_forward.11} parent=1 // pred_check_branch
      %16 = sbr.rel (0) target = $region13
    $region12: #{prob_attention_forward.11} parent=1 // pred_region
      _
    $region13: #{prob_attention_forward.11} parent=1 // pred_fallthru
      _
    // Predicated region
    $region14: #{prob_attention_forward.11} parent=1 // pred_check
      _
    $region15: #{prob_attention_forward.11} parent=1 // pred_check_branch
      %18 = sbr.rel (0) target = $region17
    $region16: #{prob_attention_forward.11} parent=1 // pred_region
      _
    $region17: #{prob_attention_forward.11} parent=1 // pred_fallthru
      _
    // Predicated region
    $region18: #{prob_attention_forward.11} parent=1 // pred_check
      _
    $region19: #{prob_attention_forward.11} parent=1 // pred_check_branch
      %20 = sbr.rel (0) target = $region21
    $region20: #{prob_attention_forward.11} parent=1 // pred_region
      _
    $region21: #{prob_attention_forward.11} parent=1 // pred_fallthru
      _
    %v22 = vld [vmem:[%s0] sm:$0xf]
    %v23 = vld [vmem:[%s0 + $0x4] sm:$0xf]
    %v24 = vld [vmem:[%s0 + $0x8] sm:$0xf]
    %v25 = vld [vmem:[%s0 + $0xc] sm:$0xf]
    %v26 = vld [vmem:[%s1] sm:$0xf]
    %v27 = vld [vmem:[%s1 + $0x4] sm:$0xf]
    %v28 = vld [vmem:[%s1 + $0x8] sm:$0xf]
    %v29 = vld [vmem:[%s1 + $0xc] sm:$0xf]
    %v30 = vld [vmem:[%s2] sm:$0xff]
    %v31 = vld [vmem:[%s2 + $0x8] sm:$0xff]
    %v32 = vld [vmem:[%s2 + $0x10] sm:$0xff]
    %v33 = vld [vmem:[%s2 + $0x18] sm:$0xff]
    %v38 = vunpack.c.l.b16 %v22
    %v39 = vunpack.c.l.b16 %v23
    %v40 = vunpack.c.l.b16 %v24
    %v41 = vunpack.c.l.b16 %v25
    %v42 = vpack.c.b16 %v39, %v38
    %v43 = vpack.c.b16 %v41, %v40
    %v48 = vunpack.c.l.b16 %v26
    %v49 = vunpack.c.l.b16 %v27
    %v50 = vunpack.c.l.b16 %v28
    %v51 = vunpack.c.l.b16 %v29
    %v52 = vpack.c.b16 %v49, %v48
    %v53 = vpack.c.b16 %v51, %v50
    %vm56 = vcmask 261120
    %v58 = vsel %vm56, %v42, 0
    %v61 = vsel %vm56, %v43, 0
    %63 = vmatprep.subr.bf16.mxu0 0
    %64 = vmatpush1.bf16.msra.mxu0 0
    %65 = vmatprep.subr.bf16.mxu0 0
    %66 = vmatpush1.bf16.msra.mxu0 0
    %67 = vmatprep.subr.bf16.mxu0 0
    %68 = vmatpush1.bf16.msra.mxu0 0
    %69 = vmatprep.subr.bf16.mxu0 0
    %70 = vmatpush1.bf16.msra.mxu0 0
    %71 = vmatprep.subr.bf16.mxu0 0
    %72 = vmatpush1.bf16.msra.mxu0 0
    %73 = vmatprep.subr.bf16.mxu0 0
    %74 = vmatpush1.bf16.msra.mxu0 0
    %75 = vmatprep.subr.bf16.mxu0 0
    %76 = vmatpush1.bf16.msra.mxu0 %v53
    %77 = vmatprep.subr.bf16.mxu0 0
    %78 = vmatpush1.bf16.msra.mxu0 %v52
    %79 = vmatprep.subr.bf16.mxu0 0
    %80 = vmatpush2.bf16.msra.mxu0 0
    %81 = vmatprep.subr.bf16.mxu0 0
    %82 = vmatpush2.bf16.msra.mxu0 0
    %83 = vmatprep.subr.bf16.mxu0 0
    %84 = vmatpush2.bf16.msra.mxu0 0
    %85 = vmatprep.subr.bf16.mxu0 0
    %86 = vmatpush2.bf16.msra.mxu0 0
    %87 = vmatprep.subr.bf16.mxu0 0
    %88 = vmatpush2.bf16.msra.mxu0 0
    %89 = vmatprep.subr.bf16.mxu0 0
    %90 = vmatpush2.bf16.msra.mxu0 0
    %91 = vmatprep.subr.bf16.mxu0 0
    %92 = vmatpush2.bf16.msra.mxu0 0
    %93 = vmatprep.subr.bf16.mxu0 0
    %94 = vmatpush2.bf16.msra.mxu0 0
    %95 = vmatprep.mubr.bf16.mxu0 0
    %96 = vmatmul.mubr.bf16.gmra.mxu0 %v58
    %v97 = vpop.f32.mrf.mxu0
    %v98 = vadd.f32 %v30, %v97
    %v99 = vpop.f32.mrf.mxu0
    %v100 = vpop.f32.mrf.mxu0
    %v101 = vadd.f32 %v31, %v100
    %v102 = vpop.f32.mrf.mxu0
    %103 = vmatprep.mubr.bf16.mxu0 0
    %104 = vmatmul.mubr.bf16.gmra.mxu0 %v61
    %v105 = vpop.f32.mrf.mxu0
    %v106 = vadd.f32 %v32, %v105
    %v107 = vpop.f32.mrf.mxu0
    %v108 = vpop.f32.mrf.mxu0
    %v109 = vadd.f32 %v33, %v108
    %v110 = vpop.f32.mrf.mxu0
    %111 = vdwg.mxu0
    %v112 = vsel %vm56, %v98, 0.0
    %113 = vadd.xlane.f32.xlu0 %v112
    %v114 = vpop.xlane.xlu0 %113
    %v115 = vsel %vm56, %v101, 0.0
    %116 = vadd.xlane.f32.xlu0 %v115
    %v117 = vpop.xlane.xlu0 %116
    %v118 = vsel %vm56, %v106, 0.0
    %119 = vadd.xlane.f32.xlu0 %v118
    %v120 = vpop.xlane.xlu0 %119
    %v121 = vsel %vm56, %v109, 0.0
    %122 = vadd.xlane.f32.xlu0 %v121
    %v123 = vpop.xlane.xlu0 %122
    %v124 = vrcp.pop 32.0
    %v125 = vmul.f32 %v114, %v124
    %v126 = vmul.f32 %v117, %v124
    %v127 = vmul.f32 %v120, %v124
    %v128 = vmul.f32 %v123, %v124
    %v129 = vsub.f32 %v98, %v125
    %v130 = vsub.f32 %v101, %v126
    %v131 = vsub.f32 %v106, %v127
    %v132 = vsub.f32 %v109, %v128
    %v133 = vmul.f32 %v129, %v129
    %v134 = vmul.f32 %v130, %v130
    %v135 = vmul.f32 %v131, %v131
    %v136 = vmul.f32 %v132, %v132
    %v137 = vsel %vm56, %v133, 0.0
    %138 = vadd.xlane.f32.xlu0 %v137
    %v139 = vpop.xlane.xlu0 %138
    %v140 = vsel %vm56, %v134, 0.0
    %141 = vadd.xlane.f32.xlu0 %v140
    %v142 = vpop.xlane.xlu0 %141
    %v143 = vsel %vm56, %v135, 0.0
    %144 = vadd.xlane.f32.xlu0 %v143
    %v145 = vpop.xlane.xlu0 %144
    %v146 = vsel %vm56, %v136, 0.0
    %147 = vadd.xlane.f32.xlu0 %v146
    %v148 = vpop.xlane.xlu0 %147
    %v149 = vmul.f32 %v139, %v124
    %v150 = vmul.f32 %v142, %v124
    %v151 = vmul.f32 %v145, %v124
    %v152 = vmul.f32 %v148, %v124
    %v153 = vadd.f32 %v149, 1e-05
    %v154 = vadd.f32 %v150, 1e-05
    %v155 = vadd.f32 %v151, 1e-05
    %v156 = vadd.f32 %v152, 1e-05
    %v157 = vrsqrt.pop %v153
    %v158 = vrsqrt.pop %v154
    %v159 = vrsqrt.pop %v155
    %v160 = vrsqrt.pop %v156
    %v161 = vmul.f32 %v129, %v157
    %v162 = vmul.f32 %v130, %v158
    %v163 = vmul.f32 %v131, %v159
    %v164 = vmul.f32 %v132, %v160
    %v165 = vld [vmem:[%s3] sm:$0x1]
    %v167 = vlaneseq
    %v168 = vshrl.u32 %v167, 7
    %v169 = vsub.s32 0, %v168
    %v170 = vrot.slane %v165, %v169
    %v172 = vmul.f32 %v161, %v170
    %v173 = vmul.f32 %v162, %v170
    %v174 = vmul.f32 %v163, %v170
    %v175 = vmul.f32 %v164, %v170
    %v176 = vld [vmem:[%s4] sm:$0x1]
    %v178 = vlaneseq
    %v179 = vshrl.u32 %v178, 7
    %v180 = vsub.s32 0, %v179
    %v181 = vrot.slane %v176, %v180
    %v183 = vadd.f32 %v172, %v181
    %v184 = vadd.f32 %v173, %v181
    %v185 = vadd.f32 %v174, %v181
    %v186 = vadd.f32 %v175, %v181
    %187 = vst.msk [vmem:[#allocation2] sm:$0xff] %vm56, %v183
    %188 = vst.msk [vmem:[#allocation2 + $0x8] sm:$0xff] %vm56, %v184
    %189 = vst.msk [vmem:[#allocation2 + $0x10] sm:$0xff] %vm56, %v185
    %190 = vst.msk [vmem:[#allocation2 + $0x18] sm:$0xff] %vm56, %v186
    // Predicated region
    $region22: #{prob_attention_forward.11} parent=1 // pred_check
      _
    $region23: #{prob_attention_forward.11} parent=1 // pred_check_branch
      %192 = sbr.rel (0) target = $region25
    $region24: #{prob_attention_forward.11} parent=1 // pred_region
      %s194 = ssub.s32 512, 512
      %195 = vsyncadd [#allocation3], %s194
      %s196 = sshll.u32 [#allocation2], 4
      %s197 = int_to_ptr.vmem [resolvable:$true] %s196
      %202 = dma.vmem_to_hbm [thread:$0]  %s197, 512, %s5, [#allocation3], 128, 128, 8
    $region25: #{prob_attention_forward.11} parent=1 // pred_fallthru
      _
    // Predicated region
    $region26: #{prob_attention_forward.11} parent=1 // pred_check
      _
    $region27: #{prob_attention_forward.11} parent=1 // pred_check_branch
      %204 = sbr.rel (0) target = $region29
    $region28: #{prob_attention_forward.11} parent=1 // pred_region
      %205 = dma.done [#allocation3], 512
    $region29: #{prob_attention_forward.11} parent=1 // pred_fallthru
      _
    %206 = vsyncpa [#allocation3], 1

// kernel: prob_attention_forward.10
$region0: #{prob_attention_forward.10}
  #allocation0 [shape = 'u32[]', space=smem, size = 0x4, offset = 0x4, fixed_abs, tag = 'smem constant byte address 0x4 - core index']
  #allocation1 [shape = 'u32[144,128]{1,0:T(1,128)}', space=vmem, size = 0x12000, scoped, tag = 'internal scratch']
  %s0 = inlined_call_operand.vmem [shape: bf16[2,8,32], index: 0, kind: input, shape index: {}]
  %s1 = inlined_call_operand.vmem [shape: bf16[2,16,32], index: 1, kind: input, shape index: {}]
  %s2 = inlined_call_operand.vmem [shape: bf16[2,16,32], index: 2, kind: input, shape index: {}]
  %s3 = inlined_call_operand.vmem [shape: s32[2,4,8], index: 3, kind: input, shape index: {}]
  %s4 = inlined_call_operand.vmem [shape: bf16[2,16,32], index: 4, kind: output, shape index: {}]
  %s5 = sld [smem:[#allocation0]]
  $region49: #{prob_attention_forward.10} parent=0
    _
  %s7 = ssub.s32 1, %s5
  %s8 = scalar_select 0, %s7, %s5
  loop: start=0, step=1, limit=4
  $region2: #{prob_attention_forward.10} parent=0 // loop_pre_header
    _
  $region3: #{prob_attention_forward.10} parent=0 // loop_header
    %s10 = sphi 0, %s14
    %p11 = scmp.ge.s32.totalorder %s10, 4
    %s20 = sphi 0, %s22
    %s23 = sphi 0, %s20
    %s24 = sphi 0, %s23
    %s40 = sphi 0, %s24
    %s46 = sphi 0, %s48
    %s49 = sphi 0, %s46
    %s50 = sphi 0, %s49
    %s66 = sphi 0, %s50
    %s72 = sphi 0, %s74
    %s75 = sphi 0, %s72
    %s76 = sphi 0, %s75
    %s92 = sphi 0, %s76
    %s98 = sphi 0, %s100
    %s101 = sphi 0, %s98
    %s102 = sphi 0, %s101
    %s118 = sphi 0, %s102
    %s124 = sphi 0, %s126
    %s127 = sphi 0, %s124
    %s128 = sphi 0, %s127
    %s144 = sphi 0, %s128
  $region4: #{prob_attention_forward.10} parent=0 // loop_header_branch
    %13 = sbr.rel (%p11) target = $region8
  $region5: #{prob_attention_forward.10} parent=0 // loop_body
    %s15 = ssub.s32 %s10, 1
    %s16 = ssub.s32 %s10, 2
    %s17 = sadd.s32 %s10, 1
    %s18 = ssub.s32 %s10, %s17
    %p19 = scmp.eq.s32.totalorder %s18, 0
    %s21 = sadd.s32 %s20, 1
    %s22 = scalar_select %p19, %s20, %s21
    %p25 = pneg %p19
    %p26 = scmp.eq.s32.totalorder %s10, 1
    %p27 = por %p25, %p26
    %p28 = scmp.ne.s32.totalorder %s20, %s23
    %p29 = scmp.eq.s32.totalorder %s10, 0
    %p30 = por %p28, %p29
    %p31 = scmp.ne.s32.totalorder %s20, %s23
    %p32 = scmp.eq.s32.totalorder %s15, 1
    %p33 = por %p31, %p32
    %p34 = scmp.ne.s32.totalorder %s23, %s24
    %p35 = scmp.eq.s32.totalorder %s15, 0
    %p36 = por %p34, %p35
    %p37 = scmp.ne.s32.totalorder %s23, %s24
    %p38 = scmp.eq.s32.totalorder %s16, 1
    %p39 = por %p37, %p38
    %p41 = scmp.ne.s32.totalorder %s24, %s40
    %p42 = scmp.eq.s32.totalorder %s16, 0
    %p43 = por %p41, %p42
    %s44 = ssub.s32 %s10, %s17
    %p45 = scmp.eq.s32.totalorder %s44, 0
    %s47 = sadd.s32 %s46, 1
    %s48 = scalar_select %p45, %s46, %s47
    %p51 = pneg %p45
    %p52 = scmp.eq.s32.totalorder %s10, 1
    %p53 = por %p51, %p52
    %p54 = scmp.ne.s32.totalorder %s46, %s49
    %p55 = scmp.eq.s32.totalorder %s10, 0
    %p56 = por %p54, %p55
    %p57 = scmp.ne.s32.totalorder %s46, %s49
    %p58 = scmp.eq.s32.totalorder %s15, 1
    %p59 = por %p57, %p58
    %p60 = scmp.ne.s32.totalorder %s49, %s50
    %p61 = scmp.eq.s32.totalorder %s15, 0
    %p62 = por %p60, %p61
    %p63 = scmp.ne.s32.totalorder %s49, %s50
    %p64 = scmp.eq.s32.totalorder %s16, 1
    %p65 = por %p63, %p64
    %p67 = scmp.ne.s32.totalorder %s50, %s66
    %p68 = scmp.eq.s32.totalorder %s16, 0
    %p69 = por %p67, %p68
    %s70 = ssub.s32 %s10, %s17
    %p71 = scmp.eq.s32.totalorder %s70, 0
    %s73 = sadd.s32 %s72, 1
    %s74 = scalar_select %p71, %s72, %s73
    %p77 = pneg %p71
    %p78 = scmp.eq.s32.totalorder %s10, 1
    %p79 = por %p77, %p78
    %p80 = scmp.ne.s32.totalorder %s72, %s75
    %p81 = scmp.eq.s32.totalorder %s10, 0
    %p82 = por %p80, %p81
    %p83 = scmp.ne.s32.totalorder %s72, %s75
    %p84 = scmp.eq.s32.totalorder %s15, 1
    %p85 = por %p83, %p84
    %p86 = scmp.ne.s32.totalorder %s75, %s76
    %p87 = scmp.eq.s32.totalorder %s15, 0
    %p88 = por %p86, %p87
    %p89 = scmp.ne.s32.totalorder %s75, %s76
    %p90 = scmp.eq.s32.totalorder %s16, 1
    %p91 = por %p89, %p90
    %p93 = scmp.ne.s32.totalorder %s76, %s92
    %p94 = scmp.eq.s32.totalorder %s16, 0
    %p95 = por %p93, %p94
    %s96 = ssub.s32 %s10, %s17
    %p97 = scmp.eq.s32.totalorder %s96, 0
    %s99 = sadd.s32 %s98, 1
    %s100 = scalar_select %p97, %s98, %s99
    %p103 = pneg %p97
    %p104 = scmp.eq.s32.totalorder %s10, 1
    %p105 = por %p103, %p104
    %p106 = scmp.ne.s32.totalorder %s98, %s101
    %p107 = scmp.eq.s32.totalorder %s10, 0
    %p108 = por %p106, %p107
    %p109 = scmp.ne.s32.totalorder %s98, %s101
    %p110 = scmp.eq.s32.totalorder %s15, 1
    %p111 = por %p109, %p110
    %p112 = scmp.ne.s32.totalorder %s101, %s102
    %p113 = scmp.eq.s32.totalorder %s15, 0
    %p114 = por %p112, %p113
    %p115 = scmp.ne.s32.totalorder %s101, %s102
    %p116 = scmp.eq.s32.totalorder %s16, 1
    %p117 = por %p115, %p116
    %p119 = scmp.ne.s32.totalorder %s102, %s118
    %p120 = scmp.eq.s32.totalorder %s16, 0
    %p121 = por %p119, %p120
    %s122 = ssub.s32 %s10, %s17
    %p123 = scmp.eq.s32.totalorder %s122, 0
    %s125 = sadd.s32 %s124, 1
    %s126 = scalar_select %p123, %s124, %s125
    %p129 = pneg %p123
    %p130 = scmp.eq.s32.totalorder %s10, 1
    %p131 = por %p129, %p130
    %p132 = scmp.ne.s32.totalorder %s124, %s127
    %p133 = scmp.eq.s32.totalorder %s10, 0
    %p134 = por %p132, %p133
    %p135 = scmp.ne.s32.totalorder %s124, %s127
    %p136 = scmp.eq.s32.totalorder %s15, 1
    %p137 = por %p135, %p136
    %p138 = scmp.ne.s32.totalorder %s127, %s128
    %p139 = scmp.eq.s32.totalorder %s15, 0
    %p140 = por %p138, %p139
    %p141 = scmp.ne.s32.totalorder %s127, %s128
    %p142 = scmp.eq.s32.totalorder %s16, 1
    %p143 = por %p141, %p142
    %p145 = scmp.ne.s32.totalorder %s128, %s144
    %p146 = scmp.eq.s32.totalorder %s16, 0
    %p147 = por %p145, %p146
    %p148 = scmp.le.s32.totalorder 1, %s10
    %p149 = scmp.lt.s32.totalorder %s10, 3
    %p150 = pnand %p148, %p149
    %p151 = pneg %p150
    // Predicated region
    $region9: #{prob_attention_forward.10} parent=5 // pred_check
      _
    $region10: #{prob_attention_forward.10} parent=5 // pred_check_branch
      %153 = sbr.rel (%p150) target = $region12
    $region11: #{prob_attention_forward.10} parent=5 // pred_region
      %s154 = ssub.s32 %s10, 1
    $region12: #{prob_attention_forward.10} parent=5 // pred_fallthru
      _
    %p155 = scmp.lt.s32.totalorder %s10, 2
    // Predicated region
    $region13: #{prob_attention_forward.10} parent=5 // pred_check
      %p156 = pneg %p155
    $region14: #{prob_attention_forward.10} parent=5 // pred_check_branch
      %158 = sbr.rel (%p156) target = $region16
    $region15: #{prob_attention_forward.10} parent=5 // pred_region
      // Predicated region
      $region17: #{prob_attention_forward.10} parent=15 // pred_check
        %p159 = pneg %p30
      $region18: #{prob_attention_forward.10} parent=15 // pred_check_branch
        %161 = sbr.rel (%p159) target = $region20
      $region19: #{prob_attention_forward.10} parent=15 // pred_region
        %p162 = scmp.lt.s32.totalorder %s10, 1
        %s163 = scalar_select %p162, %s10, 1
        %s164 = smul.addr %s163, 4
        %s165 = scalar_lea.vmem %s0, %s164
      $region20: #{prob_attention_forward.10} parent=15 // pred_fallthru
        _
      // Predicated region
      $region21: #{prob_attention_forward.10} parent=15 // pred_check
        %p166 = pneg %p56
      $region22: #{prob_attention_forward.10} parent=15 // pred_check_branch
        %168 = sbr.rel (%p166) target = $region24
      $region23: #{prob_attention_forward.10} parent=15 // pred_region
        %p169 = scmp.lt.s32.totalorder %s10, 1
        %s170 = scalar_select %p169, %s10, 1
        %s171 = smul.addr %s170, 2
        %s172 = smul.addr %s171, 4
        %s173 = scalar_lea.vmem %s1, %s172
      $region24: #{prob_attention_forward.10} parent=15 // pred_fallthru
        _
      // Predicated region
      $region25: #{prob_attention_forward.10} parent=15 // pred_check
        %p174 = pneg %p82
      $region26: #{prob_attention_forward.10} parent=15 // pred_check_branch
        %176 = sbr.rel (%p174) target = $region28
      $region27: #{prob_attention_forward.10} parent=15 // pred_region
        %p177 = scmp.lt.s32.totalorder %s10, 1
        %s178 = scalar_select %p177, %s10, 1
        %s179 = smul.addr %s178, 2
        %s180 = smul.addr %s179, 4
        %s181 = scalar_lea.vmem %s2, %s180
      $region28: #{prob_attention_forward.10} parent=15 // pred_fallthru
        _
      // Predicated region
      $region29: #{prob_attention_forward.10} parent=15 // pred_check
        %p182 = pneg %p108
      $region30: #{prob_attention_forward.10} parent=15 // pred_check_branch
        %184 = sbr.rel (%p182) target = $region32
      $region31: #{prob_attention_forward.10} parent=15 // pred_region
        %p185 = scmp.lt.s32.totalorder %s10, 1
        %s186 = scalar_select %p185, %s10, 1
        %s187 = smul.addr %s186, 4
        %s188 = scalar_lea.vmem %s3, %s187
      $region32: #{prob_attention_forward.10} parent=15 // pred_fallthru
        _
    $region16: #{prob_attention_forward.10} parent=5 // pred_fallthru
      _
    %p189 = scmp.le.s32.totalorder 1, %s10
    %p190 = scmp.lt.s32.totalorder %s10, 3
    %p191 = pnand %p189, %p190
    %p192 = pneg %p191
    // Predicated region
    $region33: #{prob_attention_forward.10} parent=5 // pred_check
      _
    $region34: #{prob_attention_forward.10} parent=5 // pred_check_branch
      %194 = sbr.rel (%p191) target = $region36
    $region35: #{prob_attention_forward.10} parent=5 // pred_region
      %s195 = ssub.s32 %s10, 1
      %p196 = scmp.lt.s32.totalorder %s15, 1
      %s197 = scalar_select %p196, %s15, 1
      %s198 = smul.addr %s197, 4
      %s199 = scalar_lea.vmem %s0, %s198
      %p200 = pneg %p36
      %p201 = pneg %p33
      %p202 = scmp.lt.s32.totalorder %s15, 1
      %s203 = scalar_select %p202, %s15, 1
      %s204 = smul.addr %s203, 2
      %s205 = smul.addr %s204, 4
      %s206 = scalar_lea.vmem %s1, %s205
      %p207 = pneg %p62
      %p208 = pneg %p59
      %p209 = scmp.lt.s32.totalorder %s15, 1
      %s210 = scalar_select %p209, %s15, 1
      %s211 = smul.addr %s210, 2
      %s212 = smul.addr %s211, 4
      %s213 = scalar_lea.vmem %s2, %s212
      %p214 = pneg %p88
      %p215 = pneg %p85
      %p216 = scmp.lt.s32.totalorder %s15, 1
      %s217 = scalar_select %p216, %s15, 1
      %s218 = smul.addr %s217, 4
      %s219 = scalar_lea.vmem %s3, %s218
      %p220 = pneg %p114
      %p221 = pneg %p111
      %p222 = pneg %p140
      %p223 = pneg %p137
      %p224 = scmp.lt.s32.totalorder %s15, 1
      %s225 = scalar_select %p224, %s15, 1
      %s226 = smul.addr %s225, 2
      %s227 = smul.addr %s226, 4
      %s228 = scalar_lea.vmem %s4, %s227
      %p229 = scmp.lt.s32.totalorder %s15, 1
      %s230 = scalar_select %p229, %s15, 1
      %s231 = smul.addr %s230, 4
      %s232 = scalar_lea.vmem %s0, %s231
      %p233 = scmp.lt.s32.totalorder %s15, 1
      %s234 = scalar_select %p233, %s15, 1
      %s235 = smul.addr %s234, 2
      %s236 = smul.addr %s235, 4
      %s237 = scalar_lea.vmem %s1, %s236
      %p238 = scmp.lt.s32.totalorder %s15, 1
      %s239 = scalar_select %p238, %s15, 1
      %s240 = smul.addr %s239, 2
      %s241 = smul.addr %s240, 4
      %s242 = scalar_lea.vmem %s2, %s241
      %p243 = scmp.lt.s32.totalorder %s15, 1
      %s244 = scalar_select %p243, %s15, 1
      %s245 = smul.addr %s244, 4
      %s246 = scalar_lea.vmem %s3, %s245
      %p247 = scmp.lt.s32.totalorder %s15, 1
      %s248 = scalar_select %p247, %s15, 1
      %s249 = smul.addr %s248, 2
      %s250 = smul.addr %s249, 4
      %s251 = scalar_lea.vmem %s4, %s250
      %v253 = vld [vmem:[%s232] sm:$0xf]
      %v254 = vld [vmem:[%s237] sm:$0xf]
      %v255 = vld [vmem:[%s237 + $0x4] sm:$0xf]
      %v256 = vld [vmem:[%s242] sm:$0xf]
      %v257 = vld [vmem:[%s242 + $0x4] sm:$0xf]
      %v258 = vld [vmem:[%s246] sm:$0xf]
      %v261 = vunpack.c.l.b16 %v254
      %v262 = vunpack.c.l.b16 %v255
      %v263 = vpack.c.b16 %v262, %v261
      %vm264 = vcmask 64512
      %v266 = vsel %vm264, %v253, 0
      %v269 = vsel %vm264, %v263, 0
      %271 = vmatprep.subr.bf16.mxu0 0
      %272 = vmatpush1.bf16.xpose.msra.mxu0 0
      %273 = vmatprep.subr.bf16.mxu0 0
      %274 = vmatpush1.bf16.xpose.msra.mxu0 0
      %275 = vmatprep.subr.bf16.mxu0 0
      %276 = vmatpush1.bf16.xpose.msra.mxu0 0
      %277 = vmatprep.subr.bf16.mxu0 0
      %278 = vmatpush1.bf16.xpose.msra.mxu0 0
      %279 = vmatprep.subr.bf16.mxu0 0
      %280 = vmatpush1.bf16.xpose.msra.mxu0 0
      %281 = vmatprep.subr.bf16.mxu0 0
      %282 = vmatpush1.bf16.xpose.msra.mxu0 0
      %283 = vmatprep.subr.bf16.mxu0 0
      %284 = vmatpush1.bf16.xpose.msra.mxu0 0
      %285 = vmatprep.subr.bf16.mxu0 0
      %286 = vmatpush1.bf16.xpose.msra.mxu0 %v269
      %287 = vmatprep.subr.bf16.mxu0 0
      %288 = vmatpush2.bf16.xpose.msra.mxu0 0
      %289 = vmatprep.subr.bf16.mxu0 0
      %290 = vmatpush2.bf16.xpose.msra.mxu0 0
      %291 = vmatprep.subr.bf16.mxu0 0
      %292 = vmatpush2.bf16.xpose.msra.mxu0 0
      %293 = vmatprep.subr.bf16.mxu0 0
      %294 = vmatpush2.bf16.xpose.msra.mxu0 0
      %295 = vmatprep.subr.bf16.mxu0 0
      %296 = vmatpush2.bf16.xpose.msra.mxu0 0
      %297 = vmatprep.subr.bf16.mxu0 0
      %298 = vmatpush2.bf16.xpose.msra.mxu0 0
      %299 = vmatprep.subr.bf16.mxu0 0
      %300 = vmatpush2.bf16.xpose.msra.mxu0 0
      %301 = vmatprep.subr.bf16.mxu0 0
      %302 = vmatpush2.bf16.xpose.msra.mxu0 0
      %303 = vmatprep.mubr.bf16.mxu0 0
      %304 = vmatmul.mubr.bf16.gmra.mxu0 %v266
      %v305 = vpop.f32.mrf.mxu0
      %v306 = vadd.f32 0.0, %v305
      %v307 = vpop.f32.mrf.mxu0
      %v308 = vpop.f32.mrf.mxu0
      %v309 = vpop.f32.mrf.mxu0
      %310 = vdwg.mxu0
      %v311 = vmul.f32 %v306, 0.35355338
      %vm312 = vcmask 130048
      %v313 = vsel %vm312, %v311, -inf
      %314 = vmax.xlane.f32.xlu0 %v313
      %v315 = vpop.xlane.xlu0 %314
      %v316 = vsub.f32 %v311, %v315
      %v317 = vmul.f32 %v316, 1.442695
      %v318 = vpow.pop %v317
      %v319 = vsel %vm312, %v318, 0.0
      %320 = vadd.xlane.f32.xlu0 %v319
      %v321 = vpop.xlane.xlu0 %320
      %v322 = vrcp.pop %v321
      %v323 = vmul.f32 %v318, %v322
      %v324 = vpack.c.bf16 %v323, %v323
      %v327 = vunpack.c.l.b16 %v256
      %v328 = vunpack.c.l.b16 %v257
      %v329 = vpack.c.b16 %v328, %v327
      %v332 = vsel %vm312, %v324, 0
      %334 = vmatprep.subr.bf16.mxu0 0
      %335 = vmatpush1.bf16.msra.mxu0 0
      %336 = vmatprep.subr.bf16.mxu0 0
      %337 = vmatpush1.bf16.msra.mxu0 0
      %338 = vmatprep.subr.bf16.mxu0 0
      %339 = vmatpush1.bf16.msra.mxu0 0
      %340 = vmatprep.subr.bf16.mxu0 0
      %341 = vmatpush1.bf16.msra.mxu0 0
      %342 = vmatprep.subr.bf16.mxu0 0
      %343 = vmatpush1.bf16.msra.mxu0 0
      %344 = vmatprep.subr.bf16.mxu0 0
      %345 = vmatpush1.bf16.msra.mxu0 0
      %346 = vmatprep.subr.bf16.mxu0 0
      %347 = vmatpush1.bf16.msra.mxu0 0
      %348 = vmatprep.subr.bf16.mxu0 0
      %349 = vmatpush1.bf16.msra.mxu0 %v329
      %350 = vmatprep.subr.bf16.mxu0 0
      %351 = vmatpush2.bf16.msra.mxu0 0
      %352 = vmatprep.subr.bf16.mxu0 0
      %353 = vmatpush2.bf16.msra.mxu0 0
      %354 = vmatprep.subr.bf16.mxu0 0
      %355 = vmatpush2.bf16.msra.mxu0 0
      %356 = vmatprep.subr.bf16.mxu0 0
      %357 = vmatpush2.bf16.msra.mxu0 0
      %358 = vmatprep.subr.bf16.mxu0 0
      %359 = vmatpush2.bf16.msra.mxu0 0
      %360 = vmatprep.subr.bf16.mxu0 0
      %361 = vmatpush2.bf16.msra.mxu0 0
      %362 = vmatprep.subr.bf16.mxu0 0
      %363 = vmatpush2.bf16.msra.mxu0 0
      %364 = vmatprep.subr.bf16.mxu0 0
      %365 = vmatpush2.bf16.msra.mxu0 0
      %366 = vmatprep.mubr.bf16.mxu0 0
      %367 = vmatmul.mubr.bf16.gmra.mxu0 %v332
      %v368 = vpop.f32.mrf.mxu0
      %v369 = vadd.f32 0.0, %v368
      %v370 = vpop.f32.mrf.mxu0
      %v371 = vpop.f32.mrf.mxu0
      %v372 = vpop.f32.mrf.mxu0
      %373 = vdwg.mxu0
      %v374 = vunpack.c.l.bf16 %v256
      %v375 = vunpack.c.l.bf16 %v257
      %v376 = vsel %vm264, %v374, 0.0
      %v377 = vsel %vm264, %v375, 0.0
      %v378 = vadd.f32 %v376, %v377
      %v379 = vrot.slane %v378, 4
      %v380 = vadd.f32 %v378, %v379
      %v381 = vrot.slane %v380, 2
      %v382 = vadd.f32 %v380, %v381
      %v383 = vrot.slane %v382, 1
      %v384 = vadd.f32 %v382, %v383
      %v385 = vrcp.pop 16.0
      %v386 = vmul.f32 %v384, %v385
      %v387 = vlaneseq
      %v388 = vshrl.u32 %v387, 7
      %v389 = vadd.s32 %v388, 8
      %v390 = vlaneseq
      %v391 = vshrl.u32 %v390, 7
      %v392 = vsub.s32 0, %v391
      %v393 = vrot.slane %v258, %v392
      %vm394 = vcmp.eq.s32.totalorder %v388, %v393
      %vm395 = vcmp.eq.s32.totalorder %v389, %v393
      %v396 = vsel %vm394, 1, 0
      %v397 = vsel %vm395, 1, 0
      %v398 = vcvt.s32.f32 %v396
      %v399 = vcvt.s32.f32 %v397
      %v400 = vsub.f32 %v369, %v386
      %v402 = vsel %vm264, %v398, 0
      %v405 = vsel %vm264, %v399, 0
      %407 = vmatprep.subr.mxu0 0.0
      %408 = vmatpush1.msra.mxu0 0.0
      %409 = vmatprep.subr.mxu0 0.0
      %410 = vmatpush1.msra.mxu0 0.0
      %411 = vmatprep.subr.mxu0 0.0
      %412 = vmatpush1.msra.mxu0 0.0
      %413 = vmatprep.subr.mxu0 0.0
      %414 = vmatpush1.msra.mxu0 0.0
      %415 = vmatprep.subr.mxu0 0.0
      %416 = vmatpush1.msra.mxu0 0.0
      %417 = vmatprep.subr.mxu0 0.0
      %418 = vmatpush1.msra.mxu0 0.0
      %419 = vmatprep.subr.mxu0 0.0
      %420 = vmatpush1.msra.mxu0 0.0
      %421 = vmatprep.subr.mxu0 0.0
      %422 = vmatpush1.msra.mxu0 0.0
      %423 = vmatprep.subr.mxu0 0.0
      %424 = vmatpush1.msra.mxu0 0.0
      %425 = vmatprep.subr.mxu0 0.0
      %426 = vmatpush1.msra.mxu0 0.0
      %427 = vmatprep.subr.mxu0 0.0
      %428 = vmatpush1.msra.mxu0 0.0
      %429 = vmatprep.subr.mxu0 0.0
      %430 = vmatpush1.msra.mxu0 0.0
      %431 = vmatprep.subr.mxu0 0.0
      %432 = vmatpush1.msra.mxu0 0.0
      %433 = vmatprep.subr.mxu0 0.0
      %434 = vmatpush1.msra.mxu0 0.0
      %435 = vmatprep.subr.mxu0 0.0
      %436 = vmatpush1.msra.mxu0 0.0
      %437 = vmatprep.subr.mxu0 0.0
      %438 = vmatpush1.msra.mxu0 %v400
      %439 = vmatprep.subr.mxu0 0.0
      %440 = vmatpush2.msra.mxu0 0.0
      %441 = vmatprep.subr.mxu0 0.0
      %442 = vmatpush2.msra.mxu0 0.0
      %443 = vmatprep.subr.mxu0 0.0
      %444 = vmatpush2.msra.mxu0 0.0
      %445 = vmatprep.subr.mxu0 0.0
      %446 = vmatpush2.msra.mxu0 0.0
      %447 = vmatprep.subr.mxu0 0.0
      %448 = vmatpush2.msra.mxu0 0.0
      %449 = vmatprep.subr.mxu0 0.0
      %450 = vmatpush2.msra.mxu0 0.0
      %451 = vmatprep.subr.mxu0 0.0
      %452 = vmatpush2.msra.mxu0 0.0
      %453 = vmatprep.subr.mxu0 0.0
      %454 = vmatpush2.msra.mxu0 0.0
      %455 = vmatprep.subr.mxu0 0.0
      %456 = vmatpush2.msra.mxu0 0.0
      %457 = vmatprep.subr.mxu0 0.0
      %458 = vmatpush2.msra.mxu0 0.0
      %459 = vmatprep.subr.mxu0 0.0
      %460 = vmatpush2.msra.mxu0 0.0
      %461 = vmatprep.subr.mxu0 0.0
      %462 = vmatpush2.msra.mxu0 0.0
      %463 = vmatprep.subr.mxu0 0.0
      %464 = vmatpush2.msra.mxu0 0.0
      %465 = vmatprep.subr.mxu0 0.0
      %466 = vmatpush2.msra.mxu0 0.0
      %467 = vmatprep.subr.mxu0 0.0
      %468 = vmatpush2.msra.mxu0 0.0
      %469 = vmatprep.subr.mxu0 0.0
      %470 = vmatpush2.msra.mxu0 0.0
      %471 = vmatprep.mubr.f32.mxu0 0.0
      %472 = vmatmul.mubr.f32.gmra.mxu0 %v402
      %v473 = vpop.f32.mrf.mxu0
      %v474 = vadd.f32 0.0, %v473
      %v475 = vpop.f32.mrf.mxu0
      %476 = vmatprep.mubr.f32.mxu0 0.0
      %477 = vmatmul.mubr.f32.gmra.mxu0 %v405
      %v478 = vpop.f32.mrf.mxu0
      %v479 = vadd.f32 0.0, %v478
      %v480 = vpop.f32.mrf.mxu0
      %481 = vdwg.mxu0
      %v482 = vadd.f32 %v386, %v474
      %v483 = vadd.f32 %v386, %v479
      %v485 = vunpack.c.l.b16 %v253
      %v486 = vpack.c.b16 %v485, %v485
      %487 = vrot.lane.b32.xlu0 %v486, 120
      %v488 = vpop.permute.xlu0 %487
      %489 = vrot.lane.b32.xlu0 %v263, 120
      %v490 = vpop.permute.xlu0 %489
      %v492 = vsel %vm264, %v488, 0
      %v495 = vsel %vm264, %v490, 0
      %497 = vmatprep.subr.bf16.mxu0 0
      %498 = vmatpush1.bf16.xpose.msra.mxu0 0
      %499 = vmatprep.subr.bf16.mxu0 0
      %500 = vmatpush1.bf16.xpose.msra.mxu0 0
      %501 = vmatprep.subr.bf16.mxu0 0
      %502 = vmatpush1.bf16.xpose.msra.mxu0 0
      %503 = vmatprep.subr.bf16.mxu0 0
      %504 = vmatpush1.bf16.xpose.msra.mxu0 0
      %505 = vmatprep.subr.bf16.mxu0 0
      %506 = vmatpush1.bf16.xpose.msra.mxu0 0
      %507 = vmatprep.subr.bf16.mxu0 0
      %508 = vmatpush1.bf16.xpose.msra.mxu0 0
      %509 = vmatprep.subr.bf16.mxu0 0
      %510 = vmatpush1.bf16.xpose.msra.mxu0 0
      %511 = vmatprep.subr.bf16.mxu0 0
      %512 = vmatpush1.bf16.xpose.msra.mxu0 %v495
      %513 = vmatprep.subr.bf16.mxu0 0
      %514 = vmatpush2.bf16.xpose.msra.mxu0 0
      %515 = vmatprep.subr.bf16.mxu0 0
      %516 = vmatpush2.bf16.xpose.msra.mxu0 0
      %517 = vmatprep.subr.bf16.mxu0 0
      %518 = vmatpush2.bf16.xpose.msra.mxu0 0
      %519 = vmatprep.subr.bf16.mxu0 0
      %520 = vmatpush2.bf16.xpose.msra.mxu0 0
      %521 = vmatprep.subr.bf16.mxu0 0
      %522 = vmatpush2.bf16.xpose.msra.mxu0 0
      %523 = vmatprep.subr.bf16.mxu0 0
      %524 = vmatpush2.bf16.xpose.msra.mxu0 0
      %525 = vmatprep.subr.bf16.mxu0 0
      %526 = vmatpush2.bf16.xpose.msra.mxu0 0
      %527 = vmatprep.subr.bf16.mxu0 0
      %528 = vmatpush2.bf16.xpose.msra.mxu0 0
      %529 = vmatprep.mubr.bf16.mxu0 0
      %530 = vmatmul.mubr.bf16.gmra.mxu0 %v492
      %v531 = vpop.f32.mrf.mxu0
      %v532 = vadd.f32 0.0, %v531
      %v533 = vpop.f32.mrf.mxu0
      %v534 = vpop.f32.mrf.mxu0
      %v535 = vpop.f32.mrf.mxu0
      %536 = vdwg.mxu0
      %v537 = vmul.f32 %v532, 0.35355338
      %v538 = vsel %vm312, %v537, -inf
      %539 = vmax.xlane.f32.xlu0 %v538
      %v540 = vpop.xlane.xlu0 %539
      %v541 = vsub.f32 %v537, %v540
      %v542 = vmul.f32 %v541, 1.442695
      %v543 = vpow.pop %v542
      %v544 = vsel %vm312, %v543, 0.0
      %545 = vadd.xlane.f32.xlu0 %v544
      %v546 = vpop.xlane.xlu0 %545
      %v547 = vrcp.pop %v546
      %v548 = vmul.f32 %v543, %v547
      %v549 = vpack.c.bf16 %v548, %v548
      %550 = vrot.lane.b32.xlu0 %v329, 120
      %v551 = vpop.permute.xlu0 %550
      %v554 = vsel %vm312, %v549, 0
      %556 = vmatprep.subr.bf16.mxu0 0
      %557 = vmatpush1.bf16.msra.mxu0 0
      %558 = vmatprep.subr.bf16.mxu0 0
      %559 = vmatpush1.bf16.msra.mxu0 0
      %560 = vmatprep.subr.bf16.mxu0 0
      %561 = vmatpush1.bf16.msra.mxu0 0
      %562 = vmatprep.subr.bf16.mxu0 0
      %563 = vmatpush1.bf16.msra.mxu0 0
      %564 = vmatprep.subr.bf16.mxu0 0
      %565 = vmatpush1.bf16.msra.mxu0 0
      %566 = vmatprep.subr.bf16.mxu0 0
      %567 = vmatpush1.bf16.msra.mxu0 0
      %568 = vmatprep.subr.bf16.mxu0 0
      %569 = vmatpush1.bf16.msra.mxu0 0
      %570 = vmatprep.subr.bf16.mxu0 0
      %571 = vmatpush1.bf16.msra.mxu0 %v551
      %572 = vmatprep.subr.bf16.mxu0 0
      %573 = vmatpush2.bf16.msra.mxu0 0
      %574 = vmatprep.subr.bf16.mxu0 0
      %575 = vmatpush2.bf16.msra.mxu0 0
      %576 = vmatprep.subr.bf16.mxu0 0
      %577 = vmatpush2.bf16.msra.mxu0 0
      %578 = vmatprep.subr.bf16.mxu0 0
      %579 = vmatpush2.bf16.msra.mxu0 0
      %580 = vmatprep.subr.bf16.mxu0 0
      %581 = vmatpush2.bf16.msra.mxu0 0
      %582 = vmatprep.subr.bf16.mxu0 0
      %583 = vmatpush2.bf16.msra.mxu0 0
      %584 = vmatprep.subr.bf16.mxu0 0
      %585 = vmatpush2.bf16.msra.mxu0 0
      %586 = vmatprep.subr.bf16.mxu0 0
      %587 = vmatpush2.bf16.msra.mxu0 0
      %588 = vmatprep.mubr.bf16.mxu0 0
      %589 = vmatmul.mubr.bf16.gmra.mxu0 %v554
      %v590 = vpop.f32.mrf.mxu0
      %v591 = vadd.f32 0.0, %v590
      %v592 = vpop.f32.mrf.mxu0
      %v593 = vpop.f32.mrf.mxu0
      %v594 = vpop.f32.mrf.mxu0
      %595 = vdwg.mxu0
      %vm596 = vcmask 130112
      %v597 = vsel %vm596, %v374, 0.0
      %v598 = vsel %vm596, %v375, 0.0
      %v599 = vadd.f32 %v597, %v598
      %v600 = vrot.slane %v599, 4
      %v601 = vadd.f32 %v599, %v600
      %v602 = vrot.slane %v601, 2
      %v603 = vadd.f32 %v601, %v602
      %v604 = vrot.slane %v603, 1
      %v605 = vadd.f32 %v603, %v604
      %v606 = vmul.f32 %v605, %v385
      %v607 = vlaneseq
      %v608 = vshrl.u32 %v607, 7
      %v609 = vsub.s32 1, %v608
      %v610 = vrot.slane %v258, %v609
      %vm611 = vcmp.eq.s32.totalorder %v388, %v610
      %vm612 = vcmp.eq.s32.totalorder %v389, %v610
      %v613 = vsel %vm611, 1, 0
      %v614 = vsel %vm612, 1, 0
      %v615 = vcvt.s32.f32 %v613
      %v616 = vcvt.s32.f32 %v614
      %618 = vrot.lane.b32.xlu0 %v606, 120
      %v619 = vpop.permute.xlu0 %618
      %v621 = vsub.f32 %v591, %v619
      %v623 = vsel %vm264, %v615, 0
      %v626 = vsel %vm264, %v616, 0
      %628 = vmatprep.subr.mxu0 0.0
      %629 = vmatpush1.msra.mxu0 0.0
      %630 = vmatprep.subr.mxu0 0.0
      %631 = vmatpush1.msra.mxu0 0.0
      %632 = vmatprep.subr.mxu0 0.0
      %633 = vmatpush1.msra.mxu0 0.0
      %634 = vmatprep.subr.mxu0 0.0
      %635 = vmatpush1.msra.mxu0 0.0
      %636 = vmatprep.subr.mxu0 0.0
      %637 = vmatpush1.msra.mxu0 0.0
      %638 = vmatprep.subr.mxu0 0.0
      %639 = vmatpush1.msra.mxu0 0.0
      %640 = vmatprep.subr.mxu0 0.0
      %641 = vmatpush1.msra.mxu0 0.0
      %642 = vmatprep.subr.mxu0 0.0
      %643 = vmatpush1.msra.mxu0 0.0
      %644 = vmatprep.subr.mxu0 0.0
      %645 = vmatpush1.msra.mxu0 0.0
      %646 = vmatprep.subr.mxu0 0.0
      %647 = vmatpush1.msra.mxu0 0.0
      %648 = vmatprep.subr.mxu0 0.0
      %649 = vmatpush1.msra.mxu0 0.0
      %650 = vmatprep.subr.mxu0 0.0
      %651 = vmatpush1.msra.mxu0 0.0
      %652 = vmatprep.subr.mxu0 0.0
      %653 = vmatpush1.msra.mxu0 0.0
      %654 = vmatprep.subr.mxu0 0.0
      %655 = vmatpush1.msra.mxu0 0.0
      %656 = vmatprep.subr.mxu0 0.0
      %657 = vmatpush1.msra.mxu0 0.0
      %658 = vmatprep.subr.mxu0 0.0
      %659 = vmatpush1.msra.mxu0 %v621
      %660 = vmatprep.subr.mxu0 0.0
      %661 = vmatpush2.msra.mxu0 0.0
      %662 = vmatprep.subr.mxu0 0.0
      %663 = vmatpush2.msra.mxu0 0.0
      %664 = vmatprep.subr.mxu0 0.0
      %665 = vmatpush2.msra.mxu0 0.0
      %666 = vmatprep.subr.mxu0 0.0
      %667 = vmatpush2.msra.mxu0 0.0
      %668 = vmatprep.subr.mxu0 0.0
      %669 = vmatpush2.msra.mxu0 0.0
      %670 = vmatprep.subr.mxu0 0.0
      %671 = vmatpush2.msra.mxu0 0.0
      %672 = vmatprep.subr.mxu0 0.0
      %673 = vmatpush2.msra.mxu0 0.0
      %674 = vmatprep.subr.mxu0 0.0
      %675 = vmatpush2.msra.mxu0 0.0
      %676 = vmatprep.subr.mxu0 0.0
      %677 = vmatpush2.msra.mxu0 0.0
      %678 = vmatprep.subr.mxu0 0.0
      %679 = vmatpush2.msra.mxu0 0.0
      %680 = vmatprep.subr.mxu0 0.0
      %681 = vmatpush2.msra.mxu0 0.0
      %682 = vmatprep.subr.mxu0 0.0
      %683 = vmatpush2.msra.mxu0 0.0
      %684 = vmatprep.subr.mxu0 0.0
      %685 = vmatpush2.msra.mxu0 0.0
      %686 = vmatprep.subr.mxu0 0.0
      %687 = vmatpush2.msra.mxu0 0.0
      %688 = vmatprep.subr.mxu0 0.0
      %689 = vmatpush2.msra.mxu0 0.0
      %690 = vmatprep.subr.mxu0 0.0
      %691 = vmatpush2.msra.mxu0 0.0
      %692 = vmatprep.mubr.f32.mxu0 0.0
      %693 = vmatmul.mubr.f32.gmra.mxu0 %v623
      %v694 = vpop.f32.mrf.mxu0
      %v695 = vadd.f32 0.0, %v694
      %v696 = vpop.f32.mrf.mxu0
      %697 = vmatprep.mubr.f32.mxu0 0.0
      %698 = vmatmul.mubr.f32.gmra.mxu0 %v626
      %v699 = vpop.f32.mrf.mxu0
      %v700 = vadd.f32 0.0, %v699
      %v701 = vpop.f32.mrf.mxu0
      %702 = vdwg.mxu0
      %705 = vrot.lane.b32.xlu0 %v695, 8
      %v706 = vpop.permute.xlu0 %705
      %707 = vrot.lane.b32.xlu0 %v700, 8
      %v708 = vpop.permute.xlu0 %707
      %v711 = vadd.f32 %v606, %v706
      %v712 = vadd.f32 %v606, %v708
      %713 = vrot.lane.b32.xlu0 %v486, 112
      %v714 = vpop.permute.xlu0 %713
      %715 = vrot.lane.b32.xlu0 %v263, 112
      %v716 = vpop.permute.xlu0 %715
      %v718 = vsel %vm264, %v714, 0
      %v721 = vsel %vm264, %v716, 0
      %723 = vmatprep.subr.bf16.mxu0 0
      %724 = vmatpush1.bf16.xpose.msra.mxu0 0
      %725 = vmatprep.subr.bf16.mxu0 0
      %726 = vmatpush1.bf16.xpose.msra.mxu0 0
      %727 = vmatprep.subr.bf16.mxu0 0
      %728 = vmatpush1.bf16.xpose.msra.mxu0 0
      %729 = vmatprep.subr.bf16.mxu0 0
      %730 = vmatpush1.bf16.xpose.msra.mxu0 0
      %731 = vmatprep.subr.bf16.mxu0 0
      %732 = vmatpush1.bf16.xpose.msra.mxu0 0
      %733 = vmatprep.subr.bf16.mxu0 0
      %734 = vmatpush1.bf16.xpose.msra.mxu0 0
      %735 = vmatprep.subr.bf16.mxu0 0
      %736 = vmatpush1.bf16.xpose.msra.mxu0 0
      %737 = vmatprep.subr.bf16.mxu0 0
      %738 = vmatpush1.bf16.xpose.msra.mxu0 %v721
      %739 = vmatprep.subr.bf16.mxu0 0
      %740 = vmatpush2.bf16.xpose.msra.mxu0 0
      %741 = vmatprep.subr.bf16.mxu0 0
      %742 = vmatpush2.bf16.xpose.msra.mxu0 0
      %743 = vmatprep.subr.bf16.mxu0 0
      %744 = vmatpush2.bf16.xpose.msra.mxu0 0
      %745 = vmatprep.subr.bf16.mxu0 0
      %746 = vmatpush2.bf16.xpose.msra.mxu0 0
      %747 = vmatprep.subr.bf16.mxu0 0
      %748 = vmatpush2.bf16.xpose.msra.mxu0 0
      %749 = vmatprep.subr.bf16.mxu0 0
      %750 = vmatpush2.bf16.xpose.msra.mxu0 0
      %751 = vmatprep.subr.bf16.mxu0 0
      %752 = vmatpush2.bf16.xpose.msra.mxu0 0
      %753 = vmatprep.subr.bf16.mxu0 0
      %754 = vmatpush2.bf16.xpose.msra.mxu0 0
      %755 = vmatprep.mubr.bf16.mxu0 0
      %756 = vmatmul.mubr.bf16.gmra.mxu0 %v718
      %v757 = vpop.f32.mrf.mxu0
      %v758 = vadd.f32 0.0, %v757
      %v759 = vpop.f32.mrf.mxu0
      %v760 = vpop.f32.mrf.mxu0
      %v761 = vpop.f32.mrf.mxu0
      %762 = vdwg.mxu0
      %v763 = vmul.f32 %v758, 0.35355338
      %v764 = vsel %vm312, %v763, -inf
      %765 = vmax.xlane.f32.xlu0 %v764
      %v766 = vpop.xlane.xlu0 %765
      %v767 = vsub.f32 %v763, %v766
      %v768 = vmul.f32 %v767, 1.442695
      %v769 = vpow.pop %v768
      %v770 = vsel %vm312, %v769, 0.0
      %771 = vadd.xlane.f32.xlu0 %v770
      %v772 = vpop.xlane.xlu0 %771
      %v773 = vrcp.pop %v772
      %v774 = vmul.f32 %v769, %v773
      %v775 = vpack.c.bf16 %v774, %v774
      %776 = vrot.lane.b32.xlu0 %v329, 112
      %v777 = vpop.permute.xlu0 %776
      %v780 = vsel %vm312, %v775, 0
      %782 = vmatprep.subr.bf16.mxu0 0
      %783 = vmatpush1.bf16.msra.mxu0 0
      %784 = vmatprep.subr.bf16.mxu0 0
      %785 = vmatpush1.bf16.msra.mxu0 0
      %786 = vmatprep.subr.bf16.mxu0 0
      %787 = vmatpush1.bf16.msra.mxu0 0
      %788 = vmatprep.subr.bf16.mxu0 0
      %789 = vmatpush1.bf16.msra.mxu0 0
      %790 = vmatprep.subr.bf16.mxu0 0
      %791 = vmatpush1.bf16.msra.mxu0 0
      %792 = vmatprep.subr.bf16.mxu0 0
      %793 = vmatpush1.bf16.msra.mxu0 0
      %794 = vmatprep.subr.bf16.mxu0 0
      %795 = vmatpush1.bf16.msra.mxu0 0
      %796 = vmatprep.subr.bf16.mxu0 0
      %797 = vmatpush1.bf16.msra.mxu0 %v777
      %798 = vmatprep.subr.bf16.mxu0 0
      %799 = vmatpush2.bf16.msra.mxu0 0
      %800 = vmatprep.subr.bf16.mxu0 0
      %801 = vmatpush2.bf16.msra.mxu0 0
      %802 = vmatprep.subr.bf16.mxu0 0
      %803 = vmatpush2.bf16.msra.mxu0 0
      %804 = vmatprep.subr.bf16.mxu0 0
      %805 = vmatpush2.bf16.msra.mxu0 0
      %806 = vmatprep.subr.bf16.mxu0 0
      %807 = vmatpush2.bf16.msra.mxu0 0
      %808 = vmatprep.subr.bf16.mxu0 0
      %809 = vmatpush2.bf16.msra.mxu0 0
      %810 = vmatprep.subr.bf16.mxu0 0
      %811 = vmatpush2.bf16.msra.mxu0 0
      %812 = vmatprep.subr.bf16.mxu0 0
      %813 = vmatpush2.bf16.msra.mxu0 0
      %814 = vmatprep.mubr.bf16.mxu0 0
      %815 = vmatmul.mubr.bf16.gmra.mxu0 %v780
      %v816 = vpop.f32.mrf.mxu0
      %v817 = vadd.f32 0.0, %v816
      %v818 = vpop.f32.mrf.mxu0
      %v819 = vpop.f32.mrf.mxu0
      %v820 = vpop.f32.mrf.mxu0
      %821 = vdwg.mxu0
      %vm822 = vcmask 195712
      %v823 = vsel %vm822, %v374, 0.0
      %v824 = vsel %vm822, %v375, 0.0
      %v825 = vadd.f32 %v823, %v824
      %v826 = vrot.slane %v825, 4
      %v827 = vadd.f32 %v825, %v826
      %v828 = vrot.slane %v827, 2
      %v829 = vadd.f32 %v827, %v828
      %v830 = vrot.slane %v829, 1
      %v831 = vadd.f32 %v829, %v830
      %v832 = vmul.f32 %v831, %v385
      %v833 = vlaneseq
      %v834 = vshrl.u32 %v833, 7
      %v835 = vsub.s32 2, %v834
      %v836 = vrot.slane %v258, %v835
      %vm837 = vcmp.eq.s32.totalorder %v388, %v836
      %vm838 = vcmp.eq.s32.totalorder %v389, %v836
      %v839 = vsel %vm837, 1, 0
      %v840 = vsel %vm838, 1, 0
      %v841 = vcvt.s32.f32 %v839
      %v842 = vcvt.s32.f32 %v840
      %844 = vrot.lane.b32.xlu0 %v832, 112
      %v845 = vpop.permute.xlu0 %844
      %v847 = vsub.f32 %v817, %v845
      %v849 = vsel %vm264, %v841, 0
      %v852 = vsel %vm264, %v842, 0
      %854 = vmatprep.subr.mxu0 0.0
      %855 = vmatpush1.msra.mxu0 0.0
      %856 = vmatprep.subr.mxu0 0.0
      %857 = vmatpush1.msra.mxu0 0.0
      %858 = vmatprep.subr.mxu0 0.0
      %859 = vmatpush1.msra.mxu0 0.0
      %860 = vmatprep.subr.mxu0 0.0
      %861 = vmatpush1.msra.mxu0 0.0
      %862 = vmatprep.subr.mxu0 0.0
      %863 = vmatpush1.msra.mxu0 0.0
      %864 = vmatprep.subr.mxu0 0.0
      %865 = vmatpush1.msra.mxu0 0.0
      %866 = vmatprep.subr.mxu0 0.0
      %867 = vmatpush1.msra.mxu0 0.0
      %868 = vmatprep.subr.mxu0 0.0
      %869 = vmatpush1.msra.mxu0 0.0
      %870 = vmatprep.subr.mxu0 0.0
      %871 = vmatpush1.msra.mxu0 0.0
      %872 = vmatprep.subr.mxu0 0.0
      %873 = vmatpush1.msra.mxu0 0.0
      %874 = vmatprep.subr.mxu0 0.0
      %875 = vmatpush1.msra.mxu0 0.0
      %876 = vmatprep.subr.mxu0 0.0
      %877 = vmatpush1.msra.mxu0 0.0
      %878 = vmatprep.subr.mxu0 0.0
      %879 = vmatpush1.msra.mxu0 0.0
      %880 = vmatprep.subr.mxu0 0.0
      %881 = vmatpush1.msra.mxu0 0.0
      %882 = vmatprep.subr.mxu0 0.0
      %883 = vmatpush1.msra.mxu0 0.0
      %884 = vmatprep.subr.mxu0 0.0
      %885 = vmatpush1.msra.mxu0 %v847
      %886 = vmatprep.subr.mxu0 0.0
      %887 = vmatpush2.msra.mxu0 0.0
      %888 = vmatprep.subr.mxu0 0.0
      %889 = vmatpush2.msra.mxu0 0.0
      %890 = vmatprep.subr.mxu0 0.0
      %891 = vmatpush2.msra.mxu0 0.0
      %892 = vmatprep.subr.mxu0 0.0
      %893 = vmatpush2.msra.mxu0 0.0
      %894 = vmatprep.subr.mxu0 0.0
      %895 = vmatpush2.msra.mxu0 0.0
      %896 = vmatprep.subr.mxu0 0.0
      %897 = vmatpush2.msra.mxu0 0.0
      %898 = vmatprep.subr.mxu0 0.0
      %899 = vmatpush2.msra.mxu0 0.0
      %900 = vmatprep.subr.mxu0 0.0
      %901 = vmatpush2.msra.mxu0 0.0
      %902 = vmatprep.subr.mxu0 0.0
      %903 = vmatpush2.msra.mxu0 0.0
      %904 = vmatprep.subr.mxu0 0.0
      %905 = vmatpush2.msra.mxu0 0.0
      %906 = vmatprep.subr.mxu0 0.0
      %907 = vmatpush2.msra.mxu0 0.0
      %908 = vmatprep.subr.mxu0 0.0
      %909 = vmatpush2.msra.mxu0 0.0
      %910 = vmatprep.subr.mxu0 0.0
      %911 = vmatpush2.msra.mxu0 0.0
      %912 = vmatprep.subr.mxu0 0.0
      %913 = vmatpush2.msra.mxu0 0.0
      %914 = vmatprep.subr.mxu0 0.0
      %915 = vmatpush2.msra.mxu0 0.0
      %916 = vmatprep.subr.mxu0 0.0
      %917 = vmatpush2.msra.mxu0 0.0
      %918 = vmatprep.mubr.f32.mxu0 0.0
      %919 = vmatmul.mubr.f32.gmra.mxu0 %v849
      %v920 = vpop.f32.mrf.mxu0
      %v921 = vadd.f32 0.0, %v920
      %v922 = vpop.f32.mrf.mxu0
      %923 = vmatprep.mubr.f32.mxu0 0.0
      %924 = vmatmul.mubr.f32.gmra.mxu0 %v852
      %v925 = vpop.f32.mrf.mxu0
      %v926 = vadd.f32 0.0, %v925
      %v927 = vpop.f32.mrf.mxu0
      %928 = vdwg.mxu0
      %931 = vrot.lane.b32.xlu0 %v921, 16
      %v932 = vpop.permute.xlu0 %931
      %933 = vrot.lane.b32.xlu0 %v926, 16
      %v934 = vpop.permute.xlu0 %933
      %v937 = vadd.f32 %v832, %v932
      %v938 = vadd.f32 %v832, %v934
      %939 = vrot.lane.b32.xlu0 %v486, 104
      %v940 = vpop.permute.xlu0 %939
      %941 = vrot.lane.b32.xlu0 %v263, 104
      %v942 = vpop.permute.xlu0 %941
      %v944 = vsel %vm264, %v940, 0
      %v947 = vsel %vm264, %v942, 0
      %949 = vmatprep.subr.bf16.mxu0 0
      %950 = vmatpush1.bf16.xpose.msra.mxu0 0
      %951 = vmatprep.subr.bf16.mxu0 0
      %952 = vmatpush1.bf16.xpose.msra.mxu0 0
      %953 = vmatprep.subr.bf16.mxu0 0
      %954 = vmatpush1.bf16.xpose.msra.mxu0 0
      %955 = vmatprep.subr.bf16.mxu0 0
      %956 = vmatpush1.bf16.xpose.msra.mxu0 0
      %957 = vmatprep.subr.bf16.mxu0 0
      %958 = vmatpush1.bf16.xpose.msra.mxu0 0
      %959 = vmatprep.subr.bf16.mxu0 0
      %960 = vmatpush1.bf16.xpose.msra.mxu0 0
      %961 = vmatprep.subr.bf16.mxu0 0
      %962 = vmatpush1.bf16.xpose.msra.mxu0 0
      %963 = vmatprep.subr.bf16.mxu0 0
      %964 = vmatpush1.bf16.xpose.msra.mxu0 %v947
      %965 = vmatprep.subr.bf16.mxu0 0
      %966 = vmatpush2.bf16.xpose.msra.mxu0 0
      %967 = vmatprep.subr.bf16.mxu0 0
      %968 = vmatpush2.bf16.xpose.msra.mxu0 0
      %969 = vmatprep.subr.bf16.mxu0 0
      %970 = vmatpush2.bf16.xpose.msra.mxu0 0
      %971 = vmatprep.subr.bf16.mxu0 0
      %972 = vmatpush2.bf16.xpose.msra.mxu0 0
      %973 = vmatprep.subr.bf16.mxu0 0
      %974 = vmatpush2.bf16.xpose.msra.mxu0 0
      %975 = vmatprep.subr.bf16.mxu0 0
      %976 = vmatpush2.bf16.xpose.msra.mxu0 0
      %977 = vmatprep.subr.bf16.mxu0 0
      %978 = vmatpush2.bf16.xpose.msra.mxu0 0
      %979 = vmatprep.subr.bf16.mxu0 0
      %980 = vmatpush2.bf16.xpose.msra.mxu0 0
      %981 = vmatprep.mubr.bf16.mxu0 0
      %982 = vmatmul.mubr.bf16.gmra.mxu0 %v944
      %v983 = vpop.f32.mrf.mxu0
      %v984 = vadd.f32 0.0, %v983
      %v985 = vpop.f32.mrf.mxu0
      %v986 = vpop.f32.mrf.mxu0
      %v987 = vpop.f32.mrf.mxu0
      %988 = vdwg.mxu0
      %v989 = vmul.f32 %v984, 0.35355338
      %v990 = vsel %vm312, %v989, -inf
      %991 = vmax.xlane.f32.xlu0 %v990
      %v992 = vpop.xlane.xlu0 %991
      %v993 = vsub.f32 %v989, %v992
      %v994 = vmul.f32 %v993, 1.442695
      %v995 = vpow.pop %v994
      %v996 = vsel %vm312, %v995, 0.0
      %997 = vadd.xlane.f32.xlu0 %v996
      %v998 = vpop.xlane.xlu0 %997
      %v999 = vrcp.pop %v998
      %v1000 = vmul.f32 %v995, %v999
      %v1001 = vpack.c.bf16 %v1000, %v1000
      %1002 = vrot.lane.b32.xlu0 %v329, 104
      %v1003 = vpop.permute.xlu0 %1002
      %v1006 = vsel %vm312, %v1001, 0
      %1008 = vmatprep.subr.bf16.mxu0 0
      %1009 = vmatpush1.bf16.msra.mxu0 0
      %1010 = vmatprep.subr.bf16.mxu0 0
      %1011 = vmatpush1.bf16.msra.mxu0 0
      %1012 = vmatprep.subr.bf16.mxu0 0
      %1013 = vmatpush1.bf16.msra.mxu0 0
      %1014 = vmatprep.subr.bf16.mxu0 0
      %1015 = vmatpush1.bf16.msra.mxu0 0
      %1016 = vmatprep.subr.bf16.mxu0 0
      %1017 = vmatpush1.bf16.msra.mxu0 0
      %1018 = vmatprep.subr.bf16.mxu0 0
      %1019 = vmatpush1.bf16.msra.mxu0 0
      %1020 = vmatprep.subr.bf16.mxu0 0
      %1021 = vmatpush1.bf16.msra.mxu0 0
      %1022 = vmatprep.subr.bf16.mxu0 0
      %1023 = vmatpush1.bf16.msra.mxu0 %v1003
      %1024 = vmatprep.subr.bf16.mxu0 0
      %1025 = vmatpush2.bf16.msra.mxu0 0
      %1026 = vmatprep.subr.bf16.mxu0 0
      %1027 = vmatpush2.bf16.msra.mxu0 0
      %1028 = vmatprep.subr.bf16.mxu0 0
      %1029 = vmatpush2.bf16.msra.mxu0 0
      %1030 = vmatprep.subr.bf16.mxu0 0
      %1031 = vmatpush2.bf16.msra.mxu0 0
      %1032 = vmatprep.subr.bf16.mxu0 0
      %1033 = vmatpush2.bf16.msra.mxu0 0
      %1034 = vmatprep.subr.bf16.mxu0 0
      %1035 = vmatpush2.bf16.msra.mxu0 0
      %1036 = vmatprep.subr.bf16.mxu0 0
      %1037 = vmatpush2.bf16.msra.mxu0 0
      %1038 = vmatprep.subr.bf16.mxu0 0
      %1039 = vmatpush2.bf16.msra.mxu0 0
      %1040 = vmatprep.mubr.bf16.mxu0 0
      %1041 = vmatmul.mubr.bf16.gmra.mxu0 %v1006
      %v1042 = vpop.f32.mrf.mxu0
      %v1043 = vadd.f32 0.0, %v1042
      %v1044 = vpop.f32.mrf.mxu0
      %v1045 = vpop.f32.mrf.mxu0
      %v1046 = vpop.f32.mrf.mxu0
      %1047 = vdwg.mxu0
      %vm1048 = vcmask 261312
      %v1049 = vsel %vm1048, %v374, 0.0
      %v1050 = vsel %vm1048, %v375, 0.0
      %v1051 = vadd.f32 %v1049, %v1050
      %v1052 = vrot.slane %v1051, 4
      %v1053 = vadd.f32 %v1051, %v1052
      %v1054 = vrot.slane %v1053, 2
      %v1055 = vadd.f32 %v1053, %v1054
      %v1056 = vrot.slane %v1055, 1
      %v1057 = vadd.f32 %v1055, %v1056
      %v1058 = vmul.f32 %v1057, %v385
      %v1059 = vlaneseq
      %v1060 = vshrl.u32 %v1059, 7
      %v1061 = vsub.s32 3, %v1060
      %v1062 = vrot.slane %v258, %v1061
      %vm1063 = vcmp.eq.s32.totalorder %v388, %v1062
      %vm1064 = vcmp.eq.s32.totalorder %v389, %v1062
      %v1065 = vsel %vm1063, 1, 0
      %v1066 = vsel %vm1064, 1, 0
      %v1067 = vcvt.s32.f32 %v1065
      %v1068 = vcvt.s32.f32 %v1066
      %1070 = vrot.lane.b32.xlu0 %v1058, 104
      %v1071 = vpop.permute.xlu0 %1070
      %v1073 = vsub.f32 %v1043, %v1071
      %v1075 = vsel %vm264, %v1067, 0
      %v1078 = vsel %vm264, %v1068, 0
      %1080 = vmatprep.subr.mxu0 0.0
      %1081 = vmatpush1.msra.mxu0 0.0
      %1082 = vmatprep.subr.mxu0 0.0
      %1083 = vmatpush1.msra.mxu0 0.0
      %1084 = vmatprep.subr.mxu0 0.0
      %1085 = vmatpush1.msra.mxu0 0.0
      %1086 = vmatprep.subr.mxu0 0.0
      %1087 = vmatpush1.msra.mxu0 0.0
      %1088 = vmatprep.subr.mxu0 0.0
      %1089 = vmatpush1.msra.mxu0 0.0
      %1090 = vmatprep.subr.mxu0 0.0
      %1091 = vmatpush1.msra.mxu0 0.0
      %1092 = vmatprep.subr.mxu0 0.0
      %1093 = vmatpush1.msra.mxu0 0.0
      %1094 = vmatprep.subr.mxu0 0.0
      %1095 = vmatpush1.msra.mxu0 0.0
      %1096 = vmatprep.subr.mxu0 0.0
      %1097 = vmatpush1.msra.mxu0 0.0
      %1098 = vmatprep.subr.mxu0 0.0
      %1099 = vmatpush1.msra.mxu0 0.0
      %1100 = vmatprep.subr.mxu0 0.0
      %1101 = vmatpush1.msra.mxu0 0.0
      %1102 = vmatprep.subr.mxu0 0.0
      %1103 = vmatpush1.msra.mxu0 0.0
      %1104 = vmatprep.subr.mxu0 0.0
      %1105 = vmatpush1.msra.mxu0 0.0
      %1106 = vmatprep.subr.mxu0 0.0
      %1107 = vmatpush1.msra.mxu0 0.0
      %1108 = vmatprep.subr.mxu0 0.0
      %1109 = vmatpush1.msra.mxu0 0.0
      %1110 = vmatprep.subr.mxu0 0.0
      %1111 = vmatpush1.msra.mxu0 %v1073
      %1112 = vmatprep.subr.mxu0 0.0
      %1113 = vmatpush2.msra.mxu0 0.0
      %1114 = vmatprep.subr.mxu0 0.0
      %1115 = vmatpush2.msra.mxu0 0.0
      %1116 = vmatprep.subr.mxu0 0.0
      %1117 = vmatpush2.msra.mxu0 0.0
      %1118 = vmatprep.subr.mxu0 0.0
      %1119 = vmatpush2.msra.mxu0 0.0
      %1120 = vmatprep.subr.mxu0 0.0
      %1121 = vmatpush2.msra.mxu0 0.0
      %1122 = vmatprep.subr.mxu0 0.0
      %1123 = vmatpush2.msra.mxu0 0.0
      %1124 = vmatprep.subr.mxu0 0.0
      %1125 = vmatpush2.msra.mxu0 0.0
      %1126 = vmatprep.subr.mxu0 0.0
      %1127 = vmatpush2.msra.mxu0 0.0
      %1128 = vmatprep.subr.mxu0 0.0
      %1129 = vmatpush2.msra.mxu0 0.0
      %1130 = vmatprep.subr.mxu0 0.0
      %1131 = vmatpush2.msra.mxu0 0.0
      %1132 = vmatprep.subr.mxu0 0.0
      %1133 = vmatpush2.msra.mxu0 0.0
      %1134 = vmatprep.subr.mxu0 0.0
      %1135 = vmatpush2.msra.mxu0 0.0
      %1136 = vmatprep.subr.mxu0 0.0
      %1137 = vmatpush2.msra.mxu0 0.0
      %1138 = vmatprep.subr.mxu0 0.0
      %1139 = vmatpush2.msra.mxu0 0.0
      %1140 = vmatprep.subr.mxu0 0.0
      %1141 = vmatpush2.msra.mxu0 0.0
      %1142 = vmatprep.subr.mxu0 0.0
      %1143 = vmatpush2.msra.mxu0 0.0
      %1144 = vmatprep.mubr.f32.mxu0 0.0
      %1145 = vmatmul.mubr.f32.gmra.mxu0 %v1075
      %v1146 = vpop.f32.mrf.mxu0
      %v1147 = vadd.f32 0.0, %v1146
      %v1148 = vpop.f32.mrf.mxu0
      %1149 = vmatprep.mubr.f32.mxu0 0.0
      %1150 = vmatmul.mubr.f32.gmra.mxu0 %v1078
      %v1151 = vpop.f32.mrf.mxu0
      %v1152 = vadd.f32 0.0, %v1151
      %v1153 = vpop.f32.mrf.mxu0
      %1154 = vdwg.mxu0
      %1157 = vrot.lane.b32.xlu0 %v1147, 24
      %v1158 = vpop.permute.xlu0 %1157
      %1159 = vrot.lane.b32.xlu0 %v1152, 24
      %v1160 = vpop.permute.xlu0 %1159
      %v1163 = vadd.f32 %v1058, %v1158
      %v1164 = vadd.f32 %v1058, %v1160
      %v1165 = vsel %vm264, %v482, %v711
      %v1166 = vsel %vm264, %v483, %v712
      %v1167 = vsel %vm312, %v1165, %v937
      %v1168 = vsel %vm312, %v1166, %v938
      %vm1169 = vcmask 195584
      %v1170 = vsel %vm1169, %v1167, %v1163
      %v1171 = vsel %vm1169, %v1168, %v1164
      %v1172 = vpack.c.bf16 %v1171, %v1170
      %v1174 = vunpack.c.l.b16 %v1172
      %v1175 = vunpack.c.h.b16 %v1172
      %v1176 = vpack.c.b16 %v1174, %v1174
      %v1177 = vpack.c.b16 %v1175, %v1175
      %vm1180 = vcmask 257024
      %1181 = vst.msk [vmem:[%s251] sm:$0xf] %vm1180, %v1176
      %1182 = vst.msk [vmem:[%s251 + $0x4] sm:$0xf] %vm1180, %v1177
      %p1183 = scmp.lt.s32.totalorder %s15, 1
      %s1184 = scalar_select %p1183, %s15, 1
      %s1185 = smul.addr %s1184, 2
      %s1186 = smul.addr %s1185, 4
      %s1187 = scalar_lea.vmem %s4, %s1186
      // Predicated region
      $region37: #{prob_attention_forward.10} parent=35 // pred_check
        %p1188 = pneg %p137
      $region38: #{prob_attention_forward.10} parent=35 // pred_check_branch
        %1190 = sbr.rel (%p1188) target = $region40
      $region39: #{prob_attention_forward.10} parent=35 // pred_region
        _
      $region40: #{prob_attention_forward.10} parent=35 // pred_fallthru
        _
    $region36: #{prob_attention_forward.10} parent=5 // pred_fallthru
      _
    %p1191 = scmp.le.s32.totalorder 2, %s10
    // Predicated region
    $region41: #{prob_attention_forward.10} parent=5 // pred_check
      %p1192 = pneg %p1191
    $region42: #{prob_attention_forward.10} parent=5 // pred_check_branch
      %1194 = sbr.rel (%p1192) target = $region44
    $region43: #{prob_attention_forward.10} parent=5 // pred_region
      %s1195 = ssub.s32 %s10, 2
      // Predicated region
      $region45: #{prob_attention_forward.10} parent=43 // pred_check
        %p1196 = pneg %p143
      $region46: #{prob_attention_forward.10} parent=43 // pred_check_branch
        %1198 = sbr.rel (%p1196) target = $region48
      $region47: #{prob_attention_forward.10} parent=43 // pred_region
        %p1199 = scmp.lt.s32.totalorder %s16, 1
        %s1200 = scalar_select %p1199, %s16, 1
        %s1201 = smul.addr %s1200, 2
        %s1202 = smul.addr %s1201, 4
        %s1203 = scalar_lea.vmem %s4, %s1202
      $region48: #{prob_attention_forward.10} parent=43 // pred_fallthru
        _
    $region44: #{prob_attention_forward.10} parent=5 // pred_fallthru
      _
  $region6: #{prob_attention_forward.10} parent=0 // loop_footer
    %s14 = sadd.s32 1, %s10
  $region7: #{prob_attention_forward.10} parent=0 // loop_footer_branch
    %9 = sbr.rel target = $region3
  $region8: #{prob_attention_forward.10} parent=0 // loop_exit
    _

</llo_original>
